<compile_context>
chip_gen: v6e
topology: v6e:2x2x1
jax: 0.10.0
libtpu: 0.0.40
codegen_flags: <defaults>
</compile_context>

<pallas_src>
import functools

import jax
import jax.numpy as jnp
from jax.experimental import pallas as pl
from jax.experimental.pallas import tpu as pltpu


def _round_up(x, m):
    return ((x + m - 1) // m) * m


@functools.lru_cache(maxsize=None)
def _vmem_limit_bytes():
    """Generation-aware scoped-VMEM budget (~75% of physical, capped 100 MiB)."""
    cap = 64 * 1024 * 1024                       # conservative fallback (v7x)
    try:
        cap = int(pltpu.get_tpu_info().vmem_capacity_bytes)
    except Exception:
        pass
    return int(min(cap * 3 // 4, 100 * 1024 * 1024))


def _pick_row_tile(OH, OW, target_m=1024):
    """Largest divisor TH of OH with TH*OW <= target_m (prefer TH*OW % 8 == 0).

    TH*OW is the matmul M dimension: as large as OH allows (>= 256 fills the
    v6e/v7x MXU) while keeping the output block a multiple of 8 sublanes.
    """
    best, best_aligned = 1, None
    for th in range(1, OH + 1):
        if OH % th != 0 or th * OW > target_m:
            continue
        best = th
        if (th * OW) % 8 == 0:
            best_aligned = th
    return best_aligned if best_aligned is not None else best


# ------------------------------ Pallas kernel ------------------------------ #
def _conv_bn_relu_kernel(x_ref, w_ref, shift_ref, o_ref, acc_ref, *, TH, OW,
                         KH, KW, stride, dilation, relu):
    # x_ref:     (1, Hp, Wp, C)     bf16  zero-padded NHWC image (one batch elem)
    # w_ref:     (KH*KW, C, O_pad)  bf16  BN-scale-folded conv weights
    # shift_ref: (1, O_pad)         f32   folded BN shift
    # o_ref:     (TH*OW, O_pad)     f32   flat output row tile (lane-dense)
    # acc_ref:   (TH*OW, O_pad)     f32   VMEM accumulator scratch
    t = pl.program_id(1)
    h_base = t * (TH * stride)
    M = TH * OW

    for tap in range(KH * KW):                    # unrolled: KH*KW MXU matmuls
        kh, kw = divmod(tap, KW)
        h0 = h_base + kh * dilation
        w0 = kw * dilation
        if stride == 1:
            sl = x_ref[0, pl.ds(h0, TH), pl.ds(w0, OW), :]
        else:
            # TODO(synk): pre-split the padded image by stride phase host-side
            # so every tap load is unit-stride (strided sublane loads are slow).
            sl = x_ref[0, pl.ds(h0, TH, stride), pl.ds(w0, OW, stride), :]
        a = sl.reshape(M, sl.shape[-1])           # (TH*OW, C) bf16 — M fills MXU
        d = jnp.dot(a, w_ref[tap], preferred_element_type=jnp.float32)
        if tap == 0:
            acc_ref[...] = d
        else:
            acc_ref[...] += d

    y = acc_ref[...] + shift_ref[...]             # (TH*OW, O_pad) f32
    if relu:
        y = jnp.maximum(y, 0.0)
    o_ref[...] = y.astype(o_ref.dtype)


def _fused_conv_call(xp, w_k, shift_k, *, N, OH, OW, KH, KW, stride, dilation,
                     relu, TH):
    _, Hp, Wp, C = xp.shape
    O_pad = w_k.shape[-1]
    num_t = OH // TH
    M = TH * OW

    kernel = functools.partial(_conv_bn_relu_kernel, TH=TH, OW=OW, KH=KH,
                               KW=KW, stride=stride, dilation=dilation,
                               relu=relu)
    return pl.pallas_call(
        kernel,
        out_shape=jax.ShapeDtypeStruct((N * OH * OW, O_pad), jnp.float32),
        grid_spec=pltpu.PrefetchScalarGridSpec(
            num_scalar_prefetch=0,
            grid=(N, num_t),
            in_specs=[
                # Whole padded image per batch element; block index ignores the
                # row-tile axis so it is DMA'd once per image.
                # TODO(synk): halo row-tiles (indexed by t) for large Hp*Wp*C.
                pl.BlockSpec((1, Hp, Wp, C), lambda n, t: (n, 0, 0, 0)),
                # Constant blocks: never re-fetched across the grid.
                # (pipeline_mode=pl.Buffered(1) would halve their VMEM buffer.)
                pl.BlockSpec((KH * KW, C, O_pad), lambda n, t: (0, 0, 0)),
                pl.BlockSpec((1, O_pad), lambda n, t: (0, 0)),
            ],
            out_specs=pl.BlockSpec((M, O_pad), lambda n, t: (n * num_t + t, 0)),
            scratch_shapes=[pltpu.VMEM((M, O_pad), jnp.float32)],
        ),
        compiler_params=pltpu.CompilerParams(
            # Each (n, t) writes a disjoint output block -> both axes parallel
            # (lets v7x's two TensorCores split the grid even when N == 1).
            dimension_semantics=("parallel", "parallel"),
            vmem_limit_bytes=_vmem_limit_bytes(),
        ),
    )(xp, w_k, shift_k)


# ------------------------------- Forward glue ------------------------------ #
@functools.partial(jax.jit,
                   static_argnames=("stride", "padding", "dilation", "relu"))
def basic_conv_forward(x, weight, gamma, beta, running_mean, running_var, eps,
                       *, stride, padding, dilation, relu):
    N, C, H, W = x.shape
    O, Cw, KH, KW = weight.shape
    assert Cw == C
    OH = (H + 2 * padding - dilation * (KH - 1) - 1) // stride + 1
    OW = (W + 2 * padding - dilation * (KW - 1) - 1) // stride + 1
    O_pad = _round_up(O, 128)

    # Fold eval-mode BN into the conv:  y = conv(x, w * scale) + shift.
    scale = gamma / jnp.sqrt(running_var + eps)                  # (O,)
    shift = beta - running_mean * scale                          # (O,)
    w_k = jnp.transpose(weight * scale[:, None, None, None],
                        (2, 3, 1, 0)).reshape(KH * KW, C, O)     # (KH*KW, C, O)
    w_k = jnp.pad(w_k, ((0, 0), (0, 0), (0, O_pad - O))).astype(jnp.bfloat16)
    shift_k = jnp.pad(shift[None, :],
                      ((0, 0), (0, O_pad - O))).astype(jnp.float32)

    # NHWC (C on lanes), spatial zero-padding, bf16 MXU operands.
    # TODO(synk): keeping activations NHWC/bf16 across layers would drop these
    # wrapper transposes (extra HBM round-trips) entirely.
    xp = jnp.transpose(x, (0, 2, 3, 1))
    xp = jnp.pad(xp, ((0, 0), (padding, padding), (padding, padding), (0, 0)))
    xp = xp.astype(jnp.bfloat16)

    TH = _pick_row_tile(OH, OW)
    out = _fused_conv_call(xp, w_k, shift_k, N=N, OH=OH, OW=OW, KH=KH, KW=KW,
                           stride=stride, dilation=dilation, relu=relu, TH=TH)
    out = out.reshape(N, OH, OW, O_pad)[..., :O]
    return jnp.transpose(out, (0, 3, 1, 2))                      # NCHW, f32


class BasicConvPallas:
    """JAX/Pallas re-implementation of BasicConv's forward (eval-mode BN)."""

    def __init__(self, key, in_planes, out_planes, kernel_size, stride,
                 padding, dilation=1, relu=True, eps=1e-5):
        self.in_planes = in_planes
        self.out_planes = out_planes
        self.kernel_size = kernel_size
        self.stride = stride
        self.padding = padding
        self.dilation = dilation
        self.relu = relu
        self.eps = eps

        k_w, k_g, k_b, k_m, k_v = jax.random.split(key, 5)
        fan_in = in_planes * kernel_size * kernel_size
        bound = 1.0 / (fan_in ** 0.5)
        self.weight = jax.random.uniform(
            k_w, (out_planes, in_planes, kernel_size, kernel_size),
            minval=-bound, maxval=bound, dtype=jnp.float32)
        self.gamma = 1.0 + 0.1 * jax.random.normal(k_g, (out_planes,), jnp.float32)
        self.beta = 0.1 * jax.random.normal(k_b, (out_planes,), jnp.float32)
        self.running_mean = 0.1 * jax.random.normal(k_m, (out_planes,), jnp.float32)
        self.running_var = 1.0 + 0.1 * jax.random.uniform(k_v, (out_planes,),
                                                          dtype=jnp.float32)

    def __call__(self, x):
        N, C, H, W = x.shape
        assert C == self.in_planes
        return basic_conv_forward(
            x, self.weight, self.gamma, self.beta, self.running_mean,
            self.running_var, self.eps, stride=self.stride,
            padding=self.padding, dilation=self.dilation, relu=self.relu)


# --------------------------------- Reference -------------------------------- #
def reference_forward(mod: BasicConvPallas, x, *, match_bf16=False):
    scale = mod.gamma / jnp.sqrt(mod.running_var + mod.eps)
    shift = mod.beta - mod.running_mean * scale
    w = mod.weight * scale[:, None, None, None]
    xr = x
    if match_bf16:  # mirror the kernel's bf16 operand rounding (f32 accumulate)
        w = w.astype(jnp.bfloat16).astype(jnp.float32)
        xr = x.astype(jnp.bfloat16).astype(jnp.float32)
    y = jax.lax.conv_general_dilated(
        xr, w,
        window_strides=(mod.stride, mod.stride),
        padding=[(mod.padding, mod.padding)] * 2,
        rhs_dilation=(mod.dilation, mod.dilation),
        dimension_numbers=("NCHW", "OIHW", "NCHW"),
        precision=jax.lax.Precision.HIGHEST)
    y = y + shift.reshape(1, -1, 1, 1)
    if mod.relu:
        y = jnp.maximum(y, 0.0)
    return y


if __name__ == "__main__":
    key = jax.random.PRNGKey(0)
    k_param, k_x = jax.random.split(key)

    # Small shapes: N=2, C_in=4, H=W=16, C_out=8, 3x3 conv, stride 1, pad 1.
    N, C_in, H, W = 2, 4, 16, 16
    C_out, ksize, stride, pad = 8, 3, 1, 1

    mod = BasicConvPallas(k_param, C_in, C_out, ksize, stride, pad,
                          dilation=1, relu=True)
    x = jax.random.normal(k_x, (N, C_in, H, W), dtype=jnp.float32)

    out = jax.block_until_ready(mod(x))

    # Tight check vs a reference using the same bf16-rounded operands.
    ref_b = jax.block_until_ready(reference_forward(mod, x, match_bf16=True))
    assert out.shape == ref_b.shape
    assert jnp.allclose(out, ref_b, atol=2e-3, rtol=2e-3), \
        "mismatch vs bf16-matched reference"

    # Loose check vs the pure-f32 reference (bf16 MXU inputs -> small drift).
    ref_f = jax.block_until_ready(reference_forward(mod, x, match_bf16=False))
    assert jnp.allclose(out, ref_f, atol=5e-2, rtol=5e-2), \
        "mismatch vs f32 reference"

    print("KERNEL_OK")
</pallas_src>

<mosaic_0001>
module attributes {stable_mosaic.version = 11 : i64} {
  func.func @_conv_bn_relu_kernel(%arg0: i32, %arg1: i32, %arg2: memref<1x18x18x4xbf16, #tpu.memory_space<vmem>>, %arg3: memref<9x4x128xbf16, #tpu.memory_space<vmem>>, %arg4: memref<1x128xf32, #tpu.memory_space<vmem>>, %arg5: memref<256x128xf32, #tpu.memory_space<vmem>>, %arg6: memref<256x128xf32, #tpu.memory_space<vmem>>) attributes {dimension_semantics = [#tpu.dimension_semantics<parallel>, #tpu.dimension_semantics<parallel>], iteration_bounds = array<i64: 2, 1>, scalar_prefetch = 0 : i64, scratch_operands = 1 : i64, tpu.core_type = #tpu.core_type<tc>, window_params = [{transform_indices = @transform_0, window_bounds = array<i64: 1, 18, 18, 4>}, {pipeline_mode = #tpu.pipeline_mode<synchronous>, transform_indices = @transform_1, window_bounds = array<i64: 9, 4, 128>}, {pipeline_mode = #tpu.pipeline_mode<synchronous>, transform_indices = @transform_2, window_bounds = array<i64: 1, 128>}, {transform_indices = @transform_3, window_bounds = array<i64: 256, 128>}]} {
    %c16_i32 = arith.constant 16 : i32
    %0 = arith.muli %arg1, %c16_i32 : i32
    %c0_i32 = arith.constant 0 : i32
    %1 = arith.addi %0, %c0_i32 : i32
    %c0 = arith.constant 0 : index
    %2 = arith.index_cast %1 : i32 to index
    %c0_0 = arith.constant 0 : index
    %c0_1 = arith.constant 0 : index
    %3 = vector.load %arg2[%c0, %2, %c0_0, %c0_1] : memref<1x18x18x4xbf16, #tpu.memory_space<vmem>>, vector<1x16x16x4xbf16>
    %4 = vector.shape_cast %3 : vector<1x16x16x4xbf16> to vector<16x16x4xbf16>
    %5 = vector.shape_cast %4 : vector<16x16x4xbf16> to vector<256x4xbf16>
    %c0_2 = arith.constant 0 : index
    %c0_3 = arith.constant 0 : index
    %c0_4 = arith.constant 0 : index
    %6 = vector.load %arg3[%c0_2, %c0_3, %c0_4] : memref<9x4x128xbf16, #tpu.memory_space<vmem>>, vector<1x4x128xbf16>
    %7 = vector.shape_cast %6 : vector<1x4x128xbf16> to vector<4x128xbf16>
    %cst = arith.constant dense<0.000000e+00> : vector<256x128xf32>
    %8 = tpu.matmul %5, %7, %cst {dimension_numbers = #tpu.dot_dimension_numbers<[1], [0], [0], [1], [0, 0, 1, 1], [], []>} : vector<256x4xbf16>, vector<4x128xbf16>, vector<256x128xf32> -> vector<256x128xf32>
    %c0_5 = arith.constant 0 : index
    %c0_6 = arith.constant 0 : index
    %9 = vector.load %arg6[%c0_5, %c0_6] : memref<256x128xf32, #tpu.memory_space<vmem>>, vector<256x128xf32>
    tpu.vector_store %arg6[%c0_5, %c0_6], %8 {strides = array<i32>} : memref<256x128xf32, #tpu.memory_space<vmem>>, vector<256x128xf32>,
    %c0_i32_7 = arith.constant 0 : i32
    %10 = arith.addi %0, %c0_i32_7 : i32
    %c0_8 = arith.constant 0 : index
    %11 = arith.index_cast %10 : i32 to index
    %c1 = arith.constant 1 : index
    %c0_9 = arith.constant 0 : index
    %12 = vector.load %arg2[%c0_8, %11, %c1, %c0_9] : memref<1x18x18x4xbf16, #tpu.memory_space<vmem>>, vector<1x16x16x4xbf16>
    %13 = vector.shape_cast %12 : vector<1x16x16x4xbf16> to vector<16x16x4xbf16>
    %14 = vector.shape_cast %13 : vector<16x16x4xbf16> to vector<256x4xbf16>
    %c1_10 = arith.constant 1 : index
    %c0_11 = arith.constant 0 : index
    %c0_12 = arith.constant 0 : index
    %15 = vector.load %arg3[%c1_10, %c0_11, %c0_12] : memref<9x4x128xbf16, #tpu.memory_space<vmem>>, vector<1x4x128xbf16>
    %16 = vector.shape_cast %15 : vector<1x4x128xbf16> to vector<4x128xbf16>
    %cst_13 = arith.constant dense<0.000000e+00> : vector<256x128xf32>
    %17 = tpu.matmul %14, %16, %cst_13 {dimension_numbers = #tpu.dot_dimension_numbers<[1], [0], [0], [1], [0, 0, 1, 1], [], []>} : vector<256x4xbf16>, vector<4x128xbf16>, vector<256x128xf32> -> vector<256x128xf32>
    %c0_14 = arith.constant 0 : index
    %c0_15 = arith.constant 0 : index
    %18 = vector.load %arg6[%c0_14, %c0_15] : memref<256x128xf32, #tpu.memory_space<vmem>>, vector<256x128xf32>
    %19 = arith.addf %18, %17 : vector<256x128xf32>
    %c0_16 = arith.constant 0 : index
    %c0_17 = arith.constant 0 : index
    %20 = vector.load %arg6[%c0_16, %c0_17] : memref<256x128xf32, #tpu.memory_space<vmem>>, vector<256x128xf32>
    tpu.vector_store %arg6[%c0_16, %c0_17], %19 {strides = array<i32>} : memref<256x128xf32, #tpu.memory_space<vmem>>, vector<256x128xf32>,
    %c0_i32_18 = arith.constant 0 : i32
    %21 = arith.addi %0, %c0_i32_18 : i32
    %c0_19 = arith.constant 0 : index
    %22 = arith.index_cast %21 : i32 to index
    %c2 = arith.constant 2 : index
    %c0_20 = arith.constant 0 : index
    %23 = vector.load %arg2[%c0_19, %22, %c2, %c0_20] : memref<1x18x18x4xbf16, #tpu.memory_space<vmem>>, vector<1x16x16x4xbf16>
    %24 = vector.shape_cast %23 : vector<1x16x16x4xbf16> to vector<16x16x4xbf16>
    %25 = vector.shape_cast %24 : vector<16x16x4xbf16> to vector<256x4xbf16>
    %c2_21 = arith.constant 2 : index
    %c0_22 = arith.constant 0 : index
    %c0_23 = arith.constant 0 : index
    %26 = vector.load %arg3[%c2_21, %c0_22, %c0_23] : memref<9x4x128xbf16, #tpu.memory_space<vmem>>, vector<1x4x128xbf16>
    %27 = vector.shape_cast %26 : vector<1x4x128xbf16> to vector<4x128xbf16>
    %cst_24 = arith.constant dense<0.000000e+00> : vector<256x128xf32>
    %28 = tpu.matmul %25, %27, %cst_24 {dimension_numbers = #tpu.dot_dimension_numbers<[1], [0], [0], [1], [0, 0, 1, 1], [], []>} : vector<256x4xbf16>, vector<4x128xbf16>, vector<256x128xf32> -> vector<256x128xf32>
    %c0_25 = arith.constant 0 : index
    %c0_26 = arith.constant 0 : index
    %29 = vector.load %arg6[%c0_25, %c0_26] : memref<256x128xf32, #tpu.memory_space<vmem>>, vector<256x128xf32>
    %30 = arith.addf %29, %28 : vector<256x128xf32>
    %c0_27 = arith.constant 0 : index
    %c0_28 = arith.constant 0 : index
    %31 = vector.load %arg6[%c0_27, %c0_28] : memref<256x128xf32, #tpu.memory_space<vmem>>, vector<256x128xf32>
    tpu.vector_store %arg6[%c0_27, %c0_28], %30 {strides = array<i32>} : memref<256x128xf32, #tpu.memory_space<vmem>>, vector<256x128xf32>,
    %c1_i32 = arith.constant 1 : i32
    %32 = arith.addi %0, %c1_i32 : i32
    %c0_29 = arith.constant 0 : index
    %33 = arith.index_cast %32 : i32 to index
    %c0_30 = arith.constant 0 : index
    %c0_31 = arith.constant 0 : index
    %34 = vector.load %arg2[%c0_29, %33, %c0_30, %c0_31] : memref<1x18x18x4xbf16, #tpu.memory_space<vmem>>, vector<1x16x16x4xbf16>
    %35 = vector.shape_cast %34 : vector<1x16x16x4xbf16> to vector<16x16x4xbf16>
    %36 = vector.shape_cast %35 : vector<16x16x4xbf16> to vector<256x4xbf16>
    %c3 = arith.constant 3 : index
    %c0_32 = arith.constant 0 : index
    %c0_33 = arith.constant 0 : index
    %37 = vector.load %arg3[%c3, %c0_32, %c0_33] : memref<9x4x128xbf16, #tpu.memory_space<vmem>>, vector<1x4x128xbf16>
    %38 = vector.shape_cast %37 : vector<1x4x128xbf16> to vector<4x128xbf16>
    %cst_34 = arith.constant dense<0.000000e+00> : vector<256x128xf32>
    %39 = tpu.matmul %36, %38, %cst_34 {dimension_numbers = #tpu.dot_dimension_numbers<[1], [0], [0], [1], [0, 0, 1, 1], [], []>} : vector<256x4xbf16>, vector<4x128xbf16>, vector<256x128xf32> -> vector<256x128xf32>
    %c0_35 = arith.constant 0 : index
    %c0_36 = arith.constant 0 : index
    %40 = vector.load %arg6[%c0_35, %c0_36] : memref<256x128xf32, #tpu.memory_space<vmem>>, vector<256x128xf32>
    %41 = arith.addf %40, %39 : vector<256x128xf32>
    %c0_37 = arith.constant 0 : index
    %c0_38 = arith.constant 0 : index
    %42 = vector.load %arg6[%c0_37, %c0_38] : memref<256x128xf32, #tpu.memory_space<vmem>>, vector<256x128xf32>
    tpu.vector_store %arg6[%c0_37, %c0_38], %41 {strides = array<i32>} : memref<256x128xf32, #tpu.memory_space<vmem>>, vector<256x128xf32>,
    %c1_i32_39 = arith.constant 1 : i32
    %43 = arith.addi %0, %c1_i32_39 : i32
    %c0_40 = arith.constant 0 : index
    %44 = arith.index_cast %43 : i32 to index
    %c1_41 = arith.constant 1 : index
    %c0_42 = arith.constant 0 : index
    %45 = vector.load %arg2[%c0_40, %44, %c1_41, %c0_42] : memref<1x18x18x4xbf16, #tpu.memory_space<vmem>>, vector<1x16x16x4xbf16>
    %46 = vector.shape_cast %45 : vector<1x16x16x4xbf16> to vector<16x16x4xbf16>
    %47 = vector.shape_cast %46 : vector<16x16x4xbf16> to vector<256x4xbf16>
    %c4 = arith.constant 4 : index
    %c0_43 = arith.constant 0 : index
    %c0_44 = arith.constant 0 : index
    %48 = vector.load %arg3[%c4, %c0_43, %c0_44] : memref<9x4x128xbf16, #tpu.memory_space<vmem>>, vector<1x4x128xbf16>
    %49 = vector.shape_cast %48 : vector<1x4x128xbf16> to vector<4x128xbf16>
    %cst_45 = arith.constant dense<0.000000e+00> : vector<256x128xf32>
    %50 = tpu.matmul %47, %49, %cst_45 {dimension_numbers = #tpu.dot_dimension_numbers<[1], [0], [0], [1], [0, 0, 1, 1], [], []>} : vector<256x4xbf16>, vector<4x128xbf16>, vector<256x128xf32> -> vector<256x128xf32>
    %c0_46 = arith.constant 0 : index
    %c0_47 = arith.constant 0 : index
    %51 = vector.load %arg6[%c0_46, %c0_47] : memref<256x128xf32, #tpu.memory_space<vmem>>, vector<256x128xf32>
    %52 = arith.addf %51, %50 : vector<256x128xf32>
    %c0_48 = arith.constant 0 : index
    %c0_49 = arith.constant 0 : index
    %53 = vector.load %arg6[%c0_48, %c0_49] : memref<256x128xf32, #tpu.memory_space<vmem>>, vector<256x128xf32>
    tpu.vector_store %arg6[%c0_48, %c0_49], %52 {strides = array<i32>} : memref<256x128xf32, #tpu.memory_space<vmem>>, vector<256x128xf32>,
    %c1_i32_50 = arith.constant 1 : i32
    %54 = arith.addi %0, %c1_i32_50 : i32
    %c0_51 = arith.constant 0 : index
    %55 = arith.index_cast %54 : i32 to index
    %c2_52 = arith.constant 2 : index
    %c0_53 = arith.constant 0 : index
    %56 = vector.load %arg2[%c0_51, %55, %c2_52, %c0_53] : memref<1x18x18x4xbf16, #tpu.memory_space<vmem>>, vector<1x16x16x4xbf16>
    %57 = vector.shape_cast %56 : vector<1x16x16x4xbf16> to vector<16x16x4xbf16>
    %58 = vector.shape_cast %57 : vector<16x16x4xbf16> to vector<256x4xbf16>
    %c5 = arith.constant 5 : index
    %c0_54 = arith.constant 0 : index
    %c0_55 = arith.constant 0 : index
    %59 = vector.load %arg3[%c5, %c0_54, %c0_55] : memref<9x4x128xbf16, #tpu.memory_space<vmem>>, vector<1x4x128xbf16>
    %60 = vector.shape_cast %59 : vector<1x4x128xbf16> to vector<4x128xbf16>
    %cst_56 = arith.constant dense<0.000000e+00> : vector<256x128xf32>
    %61 = tpu.matmul %58, %60, %cst_56 {dimension_numbers = #tpu.dot_dimension_numbers<[1], [0], [0], [1], [0, 0, 1, 1], [], []>} : vector<256x4xbf16>, vector<4x128xbf16>, vector<256x128xf32> -> vector<256x128xf32>
    %c0_57 = arith.constant 0 : index
    %c0_58 = arith.constant 0 : index
    %62 = vector.load %arg6[%c0_57, %c0_58] : memref<256x128xf32, #tpu.memory_space<vmem>>, vector<256x128xf32>
    %63 = arith.addf %62, %61 : vector<256x128xf32>
    %c0_59 = arith.constant 0 : index
    %c0_60 = arith.constant 0 : index
    %64 = vector.load %arg6[%c0_59, %c0_60] : memref<256x128xf32, #tpu.memory_space<vmem>>, vector<256x128xf32>
    tpu.vector_store %arg6[%c0_59, %c0_60], %63 {strides = array<i32>} : memref<256x128xf32, #tpu.memory_space<vmem>>, vector<256x128xf32>,
    %c2_i32 = arith.constant 2 : i32
    %65 = arith.addi %0, %c2_i32 : i32
    %c0_61 = arith.constant 0 : index
    %66 = arith.index_cast %65 : i32 to index
    %c0_62 = arith.constant 0 : index
    %c0_63 = arith.constant 0 : index
    %67 = vector.load %arg2[%c0_61, %66, %c0_62, %c0_63] : memref<1x18x18x4xbf16, #tpu.memory_space<vmem>>, vector<1x16x16x4xbf16>
    %68 = vector.shape_cast %67 : vector<1x16x16x4xbf16> to vector<16x16x4xbf16>
    %69 = vector.shape_cast %68 : vector<16x16x4xbf16> to vector<256x4xbf16>
    %c6 = arith.constant 6 : index
    %c0_64 = arith.constant 0 : index
    %c0_65 = arith.constant 0 : index
    %70 = vector.load %arg3[%c6, %c0_64, %c0_65] : memref<9x4x128xbf16, #tpu.memory_space<vmem>>, vector<1x4x128xbf16>
    %71 = vector.shape_cast %70 : vector<1x4x128xbf16> to vector<4x128xbf16>
    %cst_66 = arith.constant dense<0.000000e+00> : vector<256x128xf32>
    %72 = tpu.matmul %69, %71, %cst_66 {dimension_numbers = #tpu.dot_dimension_numbers<[1], [0], [0], [1], [0, 0, 1, 1], [], []>} : vector<256x4xbf16>, vector<4x128xbf16>, vector<256x128xf32> -> vector<256x128xf32>
    %c0_67 = arith.constant 0 : index
    %c0_68 = arith.constant 0 : index
    %73 = vector.load %arg6[%c0_67, %c0_68] : memref<256x128xf32, #tpu.memory_space<vmem>>, vector<256x128xf32>
    %74 = arith.addf %73, %72 : vector<256x128xf32>
    %c0_69 = arith.constant 0 : index
    %c0_70 = arith.constant 0 : index
    %75 = vector.load %arg6[%c0_69, %c0_70] : memref<256x128xf32, #tpu.memory_space<vmem>>, vector<256x128xf32>
    tpu.vector_store %arg6[%c0_69, %c0_70], %74 {strides = array<i32>} : memref<256x128xf32, #tpu.memory_space<vmem>>, vector<256x128xf32>,
    %c2_i32_71 = arith.constant 2 : i32
    %76 = arith.addi %0, %c2_i32_71 : i32
    %c0_72 = arith.constant 0 : index
    %77 = arith.index_cast %76 : i32 to index
    %c1_73 = arith.constant 1 : index
    %c0_74 = arith.constant 0 : index
    %78 = vector.load %arg2[%c0_72, %77, %c1_73, %c0_74] : memref<1x18x18x4xbf16, #tpu.memory_space<vmem>>, vector<1x16x16x4xbf16>
    %79 = vector.shape_cast %78 : vector<1x16x16x4xbf16> to vector<16x16x4xbf16>
    %80 = vector.shape_cast %79 : vector<16x16x4xbf16> to vector<256x4xbf16>
    %c7 = arith.constant 7 : index
    %c0_75 = arith.constant 0 : index
    %c0_76 = arith.constant 0 : index
    %81 = vector.load %arg3[%c7, %c0_75, %c0_76] : memref<9x4x128xbf16, #tpu.memory_space<vmem>>, vector<1x4x128xbf16>
    %82 = vector.shape_cast %81 : vector<1x4x128xbf16> to vector<4x128xbf16>
    %cst_77 = arith.constant dense<0.000000e+00> : vector<256x128xf32>
    %83 = tpu.matmul %80, %82, %cst_77 {dimension_numbers = #tpu.dot_dimension_numbers<[1], [0], [0], [1], [0, 0, 1, 1], [], []>} : vector<256x4xbf16>, vector<4x128xbf16>, vector<256x128xf32> -> vector<256x128xf32>
    %c0_78 = arith.constant 0 : index
    %c0_79 = arith.constant 0 : index
    %84 = vector.load %arg6[%c0_78, %c0_79] : memref<256x128xf32, #tpu.memory_space<vmem>>, vector<256x128xf32>
    %85 = arith.addf %84, %83 : vector<256x128xf32>
    %c0_80 = arith.constant 0 : index
    %c0_81 = arith.constant 0 : index
    %86 = vector.load %arg6[%c0_80, %c0_81] : memref<256x128xf32, #tpu.memory_space<vmem>>, vector<256x128xf32>
    tpu.vector_store %arg6[%c0_80, %c0_81], %85 {strides = array<i32>} : memref<256x128xf32, #tpu.memory_space<vmem>>, vector<256x128xf32>,
    %c2_i32_82 = arith.constant 2 : i32
    %87 = arith.addi %0, %c2_i32_82 : i32
    %c0_83 = arith.constant 0 : index
    %88 = arith.index_cast %87 : i32 to index
    %c2_84 = arith.constant 2 : index
    %c0_85 = arith.constant 0 : index
    %89 = vector.load %arg2[%c0_83, %88, %c2_84, %c0_85] : memref<1x18x18x4xbf16, #tpu.memory_space<vmem>>, vector<1x16x16x4xbf16>
    %90 = vector.shape_cast %89 : vector<1x16x16x4xbf16> to vector<16x16x4xbf16>
    %91 = vector.shape_cast %90 : vector<16x16x4xbf16> to vector<256x4xbf16>
    %c8 = arith.constant 8 : index
    %c0_86 = arith.constant 0 : index
    %c0_87 = arith.constant 0 : index
    %92 = vector.load %arg3[%c8, %c0_86, %c0_87] : memref<9x4x128xbf16, #tpu.memory_space<vmem>>, vector<1x4x128xbf16>
    %93 = vector.shape_cast %92 : vector<1x4x128xbf16> to vector<4x128xbf16>
    %cst_88 = arith.constant dense<0.000000e+00> : vector<256x128xf32>
    %94 = tpu.matmul %91, %93, %cst_88 {dimension_numbers = #tpu.dot_dimension_numbers<[1], [0], [0], [1], [0, 0, 1, 1], [], []>} : vector<256x4xbf16>, vector<4x128xbf16>, vector<256x128xf32> -> vector<256x128xf32>
    %c0_89 = arith.constant 0 : index
    %c0_90 = arith.constant 0 : index
    %95 = vector.load %arg6[%c0_89, %c0_90] : memref<256x128xf32, #tpu.memory_space<vmem>>, vector<256x128xf32>
    %96 = arith.addf %95, %94 : vector<256x128xf32>
    %c0_91 = arith.constant 0 : index
    %c0_92 = arith.constant 0 : index
    %97 = vector.load %arg6[%c0_91, %c0_92] : memref<256x128xf32, #tpu.memory_space<vmem>>, vector<256x128xf32>
    tpu.vector_store %arg6[%c0_91, %c0_92], %96 {strides = array<i32>} : memref<256x128xf32, #tpu.memory_space<vmem>>, vector<256x128xf32>,
    %c0_93 = arith.constant 0 : index
    %c0_94 = arith.constant 0 : index
    %98 = vector.load %arg6[%c0_93, %c0_94] : memref<256x128xf32, #tpu.memory_space<vmem>>, vector<256x128xf32>
    %c0_95 = arith.constant 0 : index
    %c0_96 = arith.constant 0 : index
    %99 = vector.load %arg4[%c0_95, %c0_96] : memref<1x128xf32, #tpu.memory_space<vmem>>, vector<1x128xf32>
    %100 = vector.broadcast %99 : vector<1x128xf32> to vector<256x128xf32>
    %101 = arith.addf %98, %100 : vector<256x128xf32>
    %cst_97 = arith.constant 0.000000e+00 : f32
    %102 = vector.broadcast %cst_97 : f32 to vector<256x128xf32>
    %103 = arith.maximumf %101, %102 : vector<256x128xf32>
    %c0_98 = arith.constant 0 : index
    %c0_99 = arith.constant 0 : index
    %104 = vector.load %arg5[%c0_98, %c0_99] : memref<256x128xf32, #tpu.memory_space<vmem>>, vector<256x128xf32>
    tpu.vector_store %arg5[%c0_98, %c0_99], %103 {strides = array<i32>} : memref<256x128xf32, #tpu.memory_space<vmem>>, vector<256x128xf32>,
    return
  }
  func.func @transform_0(%arg0: i32, %arg1: i32) -> (i32, i32, i32, i32) {
    %c0_i32 = arith.constant 0 : i32
    %c0_i32_0 = arith.constant 0 : i32
    %c0_i32_1 = arith.constant 0 : i32
    %c0_i32_2 = arith.constant 0 : i32
    return %arg0, %c0_i32, %c0_i32_0, %c0_i32_1 : i32, i32, i32, i32
  }
  func.func @transform_1(%arg0: i32, %arg1: i32) -> (i32, i32, i32) {
    %c0_i32 = arith.constant 0 : i32
    %c0_i32_0 = arith.constant 0 : i32
    %c0_i32_1 = arith.constant 0 : i32
    %c0_i32_2 = arith.constant 0 : i32
    return %c0_i32, %c0_i32_0, %c0_i32_1 : i32, i32, i32
  }
  func.func @transform_2(%arg0: i32, %arg1: i32) -> (i32, i32) {
    %c0_i32 = arith.constant 0 : i32
    %c0_i32_0 = arith.constant 0 : i32
    %c0_i32_1 = arith.constant 0 : i32
    return %c0_i32, %c0_i32_0 : i32, i32
  }
  func.func @transform_3(%arg0: i32, %arg1: i32) -> (i32, i32) {
    %c1_i32 = arith.constant 1 : i32
    %0 = arith.muli %arg0, %c1_i32 : i32
    %1 = arith.addi %0, %arg1 : i32
    %c0_i32 = arith.constant 0 : i32
    %c0_i32_0 = arith.constant 0 : i32
    return %1, %c0_i32 : i32, i32
  }
}

</mosaic_0001>

<llo_original>
// kernel: basic_conv_forward.1
$region0: #{basic_conv_forward.1}
  #allocation0 [shape = 'u32[]', space=smem, size = 0x4, offset = 0x4, fixed_abs, tag = 'smem constant byte address 0x4 - core index']
  #allocation1 [shape = 'u32[144,128]{1,0:T(1,128)}', space=vmem, size = 0x12000, scoped, tag = 'internal scratch']
  #allocation2 [shape = 'f32[256,128]{1,0:T(8,128)}', space=vmem, size = 0x20000, scoped, tag = 'scratch operand']
  %s0 = inlined_call_operand.vmem [shape: bf16[2,18,18,4], index: 0, kind: input, shape index: {}]
  %s1 = inlined_call_operand.vmem [shape: bf16[9,4,128], index: 1, kind: input, shape index: {}]
  %s2 = inlined_call_operand.vmem [shape: f32[1,128], index: 2, kind: input, shape index: {}]
  %s3 = inlined_call_operand.vmem [shape: f32[512,128], index: 3, kind: output, shape index: {}]
  %s4 = sld [smem:[#allocation0]]
  $region45: #{basic_conv_forward.1} parent=0
    _
  %s6 = ssub.s32 1, %s4
  %s7 = scalar_select 0, %s6, %s4
  loop: start=0, step=1, limit=4
  $region2: #{basic_conv_forward.1} parent=0 // loop_pre_header
    _
  $region3: #{basic_conv_forward.1} parent=0 // loop_header
    %s9 = sphi 0, %s13
    %p10 = scmp.ge.s32.totalorder %s9, 4
    %s16 = sphi 0, %s28
    %s17 = sphi 0, %s24
    %s18 = sphi 0, %s16
    %s19 = sphi 0, %s17
    %s20 = sphi 0, %s18
    %s21 = sphi 0, %s19
    %s31 = sphi 0, %s33
    %s34 = sphi 0, %s31
    %s35 = sphi 0, %s34
    %s51 = sphi 0, %s35
    %s55 = sphi 0, %s55
    %s57 = sphi 0, %s55
    %s58 = sphi 0, %s57
    %s72 = sphi 0, %s58
    %s76 = sphi 0, %s76
    %s78 = sphi 0, %s76
    %s79 = sphi 0, %s78
    %s93 = sphi 0, %s79
    %s101 = sphi 0, %s103
    %s104 = sphi 0, %s101
    %s105 = sphi 0, %s104
    %s121 = sphi 0, %s105
  $region4: #{basic_conv_forward.1} parent=0 // loop_header_branch
    %12 = sbr.rel (%p10) target = $region8
  $region5: #{basic_conv_forward.1} parent=0 // loop_body
    %s14 = ssub.s32 %s9, 1
    %s15 = ssub.s32 %s9, 2
    %s22 = sadd.s32 1, %s17
    %p23 = scmp.ge.s32.totalorder %s22, 1
    %s24 = scalar_select %p23, 0, %s22
    %s25 = sadd.s32 1, %s16
    %s26 = scalar_select %p23, %s25, %s16
    %p27 = scmp.ge.s32.totalorder %s26, 2
    %s28 = scalar_select %p27, 0, %s26
    %s29 = ssub.s32 %s16, %s28
    %p30 = scmp.eq.s32.totalorder %s29, 0
    %s32 = sadd.s32 %s31, 1
    %s33 = scalar_select %p30, %s31, %s32
    %p36 = pneg %p30
    %p37 = scmp.eq.s32.totalorder %s9, 1
    %p38 = por %p36, %p37
    %p39 = scmp.ne.s32.totalorder %s31, %s34
    %p40 = scmp.eq.s32.totalorder %s9, 0
    %p41 = por %p39, %p40
    %p42 = scmp.ne.s32.totalorder %s31, %s34
    %p43 = scmp.eq.s32.totalorder %s14, 1
    %p44 = por %p42, %p43
    %p45 = scmp.ne.s32.totalorder %s34, %s35
    %p46 = scmp.eq.s32.totalorder %s14, 0
    %p47 = por %p45, %p46
    %p48 = scmp.ne.s32.totalorder %s34, %s35
    %p49 = scmp.eq.s32.totalorder %s15, 1
    %p50 = por %p48, %p49
    %p52 = scmp.ne.s32.totalorder %s35, %s51
    %p53 = scmp.eq.s32.totalorder %s15, 0
    %p54 = por %p52, %p53
    %s56 = sadd.s32 %s55, 1
    %p59 = scmp.eq.s32.totalorder %s9, 1
    %p60 = scmp.ne.s32.totalorder %s55, %s57
    %p61 = scmp.eq.s32.totalorder %s9, 0
    %p62 = por %p60, %p61
    %p63 = scmp.ne.s32.totalorder %s55, %s57
    %p64 = scmp.eq.s32.totalorder %s14, 1
    %p65 = por %p63, %p64
    %p66 = scmp.ne.s32.totalorder %s57, %s58
    %p67 = scmp.eq.s32.totalorder %s14, 0
    %p68 = por %p66, %p67
    %p69 = scmp.ne.s32.totalorder %s57, %s58
    %p70 = scmp.eq.s32.totalorder %s15, 1
    %p71 = por %p69, %p70
    %p73 = scmp.ne.s32.totalorder %s58, %s72
    %p74 = scmp.eq.s32.totalorder %s15, 0
    %p75 = por %p73, %p74
    %s77 = sadd.s32 %s76, 1
    %p80 = scmp.eq.s32.totalorder %s9, 1
    %p81 = scmp.ne.s32.totalorder %s76, %s78
    %p82 = scmp.eq.s32.totalorder %s9, 0
    %p83 = por %p81, %p82
    %p84 = scmp.ne.s32.totalorder %s76, %s78
    %p85 = scmp.eq.s32.totalorder %s14, 1
    %p86 = por %p84, %p85
    %p87 = scmp.ne.s32.totalorder %s78, %s79
    %p88 = scmp.eq.s32.totalorder %s14, 0
    %p89 = por %p87, %p88
    %p90 = scmp.ne.s32.totalorder %s78, %s79
    %p91 = scmp.eq.s32.totalorder %s15, 1
    %p92 = por %p90, %p91
    %p94 = scmp.ne.s32.totalorder %s79, %s93
    %p95 = scmp.eq.s32.totalorder %s15, 0
    %p96 = por %p94, %p95
    %s97 = sadd.s32 %s16, %s17
    %s98 = sadd.s32 %s28, %s24
    %s99 = ssub.s32 %s97, %s98
    %p100 = scmp.eq.s32.totalorder %s99, 0
    %s102 = sadd.s32 %s101, 1
    %s103 = scalar_select %p100, %s101, %s102
    %p106 = pneg %p100
    %p107 = scmp.eq.s32.totalorder %s9, 1
    %p108 = por %p106, %p107
    %p109 = scmp.ne.s32.totalorder %s101, %s104
    %p110 = scmp.eq.s32.totalorder %s9, 0
    %p111 = por %p109, %p110
    %p112 = scmp.ne.s32.totalorder %s101, %s104
    %p113 = scmp.eq.s32.totalorder %s14, 1
    %p114 = por %p112, %p113
    %p115 = scmp.ne.s32.totalorder %s104, %s105
    %p116 = scmp.eq.s32.totalorder %s14, 0
    %p117 = por %p115, %p116
    %p118 = scmp.ne.s32.totalorder %s104, %s105
    %p119 = scmp.eq.s32.totalorder %s15, 1
    %p120 = por %p118, %p119
    %p122 = scmp.ne.s32.totalorder %s105, %s121
    %p123 = scmp.eq.s32.totalorder %s15, 0
    %p124 = por %p122, %p123
    %p125 = scmp.le.s32.totalorder 1, %s9
    %p126 = scmp.lt.s32.totalorder %s9, 3
    %p127 = pnand %p125, %p126
    %p128 = pneg %p127
    // Predicated region
    $region9: #{basic_conv_forward.1} parent=5 // pred_check
      _
    $region10: #{basic_conv_forward.1} parent=5 // pred_check_branch
      %130 = sbr.rel (%p127) target = $region12
    $region11: #{basic_conv_forward.1} parent=5 // pred_region
      %s131 = ssub.s32 %s9, 1
      // Predicated region
      $region13: #{basic_conv_forward.1} parent=11 // pred_check
        %p132 = pneg %p68
      $region14: #{basic_conv_forward.1} parent=11 // pred_check_branch
        %134 = sbr.rel (%p132) target = $region16
      $region15: #{basic_conv_forward.1} parent=11 // pred_region
        _
      $region16: #{basic_conv_forward.1} parent=11 // pred_fallthru
        _
      // Predicated region
      $region17: #{basic_conv_forward.1} parent=11 // pred_check
        %p135 = pneg %p89
      $region18: #{basic_conv_forward.1} parent=11 // pred_check_branch
        %137 = sbr.rel (%p135) target = $region20
      $region19: #{basic_conv_forward.1} parent=11 // pred_region
        _
      $region20: #{basic_conv_forward.1} parent=11 // pred_fallthru
        _
    $region12: #{basic_conv_forward.1} parent=5 // pred_fallthru
      _
    %p138 = scmp.lt.s32.totalorder %s9, 2
    // Predicated region
    $region21: #{basic_conv_forward.1} parent=5 // pred_check
      %p139 = pneg %p138
    $region22: #{basic_conv_forward.1} parent=5 // pred_check_branch
      %141 = sbr.rel (%p139) target = $region24
    $region23: #{basic_conv_forward.1} parent=5 // pred_region
      // Predicated region
      $region25: #{basic_conv_forward.1} parent=23 // pred_check
        %p142 = pneg %p41
      $region26: #{basic_conv_forward.1} parent=23 // pred_check_branch
        %144 = sbr.rel (%p142) target = $region28
      $region27: #{basic_conv_forward.1} parent=23 // pred_region
        %p145 = scmp.lt.s32.totalorder %s16, 1
        %s146 = scalar_select %p145, %s16, 1
        %s147 = smul.addr %s146, 54
        %s148 = smul.addr %s147, 4
        %s149 = scalar_lea.vmem %s0, %s148
      $region28: #{basic_conv_forward.1} parent=23 // pred_fallthru
        _
    $region24: #{basic_conv_forward.1} parent=5 // pred_fallthru
      _
    %p150 = scmp.le.s32.totalorder 1, %s9
    %p151 = scmp.lt.s32.totalorder %s9, 3
    %p152 = pnand %p150, %p151
    %p153 = pneg %p152
    // Predicated region
    $region29: #{basic_conv_forward.1} parent=5 // pred_check
      _
    $region30: #{basic_conv_forward.1} parent=5 // pred_check_branch
      %155 = sbr.rel (%p152) target = $region32
    $region31: #{basic_conv_forward.1} parent=5 // pred_region
      %s156 = ssub.s32 %s9, 1
      %p157 = scmp.lt.s32.totalorder %s18, 1
      %s158 = scalar_select %p157, %s18, 1
      %s159 = smul.addr %s158, 54
      %s160 = smul.addr %s159, 4
      %s161 = scalar_lea.vmem %s0, %s160
      %p162 = pneg %p47
      %p163 = pneg %p44
      %p164 = pneg %p68
      %p165 = pneg %p65
      %p166 = pneg %p89
      %p167 = pneg %p86
      %p168 = pneg %p117
      %p169 = pneg %p114
      %s170 = sadd.s32 %s18, %s19
      %s171 = smul.u32 32, %s170
      %p172 = scmp.lt.s32.totalorder %s171, 63
      %s173 = scalar_select %p172, %s171, 63
      %s174 = smul.addr %s173, 8
      %s175 = scalar_lea.vmem %s3, %s174
      %p176 = scmp.lt.s32.totalorder %s18, 1
      %s177 = scalar_select %p176, %s18, 1
      %s178 = smul.addr %s177, 54
      %s179 = smul.addr %s178, 4
      %s180 = scalar_lea.vmem %s0, %s179
      %s181 = sadd.s32 %s18, %s19
      %s182 = smul.u32 32, %s181
      %p183 = scmp.lt.s32.totalorder %s182, 63
      %s184 = scalar_select %p183, %s182, 63
      %s185 = smul.addr %s184, 8
      %s186 = scalar_lea.vmem %s3, %s185
      %s187 = sadd.s32 %s18, %s19
      %s188 = smul.u32 32, %s187
      %s190 = smul.u32 %s19, 16
      %s191 = smul.u32 %s190, 3
      %s192 = smul.addr %s191, 4
      %s193 = scalar_lea.vmem %s180, %s192
      %v194 = vld [vmem:[%s193] sm:$0xf]
      %v195 = vld [vmem:[%s193 + $0x4] sm:$0xf]
      %v196 = vld [vmem:[%s193 + $0xc] sm:$0xf]
      %v197 = vld [vmem:[%s193 + $0x10] sm:$0xf]
      %v198 = vld [vmem:[%s193 + $0x18] sm:$0xf]
      %v199 = vld [vmem:[%s193 + $0x1c] sm:$0xf]
      %v200 = vld [vmem:[%s193 + $0x24] sm:$0xf]
      %v201 = vld [vmem:[%s193 + $0x28] sm:$0xf]
      %v202 = vld [vmem:[%s193 + $0x30] sm:$0xf]
      %v203 = vld [vmem:[%s193 + $0x34] sm:$0xf]
      %v204 = vld [vmem:[%s193 + $0x3c] sm:$0xf]
      %v205 = vld [vmem:[%s193 + $0x40] sm:$0xf]
      %v206 = vld [vmem:[%s193 + $0x48] sm:$0xf]
      %v207 = vld [vmem:[%s193 + $0x4c] sm:$0xf]
      %v208 = vld [vmem:[%s193 + $0x54] sm:$0xf]
      %v209 = vld [vmem:[%s193 + $0x58] sm:$0xf]
      %v210 = vld [vmem:[%s193 + $0x60] sm:$0xf]
      %v211 = vld [vmem:[%s193 + $0x64] sm:$0xf]
      %v212 = vld [vmem:[%s193 + $0x6c] sm:$0xf]
      %v213 = vld [vmem:[%s193 + $0x70] sm:$0xf]
      %v214 = vld [vmem:[%s193 + $0x78] sm:$0xf]
      %v215 = vld [vmem:[%s193 + $0x7c] sm:$0xf]
      %v216 = vld [vmem:[%s193 + $0x84] sm:$0xf]
      %v217 = vld [vmem:[%s193 + $0x88] sm:$0xf]
      %v218 = vld [vmem:[%s193 + $0x90] sm:$0xf]
      %v219 = vld [vmem:[%s193 + $0x94] sm:$0xf]
      %v220 = vld [vmem:[%s193 + $0x9c] sm:$0xf]
      %v221 = vld [vmem:[%s193 + $0xa0] sm:$0xf]
      %v222 = vld [vmem:[%s193 + $0xa8] sm:$0xf]
      %v223 = vld [vmem:[%s193 + $0xac] sm:$0xf]
      %v224 = vld [vmem:[%s193 + $0xb4] sm:$0xf]
      %v225 = vld [vmem:[%s193 + $0xb8] sm:$0xf]
      %v226 = vld [vmem:[%s1] sm:$0x3]
      %v259 = vunpack.c.l.b16 %v194
      %v260 = vunpack.c.l.b16 %v195
      %v261 = vunpack.c.l.b16 %v196
      %v262 = vunpack.c.l.b16 %v197
      %v263 = vunpack.c.l.b16 %v198
      %v264 = vunpack.c.l.b16 %v199
      %v265 = vunpack.c.l.b16 %v200
      %v266 = vunpack.c.l.b16 %v201
      %v267 = vunpack.c.l.b16 %v202
      %v268 = vunpack.c.l.b16 %v203
      %v269 = vunpack.c.l.b16 %v204
      %v270 = vunpack.c.l.b16 %v205
      %v271 = vunpack.c.l.b16 %v206
      %v272 = vunpack.c.l.b16 %v207
      %v273 = vunpack.c.l.b16 %v208
      %v274 = vunpack.c.l.b16 %v209
      %v275 = vunpack.c.l.b16 %v210
      %v276 = vunpack.c.l.b16 %v211
      %v277 = vunpack.c.l.b16 %v212
      %v278 = vunpack.c.l.b16 %v213
      %v279 = vunpack.c.l.b16 %v214
      %v280 = vunpack.c.l.b16 %v215
      %v281 = vunpack.c.l.b16 %v216
      %v282 = vunpack.c.l.b16 %v217
      %v283 = vunpack.c.l.b16 %v218
      %v284 = vunpack.c.l.b16 %v219
      %v285 = vunpack.c.l.b16 %v220
      %v286 = vunpack.c.l.b16 %v221
      %v287 = vunpack.c.l.b16 %v222
      %v288 = vunpack.c.l.b16 %v223
      %v289 = vunpack.c.l.b16 %v224
      %v290 = vunpack.c.l.b16 %v225
      %v291 = vpack.c.b16 %v260, %v259
      %v292 = vpack.c.b16 %v262, %v261
      %v293 = vpack.c.b16 %v264, %v263
      %v294 = vpack.c.b16 %v266, %v265
      %v295 = vpack.c.b16 %v268, %v267
      %v296 = vpack.c.b16 %v270, %v269
      %v297 = vpack.c.b16 %v272, %v271
      %v298 = vpack.c.b16 %v274, %v273
      %v299 = vpack.c.b16 %v276, %v275
      %v300 = vpack.c.b16 %v278, %v277
      %v301 = vpack.c.b16 %v280, %v279
      %v302 = vpack.c.b16 %v282, %v281
      %v303 = vpack.c.b16 %v284, %v283
      %v304 = vpack.c.b16 %v286, %v285
      %v305 = vpack.c.b16 %v288, %v287
      %v306 = vpack.c.b16 %v290, %v289
      %vm307 = vcmask 31744
      %v309 = vsel %vm307, %v291, 0
      %v312 = vsel %vm307, %v292, 0
      %v315 = vsel %vm307, %v293, 0
      %v318 = vsel %vm307, %v294, 0
      %v321 = vsel %vm307, %v295, 0
      %v324 = vsel %vm307, %v296, 0
      %v327 = vsel %vm307, %v297, 0
      %v330 = vsel %vm307, %v298, 0
      %v333 = vsel %vm307, %v299, 0
      %v336 = vsel %vm307, %v300, 0
      %v339 = vsel %vm307, %v301, 0
      %v342 = vsel %vm307, %v302, 0
      %v345 = vsel %vm307, %v303, 0
      %v348 = vsel %vm307, %v304, 0
      %v351 = vsel %vm307, %v305, 0
      %v354 = vsel %vm307, %v306, 0
      %vm356 = vcmask 1041408
      %v358 = vsel %vm356, %v226, 0
      %360 = vmatprep.subr.bf16.mxu0 0
      %361 = vmatpush1.bf16.msra.mxu0 0
      %362 = vmatprep.subr.bf16.mxu0 0
      %363 = vmatpush1.bf16.msra.mxu0 0
      %364 = vmatprep.subr.bf16.mxu0 0
      %365 = vmatpush1.bf16.msra.mxu0 0
      %366 = vmatprep.subr.bf16.mxu0 0
      %367 = vmatpush1.bf16.msra.mxu0 0
      %368 = vmatprep.subr.bf16.mxu0 0
      %369 = vmatpush1.bf16.msra.mxu0 0
      %370 = vmatprep.subr.bf16.mxu0 0
      %371 = vmatpush1.bf16.msra.mxu0 0
      %372 = vmatprep.subr.bf16.mxu0 0
      %373 = vmatpush1.bf16.msra.mxu0 0
      %374 = vmatprep.subr.bf16.mxu0 0
      %375 = vmatpush1.bf16.msra.mxu0 %v358
      %376 = vmatprep.subr.bf16.mxu0 0
      %377 = vmatpush2.bf16.msra.mxu0 0
      %378 = vmatprep.subr.bf16.mxu0 0
      %379 = vmatpush2.bf16.msra.mxu0 0
      %380 = vmatprep.subr.bf16.mxu0 0
      %381 = vmatpush2.bf16.msra.mxu0 0
      %382 = vmatprep.subr.bf16.mxu0 0
      %383 = vmatpush2.bf16.msra.mxu0 0
      %384 = vmatprep.subr.bf16.mxu0 0
      %385 = vmatpush2.bf16.msra.mxu0 0
      %386 = vmatprep.subr.bf16.mxu0 0
      %387 = vmatpush2.bf16.msra.mxu0 0
      %388 = vmatprep.subr.bf16.mxu0 0
      %389 = vmatpush2.bf16.msra.mxu0 0
      %390 = vmatprep.subr.bf16.mxu0 0
      %391 = vmatpush2.bf16.msra.mxu0 0
      %392 = vmatprep.mubr.bf16.mxu0 0
      %393 = vmatmul.mubr.bf16.gmra.mxu0 %v309
      %v394 = vpop.f32.mrf.mxu0
      %v395 = vadd.f32 0.0, %v394
      %v396 = vpop.f32.mrf.mxu0
      %v397 = vpop.f32.mrf.mxu0
      %v398 = vadd.f32 0.0, %v397
      %v399 = vpop.f32.mrf.mxu0
      %400 = vmatprep.mubr.bf16.mxu0 0
      %401 = vmatmul.mubr.bf16.gmra.mxu0 %v312
      %v402 = vpop.f32.mrf.mxu0
      %v403 = vadd.f32 0.0, %v402
      %v404 = vpop.f32.mrf.mxu0
      %v405 = vpop.f32.mrf.mxu0
      %v406 = vadd.f32 0.0, %v405
      %v407 = vpop.f32.mrf.mxu0
      %408 = vmatprep.mubr.bf16.mxu0 0
      %409 = vmatmul.mubr.bf16.gmra.mxu0 %v315
      %v410 = vpop.f32.mrf.mxu0
      %v411 = vadd.f32 0.0, %v410
      %v412 = vpop.f32.mrf.mxu0
      %v413 = vpop.f32.mrf.mxu0
      %v414 = vadd.f32 0.0, %v413
      %v415 = vpop.f32.mrf.mxu0
      %416 = vmatprep.mubr.bf16.mxu0 0
      %417 = vmatmul.mubr.bf16.gmra.mxu0 %v318
      %v418 = vpop.f32.mrf.mxu0
      %v419 = vadd.f32 0.0, %v418
      %v420 = vpop.f32.mrf.mxu0
      %v421 = vpop.f32.mrf.mxu0
      %v422 = vadd.f32 0.0, %v421
      %v423 = vpop.f32.mrf.mxu0
      %424 = vmatprep.mubr.bf16.mxu0 0
      %425 = vmatmul.mubr.bf16.gmra.mxu0 %v321
      %v426 = vpop.f32.mrf.mxu0
      %v427 = vadd.f32 0.0, %v426
      %v428 = vpop.f32.mrf.mxu0
      %v429 = vpop.f32.mrf.mxu0
      %v430 = vadd.f32 0.0, %v429
      %v431 = vpop.f32.mrf.mxu0
      %432 = vmatprep.mubr.bf16.mxu0 0
      %433 = vmatmul.mubr.bf16.gmra.mxu0 %v324
      %v434 = vpop.f32.mrf.mxu0
      %v435 = vadd.f32 0.0, %v434
      %v436 = vpop.f32.mrf.mxu0
      %v437 = vpop.f32.mrf.mxu0
      %v438 = vadd.f32 0.0, %v437
      %v439 = vpop.f32.mrf.mxu0
      %440 = vmatprep.mubr.bf16.mxu0 0
      %441 = vmatmul.mubr.bf16.gmra.mxu0 %v327
      %v442 = vpop.f32.mrf.mxu0
      %v443 = vadd.f32 0.0, %v442
      %v444 = vpop.f32.mrf.mxu0
      %v445 = vpop.f32.mrf.mxu0
      %v446 = vadd.f32 0.0, %v445
      %v447 = vpop.f32.mrf.mxu0
      %448 = vmatprep.mubr.bf16.mxu0 0
      %449 = vmatmul.mubr.bf16.gmra.mxu0 %v330
      %v450 = vpop.f32.mrf.mxu0
      %v451 = vadd.f32 0.0, %v450
      %v452 = vpop.f32.mrf.mxu0
      %v453 = vpop.f32.mrf.mxu0
      %v454 = vadd.f32 0.0, %v453
      %v455 = vpop.f32.mrf.mxu0
      %456 = vmatprep.mubr.bf16.mxu0 0
      %457 = vmatmul.mubr.bf16.gmra.mxu0 %v333
      %v458 = vpop.f32.mrf.mxu0
      %v459 = vadd.f32 0.0, %v458
      %v460 = vpop.f32.mrf.mxu0
      %v461 = vpop.f32.mrf.mxu0
      %v462 = vadd.f32 0.0, %v461
      %v463 = vpop.f32.mrf.mxu0
      %464 = vmatprep.mubr.bf16.mxu0 0
      %465 = vmatmul.mubr.bf16.gmra.mxu0 %v336
      %v466 = vpop.f32.mrf.mxu0
      %v467 = vadd.f32 0.0, %v466
      %v468 = vpop.f32.mrf.mxu0
      %v469 = vpop.f32.mrf.mxu0
      %v470 = vadd.f32 0.0, %v469
      %v471 = vpop.f32.mrf.mxu0
      %472 = vmatprep.mubr.bf16.mxu0 0
      %473 = vmatmul.mubr.bf16.gmra.mxu0 %v339
      %v474 = vpop.f32.mrf.mxu0
      %v475 = vadd.f32 0.0, %v474
      %v476 = vpop.f32.mrf.mxu0
      %v477 = vpop.f32.mrf.mxu0
      %v478 = vadd.f32 0.0, %v477
      %v479 = vpop.f32.mrf.mxu0
      %480 = vmatprep.mubr.bf16.mxu0 0
      %481 = vmatmul.mubr.bf16.gmra.mxu0 %v342
      %v482 = vpop.f32.mrf.mxu0
      %v483 = vadd.f32 0.0, %v482
      %v484 = vpop.f32.mrf.mxu0
      %v485 = vpop.f32.mrf.mxu0
      %v486 = vadd.f32 0.0, %v485
      %v487 = vpop.f32.mrf.mxu0
      %488 = vmatprep.mubr.bf16.mxu0 0
      %489 = vmatmul.mubr.bf16.gmra.mxu0 %v345
      %v490 = vpop.f32.mrf.mxu0
      %v491 = vadd.f32 0.0, %v490
      %v492 = vpop.f32.mrf.mxu0
      %v493 = vpop.f32.mrf.mxu0
      %v494 = vadd.f32 0.0, %v493
      %v495 = vpop.f32.mrf.mxu0
      %496 = vmatprep.mubr.bf16.mxu0 0
      %497 = vmatmul.mubr.bf16.gmra.mxu0 %v348
      %v498 = vpop.f32.mrf.mxu0
      %v499 = vadd.f32 0.0, %v498
      %v500 = vpop.f32.mrf.mxu0
      %v501 = vpop.f32.mrf.mxu0
      %v502 = vadd.f32 0.0, %v501
      %v503 = vpop.f32.mrf.mxu0
      %504 = vmatprep.mubr.bf16.mxu0 0
      %505 = vmatmul.mubr.bf16.gmra.mxu0 %v351
      %v506 = vpop.f32.mrf.mxu0
      %v507 = vadd.f32 0.0, %v506
      %v508 = vpop.f32.mrf.mxu0
      %v509 = vpop.f32.mrf.mxu0
      %v510 = vadd.f32 0.0, %v509
      %v511 = vpop.f32.mrf.mxu0
      %512 = vmatprep.mubr.bf16.mxu0 0
      %513 = vmatmul.mubr.bf16.gmra.mxu0 %v354
      %v514 = vpop.f32.mrf.mxu0
      %v515 = vadd.f32 0.0, %v514
      %v516 = vpop.f32.mrf.mxu0
      %v517 = vpop.f32.mrf.mxu0
      %v518 = vadd.f32 0.0, %v517
      %v519 = vpop.f32.mrf.mxu0
      %520 = vdwg.mxu0
      %521 = vst [vmem:[#allocation2] sm:$0xff] %v395
      %522 = vst [vmem:[#allocation2 + $0x8] sm:$0xff] %v398
      %523 = vst [vmem:[#allocation2 + $0x10] sm:$0xff] %v403
      %524 = vst [vmem:[#allocation2 + $0x18] sm:$0xff] %v406
      %525 = vst [vmem:[#allocation2 + $0x20] sm:$0xff] %v411
      %526 = vst [vmem:[#allocation2 + $0x28] sm:$0xff] %v414
      %527 = vst [vmem:[#allocation2 + $0x30] sm:$0xff] %v419
      %528 = vst [vmem:[#allocation2 + $0x38] sm:$0xff] %v422
      %529 = vst [vmem:[#allocation2 + $0x40] sm:$0xff] %v427
      %530 = vst [vmem:[#allocation2 + $0x48] sm:$0xff] %v430
      %531 = vst [vmem:[#allocation2 + $0x50] sm:$0xff] %v435
      %532 = vst [vmem:[#allocation2 + $0x58] sm:$0xff] %v438
      %533 = vst [vmem:[#allocation2 + $0x60] sm:$0xff] %v443
      %534 = vst [vmem:[#allocation2 + $0x68] sm:$0xff] %v446
      %535 = vst [vmem:[#allocation2 + $0x70] sm:$0xff] %v451
      %536 = vst [vmem:[#allocation2 + $0x78] sm:$0xff] %v454
      %537 = vst [vmem:[#allocation2 + $0x80] sm:$0xff] %v459
      %538 = vst [vmem:[#allocation2 + $0x88] sm:$0xff] %v462
      %539 = vst [vmem:[#allocation2 + $0x90] sm:$0xff] %v467
      %540 = vst [vmem:[#allocation2 + $0x98] sm:$0xff] %v470
      %541 = vst [vmem:[#allocation2 + $0xa0] sm:$0xff] %v475
      %542 = vst [vmem:[#allocation2 + $0xa8] sm:$0xff] %v478
      %543 = vst [vmem:[#allocation2 + $0xb0] sm:$0xff] %v483
      %544 = vst [vmem:[#allocation2 + $0xb8] sm:$0xff] %v486
      %545 = vst [vmem:[#allocation2 + $0xc0] sm:$0xff] %v491
      %546 = vst [vmem:[#allocation2 + $0xc8] sm:$0xff] %v494
      %547 = vst [vmem:[#allocation2 + $0xd0] sm:$0xff] %v499
      %548 = vst [vmem:[#allocation2 + $0xd8] sm:$0xff] %v502
      %549 = vst [vmem:[#allocation2 + $0xe0] sm:$0xff] %v507
      %550 = vst [vmem:[#allocation2 + $0xe8] sm:$0xff] %v510
      %551 = vst [vmem:[#allocation2 + $0xf0] sm:$0xff] %v515
      %552 = vst [vmem:[#allocation2 + $0xf8] sm:$0xff] %v518
      %v553 = vld [vmem:[%s193] sm:$0xf]
      %v554 = vld [vmem:[%s193 + $0x4] sm:$0xf]
      %v555 = vld [vmem:[%s193 + $0x8] sm:$0x1]
      %v556 = vld [vmem:[%s193 + $0xc] sm:$0xf]
      %v557 = vld [vmem:[%s193 + $0x10] sm:$0xf]
      %v558 = vld [vmem:[%s193 + $0x14] sm:$0x1]
      %v559 = vld [vmem:[%s193 + $0x18] sm:$0xf]
      %v560 = vld [vmem:[%s193 + $0x1c] sm:$0xf]
      %v561 = vld [vmem:[%s193 + $0x20] sm:$0x1]
      %v562 = vld [vmem:[%s193 + $0x24] sm:$0xf]
      %v563 = vld [vmem:[%s193 + $0x28] sm:$0xf]
      %v564 = vld [vmem:[%s193 + $0x2c] sm:$0x1]
      %v565 = vld [vmem:[%s193 + $0x30] sm:$0xf]
      %v566 = vld [vmem:[%s193 + $0x34] sm:$0xf]
      %v567 = vld [vmem:[%s193 + $0x38] sm:$0x1]
      %v568 = vld [vmem:[%s193 + $0x3c] sm:$0xf]
      %v569 = vld [vmem:[%s193 + $0x40] sm:$0xf]
      %v570 = vld [vmem:[%s193 + $0x44] sm:$0x1]
      %v571 = vld [vmem:[%s193 + $0x48] sm:$0xf]
      %v572 = vld [vmem:[%s193 + $0x4c] sm:$0xf]
      %v573 = vld [vmem:[%s193 + $0x50] sm:$0x1]
      %v574 = vld [vmem:[%s193 + $0x54] sm:$0xf]
      %v575 = vld [vmem:[%s193 + $0x58] sm:$0xf]
      %v576 = vld [vmem:[%s193 + $0x5c] sm:$0x1]
      %v577 = vld [vmem:[%s193 + $0x60] sm:$0xf]
      %v578 = vld [vmem:[%s193 + $0x64] sm:$0xf]
      %v579 = vld [vmem:[%s193 + $0x68] sm:$0x1]
      %v580 = vld [vmem:[%s193 + $0x6c] sm:$0xf]
      %v581 = vld [vmem:[%s193 + $0x70] sm:$0xf]
      %v582 = vld [vmem:[%s193 + $0x74] sm:$0x1]
      %v583 = vld [vmem:[%s193 + $0x78] sm:$0xf]
      %v584 = vld [vmem:[%s193 + $0x7c] sm:$0xf]
      %v585 = vld [vmem:[%s193 + $0x80] sm:$0x1]
      %v586 = vld [vmem:[%s193 + $0x84] sm:$0xf]
      %v587 = vld [vmem:[%s193 + $0x88] sm:$0xf]
      %v588 = vld [vmem:[%s193 + $0x8c] sm:$0x1]
      %v589 = vld [vmem:[%s193 + $0x90] sm:$0xf]
      %v590 = vld [vmem:[%s193 + $0x94] sm:$0xf]
      %v591 = vld [vmem:[%s193 + $0x98] sm:$0x1]
      %v592 = vld [vmem:[%s193 + $0x9c] sm:$0xf]
      %v593 = vld [vmem:[%s193 + $0xa0] sm:$0xf]
      %v594 = vld [vmem:[%s193 + $0xa4] sm:$0x1]
      %v595 = vld [vmem:[%s193 + $0xa8] sm:$0xf]
      %v596 = vld [vmem:[%s193 + $0xac] sm:$0xf]
      %v597 = vld [vmem:[%s193 + $0xb0] sm:$0x1]
      %v598 = vld [vmem:[%s193 + $0xb4] sm:$0xf]
      %v599 = vld [vmem:[%s193 + $0xb8] sm:$0xf]
      %v600 = vld [vmem:[%s193 + $0xbc] sm:$0x1]
      %vm601 = vsmask.f32 3328
      %vm602 = vsmask.f32 7440
      %vm603 = vmor %vm601, %vm602
      %v605 = vshrl.u32 %v553, 16
      %v607 = vrot.slane %v605, 4
      %v608 = vshll.u32 %v553, 16
      %v610 = vrot.slane %v608, 5
      %v611 = vor.u32 %v607, %v610
      %v612 = vrot.slane %v611, 4
      %v614 = vshll.u32 %v554, 16
      %v616 = vrot.slane %v614, 5
      %v617 = vsel %vm603, %v612, %v616
      %v618 = vshrl.u32 %v554, 16
      %v620 = vrot.slane %v618, 4
      %v621 = vor.u32 %v620, %v616
      %v622 = vrot.slane %v621, 4
      %v624 = vshll.u32 %v555, 16
      %v626 = vrot.slane %v624, 5
      %v627 = vsel %vm603, %v622, %v626
      %v629 = vshrl.u32 %v556, 16
      %v631 = vrot.slane %v629, 4
      %v632 = vshll.u32 %v556, 16
      %v634 = vrot.slane %v632, 5
      %v635 = vor.u32 %v631, %v634
      %v636 = vrot.slane %v635, 4
      %v638 = vshll.u32 %v557, 16
      %v640 = vrot.slane %v638, 5
      %v641 = vsel %vm603, %v636, %v640
      %v642 = vshrl.u32 %v557, 16
      %v644 = vrot.slane %v642, 4
      %v645 = vor.u32 %v644, %v640
      %v646 = vrot.slane %v645, 4
      %v648 = vshll.u32 %v558, 16
      %v650 = vrot.slane %v648, 5
      %v651 = vsel %vm603, %v646, %v650
      %v653 = vshrl.u32 %v559, 16
      %v655 = vrot.slane %v653, 4
      %v656 = vshll.u32 %v559, 16
      %v658 = vrot.slane %v656, 5
      %v659 = vor.u32 %v655, %v658
      %v660 = vrot.slane %v659, 4
      %v662 = vshll.u32 %v560, 16
      %v664 = vrot.slane %v662, 5
      %v665 = vsel %vm603, %v660, %v664
      %v666 = vshrl.u32 %v560, 16
      %v668 = vrot.slane %v666, 4
      %v669 = vor.u32 %v668, %v664
      %v670 = vrot.slane %v669, 4
      %v672 = vshll.u32 %v561, 16
      %v674 = vrot.slane %v672, 5
      %v675 = vsel %vm603, %v670, %v674
      %v677 = vshrl.u32 %v562, 16
      %v679 = vrot.slane %v677, 4
      %v680 = vshll.u32 %v562, 16
      %v682 = vrot.slane %v680, 5
      %v683 = vor.u32 %v679, %v682
      %v684 = vrot.slane %v683, 4
      %v686 = vshll.u32 %v563, 16
      %v688 = vrot.slane %v686, 5
      %v689 = vsel %vm603, %v684, %v688
      %v690 = vshrl.u32 %v563, 16
      %v692 = vrot.slane %v690, 4
      %v693 = vor.u32 %v692, %v688
      %v694 = vrot.slane %v693, 4
      %v696 = vshll.u32 %v564, 16
      %v698 = vrot.slane %v696, 5
      %v699 = vsel %vm603, %v694, %v698
      %v701 = vshrl.u32 %v565, 16
      %v703 = vrot.slane %v701, 4
      %v704 = vshll.u32 %v565, 16
      %v706 = vrot.slane %v704, 5
      %v707 = vor.u32 %v703, %v706
      %v708 = vrot.slane %v707, 4
      %v710 = vshll.u32 %v566, 16
      %v712 = vrot.slane %v710, 5
      %v713 = vsel %vm603, %v708, %v712
      %v714 = vshrl.u32 %v566, 16
      %v716 = vrot.slane %v714, 4
      %v717 = vor.u32 %v716, %v712
      %v718 = vrot.slane %v717, 4
      %v720 = vshll.u32 %v567, 16
      %v722 = vrot.slane %v720, 5
      %v723 = vsel %vm603, %v718, %v722
      %v725 = vshrl.u32 %v568, 16
      %v727 = vrot.slane %v725, 4
      %v728 = vshll.u32 %v568, 16
      %v730 = vrot.slane %v728, 5
      %v731 = vor.u32 %v727, %v730
      %v732 = vrot.slane %v731, 4
      %v734 = vshll.u32 %v569, 16
      %v736 = vrot.slane %v734, 5
      %v737 = vsel %vm603, %v732, %v736
      %v738 = vshrl.u32 %v569, 16
      %v740 = vrot.slane %v738, 4
      %v741 = vor.u32 %v740, %v736
      %v742 = vrot.slane %v741, 4
      %v744 = vshll.u32 %v570, 16
      %v746 = vrot.slane %v744, 5
      %v747 = vsel %vm603, %v742, %v746
      %v749 = vshrl.u32 %v571, 16
      %v751 = vrot.slane %v749, 4
      %v752 = vshll.u32 %v571, 16
      %v754 = vrot.slane %v752, 5
      %v755 = vor.u32 %v751, %v754
      %v756 = vrot.slane %v755, 4
      %v758 = vshll.u32 %v572, 16
      %v760 = vrot.slane %v758, 5
      %v761 = vsel %vm603, %v756, %v760
      %v762 = vshrl.u32 %v572, 16
      %v764 = vrot.slane %v762, 4
      %v765 = vor.u32 %v764, %v760
      %v766 = vrot.slane %v765, 4
      %v768 = vshll.u32 %v573, 16
      %v770 = vrot.slane %v768, 5
      %v771 = vsel %vm603, %v766, %v770
      %v773 = vshrl.u32 %v574, 16
      %v775 = vrot.slane %v773, 4
      %v776 = vshll.u32 %v574, 16
      %v778 = vrot.slane %v776, 5
      %v779 = vor.u32 %v775, %v778
      %v780 = vrot.slane %v779, 4
      %v782 = vshll.u32 %v575, 16
      %v784 = vrot.slane %v782, 5
      %v785 = vsel %vm603, %v780, %v784
      %v786 = vshrl.u32 %v575, 16
      %v788 = vrot.slane %v786, 4
      %v789 = vor.u32 %v788, %v784
      %v790 = vrot.slane %v789, 4
      %v792 = vshll.u32 %v576, 16
      %v794 = vrot.slane %v792, 5
      %v795 = vsel %vm603, %v790, %v794
      %v797 = vshrl.u32 %v577, 16
      %v799 = vrot.slane %v797, 4
      %v800 = vshll.u32 %v577, 16
      %v802 = vrot.slane %v800, 5
      %v803 = vor.u32 %v799, %v802
      %v804 = vrot.slane %v803, 4
      %v806 = vshll.u32 %v578, 16
      %v808 = vrot.slane %v806, 5
      %v809 = vsel %vm603, %v804, %v808
      %v810 = vshrl.u32 %v578, 16
      %v812 = vrot.slane %v810, 4
      %v813 = vor.u32 %v812, %v808
      %v814 = vrot.slane %v813, 4
      %v816 = vshll.u32 %v579, 16
      %v818 = vrot.slane %v816, 5
      %v819 = vsel %vm603, %v814, %v818
      %v821 = vshrl.u32 %v580, 16
      %v823 = vrot.slane %v821, 4
      %v824 = vshll.u32 %v580, 16
      %v826 = vrot.slane %v824, 5
      %v827 = vor.u32 %v823, %v826
      %v828 = vrot.slane %v827, 4
      %v830 = vshll.u32 %v581, 16
      %v832 = vrot.slane %v830, 5
      %v833 = vsel %vm603, %v828, %v832
      %v834 = vshrl.u32 %v581, 16
      %v836 = vrot.slane %v834, 4
      %v837 = vor.u32 %v836, %v832
      %v838 = vrot.slane %v837, 4
      %v840 = vshll.u32 %v582, 16
      %v842 = vrot.slane %v840, 5
      %v843 = vsel %vm603, %v838, %v842
      %v845 = vshrl.u32 %v583, 16
      %v847 = vrot.slane %v845, 4
      %v848 = vshll.u32 %v583, 16
      %v850 = vrot.slane %v848, 5
      %v851 = vor.u32 %v847, %v850
      %v852 = vrot.slane %v851, 4
      %v854 = vshll.u32 %v584, 16
      %v856 = vrot.slane %v854, 5
      %v857 = vsel %vm603, %v852, %v856
      %v858 = vshrl.u32 %v584, 16
      %v860 = vrot.slane %v858, 4
      %v861 = vor.u32 %v860, %v856
      %v862 = vrot.slane %v861, 4
      %v864 = vshll.u32 %v585, 16
      %v866 = vrot.slane %v864, 5
      %v867 = vsel %vm603, %v862, %v866
      %v869 = vshrl.u32 %v586, 16
      %v871 = vrot.slane %v869, 4
      %v872 = vshll.u32 %v586, 16
      %v874 = vrot.slane %v872, 5
      %v875 = vor.u32 %v871, %v874
      %v876 = vrot.slane %v875, 4
      %v878 = vshll.u32 %v587, 16
      %v880 = vrot.slane %v878, 5
      %v881 = vsel %vm603, %v876, %v880
      %v882 = vshrl.u32 %v587, 16
      %v884 = vrot.slane %v882, 4
      %v885 = vor.u32 %v884, %v880
      %v886 = vrot.slane %v885, 4
      %v888 = vshll.u32 %v588, 16
      %v890 = vrot.slane %v888, 5
      %v891 = vsel %vm603, %v886, %v890
      %v893 = vshrl.u32 %v589, 16
      %v895 = vrot.slane %v893, 4
      %v896 = vshll.u32 %v589, 16
      %v898 = vrot.slane %v896, 5
      %v899 = vor.u32 %v895, %v898
      %v900 = vrot.slane %v899, 4
      %v902 = vshll.u32 %v590, 16
      %v904 = vrot.slane %v902, 5
      %v905 = vsel %vm603, %v900, %v904
      %v906 = vshrl.u32 %v590, 16
      %v908 = vrot.slane %v906, 4
      %v909 = vor.u32 %v908, %v904
      %v910 = vrot.slane %v909, 4
      %v912 = vshll.u32 %v591, 16
      %v914 = vrot.slane %v912, 5
      %v915 = vsel %vm603, %v910, %v914
      %v917 = vshrl.u32 %v592, 16
      %v919 = vrot.slane %v917, 4
      %v920 = vshll.u32 %v592, 16
      %v922 = vrot.slane %v920, 5
      %v923 = vor.u32 %v919, %v922
      %v924 = vrot.slane %v923, 4
      %v926 = vshll.u32 %v593, 16
      %v928 = vrot.slane %v926, 5
      %v929 = vsel %vm603, %v924, %v928
      %v930 = vshrl.u32 %v593, 16
      %v932 = vrot.slane %v930, 4
      %v933 = vor.u32 %v932, %v928
      %v934 = vrot.slane %v933, 4
      %v936 = vshll.u32 %v594, 16
      %v938 = vrot.slane %v936, 5
      %v939 = vsel %vm603, %v934, %v938
      %v941 = vshrl.u32 %v595, 16
      %v943 = vrot.slane %v941, 4
      %v944 = vshll.u32 %v595, 16
      %v946 = vrot.slane %v944, 5
      %v947 = vor.u32 %v943, %v946
      %v948 = vrot.slane %v947, 4
      %v950 = vshll.u32 %v596, 16
      %v952 = vrot.slane %v950, 5
      %v953 = vsel %vm603, %v948, %v952
      %v954 = vshrl.u32 %v596, 16
      %v956 = vrot.slane %v954, 4
      %v957 = vor.u32 %v956, %v952
      %v958 = vrot.slane %v957, 4
      %v960 = vshll.u32 %v597, 16
      %v962 = vrot.slane %v960, 5
      %v963 = vsel %vm603, %v958, %v962
      %v965 = vshrl.u32 %v598, 16
      %v967 = vrot.slane %v965, 4
      %v968 = vshll.u32 %v598, 16
      %v970 = vrot.slane %v968, 5
      %v971 = vor.u32 %v967, %v970
      %v972 = vrot.slane %v971, 4
      %v974 = vshll.u32 %v599, 16
      %v976 = vrot.slane %v974, 5
      %v977 = vsel %vm603, %v972, %v976
      %v978 = vshrl.u32 %v599, 16
      %v980 = vrot.slane %v978, 4
      %v981 = vor.u32 %v980, %v976
      %v982 = vrot.slane %v981, 4
      %v984 = vshll.u32 %v600, 16
      %v986 = vrot.slane %v984, 5
      %v987 = vsel %vm603, %v982, %v986
      %s988 = scalar_lea.vmem %s1, 2
      %v989 = vld [vmem:[%s988] sm:$0x3]
      %v990 = vunpack.c.l.b16 %v617
      %v991 = vunpack.c.l.b16 %v627
      %v992 = vunpack.c.l.b16 %v641
      %v993 = vunpack.c.l.b16 %v651
      %v994 = vunpack.c.l.b16 %v665
      %v995 = vunpack.c.l.b16 %v675
      %v996 = vunpack.c.l.b16 %v689
      %v997 = vunpack.c.l.b16 %v699
      %v998 = vunpack.c.l.b16 %v713
      %v999 = vunpack.c.l.b16 %v723
      %v1000 = vunpack.c.l.b16 %v737
      %v1001 = vunpack.c.l.b16 %v747
      %v1002 = vunpack.c.l.b16 %v761
      %v1003 = vunpack.c.l.b16 %v771
      %v1004 = vunpack.c.l.b16 %v785
      %v1005 = vunpack.c.l.b16 %v795
      %v1006 = vunpack.c.l.b16 %v809
      %v1007 = vunpack.c.l.b16 %v819
      %v1008 = vunpack.c.l.b16 %v833
      %v1009 = vunpack.c.l.b16 %v843
      %v1010 = vunpack.c.l.b16 %v857
      %v1011 = vunpack.c.l.b16 %v867
      %v1012 = vunpack.c.l.b16 %v881
      %v1013 = vunpack.c.l.b16 %v891
      %v1014 = vunpack.c.l.b16 %v905
      %v1015 = vunpack.c.l.b16 %v915
      %v1016 = vunpack.c.l.b16 %v929
      %v1017 = vunpack.c.l.b16 %v939
      %v1018 = vunpack.c.l.b16 %v953
      %v1019 = vunpack.c.l.b16 %v963
      %v1020 = vunpack.c.l.b16 %v977
      %v1021 = vunpack.c.l.b16 %v987
      %v1022 = vpack.c.b16 %v991, %v990
      %v1023 = vpack.c.b16 %v993, %v992
      %v1024 = vpack.c.b16 %v995, %v994
      %v1025 = vpack.c.b16 %v997, %v996
      %v1026 = vpack.c.b16 %v999, %v998
      %v1027 = vpack.c.b16 %v1001, %v1000
      %v1028 = vpack.c.b16 %v1003, %v1002
      %v1029 = vpack.c.b16 %v1005, %v1004
      %v1030 = vpack.c.b16 %v1007, %v1006
      %v1031 = vpack.c.b16 %v1009, %v1008
      %v1032 = vpack.c.b16 %v1011, %v1010
      %v1033 = vpack.c.b16 %v1013, %v1012
      %v1034 = vpack.c.b16 %v1015, %v1014
      %v1035 = vpack.c.b16 %v1017, %v1016
      %v1036 = vpack.c.b16 %v1019, %v1018
      %v1037 = vpack.c.b16 %v1021, %v1020
      %v1039 = vsel %vm307, %v1022, 0
      %v1042 = vsel %vm307, %v1023, 0
      %v1045 = vsel %vm307, %v1024, 0
      %v1048 = vsel %vm307, %v1025, 0
      %v1051 = vsel %vm307, %v1026, 0
      %v1054 = vsel %vm307, %v1027, 0
      %v1057 = vsel %vm307, %v1028, 0
      %v1060 = vsel %vm307, %v1029, 0
      %v1063 = vsel %vm307, %v1030, 0
      %v1066 = vsel %vm307, %v1031, 0
      %v1069 = vsel %vm307, %v1032, 0
      %v1072 = vsel %vm307, %v1033, 0
      %v1075 = vsel %vm307, %v1034, 0
      %v1078 = vsel %vm307, %v1035, 0
      %v1081 = vsel %vm307, %v1036, 0
      %v1084 = vsel %vm307, %v1037, 0
      %v1087 = vsel %vm356, %v989, 0
      %1089 = vmatprep.subr.bf16.mxu0 0
      %1090 = vmatpush1.bf16.msra.mxu0 0
      %1091 = vmatprep.subr.bf16.mxu0 0
      %1092 = vmatpush1.bf16.msra.mxu0 0
      %1093 = vmatprep.subr.bf16.mxu0 0
      %1094 = vmatpush1.bf16.msra.mxu0 0
      %1095 = vmatprep.subr.bf16.mxu0 0
      %1096 = vmatpush1.bf16.msra.mxu0 0
      %1097 = vmatprep.subr.bf16.mxu0 0
      %1098 = vmatpush1.bf16.msra.mxu0 0
      %1099 = vmatprep.subr.bf16.mxu0 0
      %1100 = vmatpush1.bf16.msra.mxu0 0
      %1101 = vmatprep.subr.bf16.mxu0 0
      %1102 = vmatpush1.bf16.msra.mxu0 0
      %1103 = vmatprep.subr.bf16.mxu0 0
      %1104 = vmatpush1.bf16.msra.mxu0 %v1087
      %1105 = vmatprep.subr.bf16.mxu0 0
      %1106 = vmatpush2.bf16.msra.mxu0 0
      %1107 = vmatprep.subr.bf16.mxu0 0
      %1108 = vmatpush2.bf16.msra.mxu0 0
      %1109 = vmatprep.subr.bf16.mxu0 0
      %1110 = vmatpush2.bf16.msra.mxu0 0
      %1111 = vmatprep.subr.bf16.mxu0 0
      %1112 = vmatpush2.bf16.msra.mxu0 0
      %1113 = vmatprep.subr.bf16.mxu0 0
      %1114 = vmatpush2.bf16.msra.mxu0 0
      %1115 = vmatprep.subr.bf16.mxu0 0
      %1116 = vmatpush2.bf16.msra.mxu0 0
      %1117 = vmatprep.subr.bf16.mxu0 0
      %1118 = vmatpush2.bf16.msra.mxu0 0
      %1119 = vmatprep.subr.bf16.mxu0 0
      %1120 = vmatpush2.bf16.msra.mxu0 0
      %1121 = vmatprep.mubr.bf16.mxu0 0
      %1122 = vmatmul.mubr.bf16.gmra.mxu0 %v1039
      %v1123 = vpop.f32.mrf.mxu0
      %v1124 = vadd.f32 0.0, %v1123
      %v1125 = vpop.f32.mrf.mxu0
      %v1126 = vpop.f32.mrf.mxu0
      %v1127 = vadd.f32 0.0, %v1126
      %v1128 = vpop.f32.mrf.mxu0
      %1129 = vmatprep.mubr.bf16.mxu0 0
      %1130 = vmatmul.mubr.bf16.gmra.mxu0 %v1042
      %v1131 = vpop.f32.mrf.mxu0
      %v1132 = vadd.f32 0.0, %v1131
      %v1133 = vpop.f32.mrf.mxu0
      %v1134 = vpop.f32.mrf.mxu0
      %v1135 = vadd.f32 0.0, %v1134
      %v1136 = vpop.f32.mrf.mxu0
      %1137 = vmatprep.mubr.bf16.mxu0 0
      %1138 = vmatmul.mubr.bf16.gmra.mxu0 %v1045
      %v1139 = vpop.f32.mrf.mxu0
      %v1140 = vadd.f32 0.0, %v1139
      %v1141 = vpop.f32.mrf.mxu0
      %v1142 = vpop.f32.mrf.mxu0
      %v1143 = vadd.f32 0.0, %v1142
      %v1144 = vpop.f32.mrf.mxu0
      %1145 = vmatprep.mubr.bf16.mxu0 0
      %1146 = vmatmul.mubr.bf16.gmra.mxu0 %v1048
      %v1147 = vpop.f32.mrf.mxu0
      %v1148 = vadd.f32 0.0, %v1147
      %v1149 = vpop.f32.mrf.mxu0
      %v1150 = vpop.f32.mrf.mxu0
      %v1151 = vadd.f32 0.0, %v1150
      %v1152 = vpop.f32.mrf.mxu0
      %1153 = vmatprep.mubr.bf16.mxu0 0
      %1154 = vmatmul.mubr.bf16.gmra.mxu0 %v1051
      %v1155 = vpop.f32.mrf.mxu0
      %v1156 = vadd.f32 0.0, %v1155
      %v1157 = vpop.f32.mrf.mxu0
      %v1158 = vpop.f32.mrf.mxu0
      %v1159 = vadd.f32 0.0, %v1158
      %v1160 = vpop.f32.mrf.mxu0
      %1161 = vmatprep.mubr.bf16.mxu0 0
      %1162 = vmatmul.mubr.bf16.gmra.mxu0 %v1054
      %v1163 = vpop.f32.mrf.mxu0
      %v1164 = vadd.f32 0.0, %v1163
      %v1165 = vpop.f32.mrf.mxu0
      %v1166 = vpop.f32.mrf.mxu0
      %v1167 = vadd.f32 0.0, %v1166
      %v1168 = vpop.f32.mrf.mxu0
      %1169 = vmatprep.mubr.bf16.mxu0 0
      %1170 = vmatmul.mubr.bf16.gmra.mxu0 %v1057
      %v1171 = vpop.f32.mrf.mxu0
      %v1172 = vadd.f32 0.0, %v1171
      %v1173 = vpop.f32.mrf.mxu0
      %v1174 = vpop.f32.mrf.mxu0
      %v1175 = vadd.f32 0.0, %v1174
      %v1176 = vpop.f32.mrf.mxu0
      %1177 = vmatprep.mubr.bf16.mxu0 0
      %1178 = vmatmul.mubr.bf16.gmra.mxu0 %v1060
      %v1179 = vpop.f32.mrf.mxu0
      %v1180 = vadd.f32 0.0, %v1179
      %v1181 = vpop.f32.mrf.mxu0
      %v1182 = vpop.f32.mrf.mxu0
      %v1183 = vadd.f32 0.0, %v1182
      %v1184 = vpop.f32.mrf.mxu0
      %1185 = vmatprep.mubr.bf16.mxu0 0
      %1186 = vmatmul.mubr.bf16.gmra.mxu0 %v1063
      %v1187 = vpop.f32.mrf.mxu0
      %v1188 = vadd.f32 0.0, %v1187
      %v1189 = vpop.f32.mrf.mxu0
      %v1190 = vpop.f32.mrf.mxu0
      %v1191 = vadd.f32 0.0, %v1190
      %v1192 = vpop.f32.mrf.mxu0
      %1193 = vmatprep.mubr.bf16.mxu0 0
      %1194 = vmatmul.mubr.bf16.gmra.mxu0 %v1066
      %v1195 = vpop.f32.mrf.mxu0
      %v1196 = vadd.f32 0.0, %v1195
      %v1197 = vpop.f32.mrf.mxu0
      %v1198 = vpop.f32.mrf.mxu0
      %v1199 = vadd.f32 0.0, %v1198
      %v1200 = vpop.f32.mrf.mxu0
      %1201 = vmatprep.mubr.bf16.mxu0 0
      %1202 = vmatmul.mubr.bf16.gmra.mxu0 %v1069
      %v1203 = vpop.f32.mrf.mxu0
      %v1204 = vadd.f32 0.0, %v1203
      %v1205 = vpop.f32.mrf.mxu0
      %v1206 = vpop.f32.mrf.mxu0
      %v1207 = vadd.f32 0.0, %v1206
      %v1208 = vpop.f32.mrf.mxu0
      %1209 = vmatprep.mubr.bf16.mxu0 0
      %1210 = vmatmul.mubr.bf16.gmra.mxu0 %v1072
      %v1211 = vpop.f32.mrf.mxu0
      %v1212 = vadd.f32 0.0, %v1211
      %v1213 = vpop.f32.mrf.mxu0
      %v1214 = vpop.f32.mrf.mxu0
      %v1215 = vadd.f32 0.0, %v1214
      %v1216 = vpop.f32.mrf.mxu0
      %1217 = vmatprep.mubr.bf16.mxu0 0
      %1218 = vmatmul.mubr.bf16.gmra.mxu0 %v1075
      %v1219 = vpop.f32.mrf.mxu0
      %v1220 = vadd.f32 0.0, %v1219
      %v1221 = vpop.f32.mrf.mxu0
      %v1222 = vpop.f32.mrf.mxu0
      %v1223 = vadd.f32 0.0, %v1222
      %v1224 = vpop.f32.mrf.mxu0
      %1225 = vmatprep.mubr.bf16.mxu0 0
      %1226 = vmatmul.mubr.bf16.gmra.mxu0 %v1078
      %v1227 = vpop.f32.mrf.mxu0
      %v1228 = vadd.f32 0.0, %v1227
      %v1229 = vpop.f32.mrf.mxu0
      %v1230 = vpop.f32.mrf.mxu0
      %v1231 = vadd.f32 0.0, %v1230
      %v1232 = vpop.f32.mrf.mxu0
      %1233 = vmatprep.mubr.bf16.mxu0 0
      %1234 = vmatmul.mubr.bf16.gmra.mxu0 %v1081
      %v1235 = vpop.f32.mrf.mxu0
      %v1236 = vadd.f32 0.0, %v1235
      %v1237 = vpop.f32.mrf.mxu0
      %v1238 = vpop.f32.mrf.mxu0
      %v1239 = vadd.f32 0.0, %v1238
      %v1240 = vpop.f32.mrf.mxu0
      %1241 = vmatprep.mubr.bf16.mxu0 0
      %1242 = vmatmul.mubr.bf16.gmra.mxu0 %v1084
      %v1243 = vpop.f32.mrf.mxu0
      %v1244 = vadd.f32 0.0, %v1243
      %v1245 = vpop.f32.mrf.mxu0
      %v1246 = vpop.f32.mrf.mxu0
      %v1247 = vadd.f32 0.0, %v1246
      %v1248 = vpop.f32.mrf.mxu0
      %1249 = vdwg.mxu0
      %v1250 = vld [vmem:[#allocation2] sm:$0xff]
      %v1251 = vld [vmem:[#allocation2 + $0x8] sm:$0xff]
      %v1252 = vld [vmem:[#allocation2 + $0x10] sm:$0xff]
      %v1253 = vld [vmem:[#allocation2 + $0x18] sm:$0xff]
      %v1254 = vld [vmem:[#allocation2 + $0x20] sm:$0xff]
      %v1255 = vld [vmem:[#allocation2 + $0x28] sm:$0xff]
      %v1256 = vld [vmem:[#allocation2 + $0x30] sm:$0xff]
      %v1257 = vld [vmem:[#allocation2 + $0x38] sm:$0xff]
      %v1258 = vld [vmem:[#allocation2 + $0x40] sm:$0xff]
      %v1259 = vld [vmem:[#allocation2 + $0x48] sm:$0xff]
      %v1260 = vld [vmem:[#allocation2 + $0x50] sm:$0xff]
      %v1261 = vld [vmem:[#allocation2 + $0x58] sm:$0xff]
      %v1262 = vld [vmem:[#allocation2 + $0x60] sm:$0xff]
      %v1263 = vld [vmem:[#allocation2 + $0x68] sm:$0xff]
      %v1264 = vld [vmem:[#allocation2 + $0x70] sm:$0xff]
      %v1265 = vld [vmem:[#allocation2 + $0x78] sm:$0xff]
      %v1266 = vld [vmem:[#allocation2 + $0x80] sm:$0xff]
      %v1267 = vld [vmem:[#allocation2 + $0x88] sm:$0xff]
      %v1268 = vld [vmem:[#allocation2 + $0x90] sm:$0xff]
      %v1269 = vld [vmem:[#allocation2 + $0x98] sm:$0xff]
      %v1270 = vld [vmem:[#allocation2 + $0xa0] sm:$0xff]
      %v1271 = vld [vmem:[#allocation2 + $0xa8] sm:$0xff]
      %v1272 = vld [vmem:[#allocation2 + $0xb0] sm:$0xff]
      %v1273 = vld [vmem:[#allocation2 + $0xb8] sm:$0xff]
      %v1274 = vld [vmem:[#allocation2 + $0xc0] sm:$0xff]
      %v1275 = vld [vmem:[#allocation2 + $0xc8] sm:$0xff]
      %v1276 = vld [vmem:[#allocation2 + $0xd0] sm:$0xff]
      %v1277 = vld [vmem:[#allocation2 + $0xd8] sm:$0xff]
      %v1278 = vld [vmem:[#allocation2 + $0xe0] sm:$0xff]
      %v1279 = vld [vmem:[#allocation2 + $0xe8] sm:$0xff]
      %v1280 = vld [vmem:[#allocation2 + $0xf0] sm:$0xff]
      %v1281 = vld [vmem:[#allocation2 + $0xf8] sm:$0xff]
      %v1282 = vadd.f32 %v1250, %v1124
      %v1283 = vadd.f32 %v1251, %v1127
      %v1284 = vadd.f32 %v1252, %v1132
      %v1285 = vadd.f32 %v1253, %v1135
      %v1286 = vadd.f32 %v1254, %v1140
      %v1287 = vadd.f32 %v1255, %v1143
      %v1288 = vadd.f32 %v1256, %v1148
      %v1289 = vadd.f32 %v1257, %v1151
      %v1290 = vadd.f32 %v1258, %v1156
      %v1291 = vadd.f32 %v1259, %v1159
      %v1292 = vadd.f32 %v1260, %v1164
      %v1293 = vadd.f32 %v1261, %v1167
      %v1294 = vadd.f32 %v1262, %v1172
      %v1295 = vadd.f32 %v1263, %v1175
      %v1296 = vadd.f32 %v1264, %v1180
      %v1297 = vadd.f32 %v1265, %v1183
      %v1298 = vadd.f32 %v1266, %v1188
      %v1299 = vadd.f32 %v1267, %v1191
      %v1300 = vadd.f32 %v1268, %v1196
      %v1301 = vadd.f32 %v1269, %v1199
      %v1302 = vadd.f32 %v1270, %v1204
      %v1303 = vadd.f32 %v1271, %v1207
      %v1304 = vadd.f32 %v1272, %v1212
      %v1305 = vadd.f32 %v1273, %v1215
      %v1306 = vadd.f32 %v1274, %v1220
      %v1307 = vadd.f32 %v1275, %v1223
      %v1308 = vadd.f32 %v1276, %v1228
      %v1309 = vadd.f32 %v1277, %v1231
      %v1310 = vadd.f32 %v1278, %v1236
      %v1311 = vadd.f32 %v1279, %v1239
      %v1312 = vadd.f32 %v1280, %v1244
      %v1313 = vadd.f32 %v1281, %v1247
      %1314 = vst [vmem:[#allocation2] sm:$0xff] %v1282
      %1315 = vst [vmem:[#allocation2 + $0x8] sm:$0xff] %v1283
      %1316 = vst [vmem:[#allocation2 + $0x10] sm:$0xff] %v1284
      %1317 = vst [vmem:[#allocation2 + $0x18] sm:$0xff] %v1285
      %1318 = vst [vmem:[#allocation2 + $0x20] sm:$0xff] %v1286
      %1319 = vst [vmem:[#allocation2 + $0x28] sm:$0xff] %v1287
      %1320 = vst [vmem:[#allocation2 + $0x30] sm:$0xff] %v1288
      %1321 = vst [vmem:[#allocation2 + $0x38] sm:$0xff] %v1289
      %1322 = vst [vmem:[#allocation2 + $0x40] sm:$0xff] %v1290
      %1323 = vst [vmem:[#allocation2 + $0x48] sm:$0xff] %v1291
      %1324 = vst [vmem:[#allocation2 + $0x50] sm:$0xff] %v1292
      %1325 = vst [vmem:[#allocation2 + $0x58] sm:$0xff] %v1293
      %1326 = vst [vmem:[#allocation2 + $0x60] sm:$0xff] %v1294
      %1327 = vst [vmem:[#allocation2 + $0x68] sm:$0xff] %v1295
      %1328 = vst [vmem:[#allocation2 + $0x70] sm:$0xff] %v1296
      %1329 = vst [vmem:[#allocation2 + $0x78] sm:$0xff] %v1297
      %1330 = vst [vmem:[#allocation2 + $0x80] sm:$0xff] %v1298
      %1331 = vst [vmem:[#allocation2 + $0x88] sm:$0xff] %v1299
      %1332 = vst [vmem:[#allocation2 + $0x90] sm:$0xff] %v1300
      %1333 = vst [vmem:[#allocation2 + $0x98] sm:$0xff] %v1301
      %1334 = vst [vmem:[#allocation2 + $0xa0] sm:$0xff] %v1302
      %1335 = vst [vmem:[#allocation2 + $0xa8] sm:$0xff] %v1303
      %1336 = vst [vmem:[#allocation2 + $0xb0] sm:$0xff] %v1304
      %1337 = vst [vmem:[#allocation2 + $0xb8] sm:$0xff] %v1305
      %1338 = vst [vmem:[#allocation2 + $0xc0] sm:$0xff] %v1306
      %1339 = vst [vmem:[#allocation2 + $0xc8] sm:$0xff] %v1307
      %1340 = vst [vmem:[#allocation2 + $0xd0] sm:$0xff] %v1308
      %1341 = vst [vmem:[#allocation2 + $0xd8] sm:$0xff] %v1309
      %1342 = vst [vmem:[#allocation2 + $0xe0] sm:$0xff] %v1310
      %1343 = vst [vmem:[#allocation2 + $0xe8] sm:$0xff] %v1311
      %1344 = vst [vmem:[#allocation2 + $0xf0] sm:$0xff] %v1312
      %1345 = vst [vmem:[#allocation2 + $0xf8] sm:$0xff] %v1313
      %v1346 = vld [vmem:[%s193] sm:$0xe]
      %v1347 = vld [vmem:[%s193 + $0x4] sm:$0xf]
      %v1348 = vld [vmem:[%s193 + $0x8] sm:$0x1]
      %v1349 = vld [vmem:[%s193 + $0xc] sm:$0xe]
      %v1350 = vld [vmem:[%s193 + $0x10] sm:$0xf]
      %v1351 = vld [vmem:[%s193 + $0x14] sm:$0x1]
      %v1352 = vld [vmem:[%s193 + $0x18] sm:$0xe]
      %v1353 = vld [vmem:[%s193 + $0x1c] sm:$0xf]
      %v1354 = vld [vmem:[%s193 + $0x20] sm:$0x1]
      %v1355 = vld [vmem:[%s193 + $0x24] sm:$0xe]
      %v1356 = vld [vmem:[%s193 + $0x28] sm:$0xf]
      %v1357 = vld [vmem:[%s193 + $0x2c] sm:$0x1]
      %v1358 = vld [vmem:[%s193 + $0x30] sm:$0xe]
      %v1359 = vld [vmem:[%s193 + $0x34] sm:$0xf]
      %v1360 = vld [vmem:[%s193 + $0x38] sm:$0x1]
      %v1361 = vld [vmem:[%s193 + $0x3c] sm:$0xe]
      %v1362 = vld [vmem:[%s193 + $0x40] sm:$0xf]
      %v1363 = vld [vmem:[%s193 + $0x44] sm:$0x1]
      %v1364 = vld [vmem:[%s193 + $0x48] sm:$0xe]
      %v1365 = vld [vmem:[%s193 + $0x4c] sm:$0xf]
      %v1366 = vld [vmem:[%s193 + $0x50] sm:$0x1]
      %v1367 = vld [vmem:[%s193 + $0x54] sm:$0xe]
      %v1368 = vld [vmem:[%s193 + $0x58] sm:$0xf]
      %v1369 = vld [vmem:[%s193 + $0x5c] sm:$0x1]
      %v1370 = vld [vmem:[%s193 + $0x60] sm:$0xe]
      %v1371 = vld [vmem:[%s193 + $0x64] sm:$0xf]
      %v1372 = vld [vmem:[%s193 + $0x68] sm:$0x1]
      %v1373 = vld [vmem:[%s193 + $0x6c] sm:$0xe]
      %v1374 = vld [vmem:[%s193 + $0x70] sm:$0xf]
      %v1375 = vld [vmem:[%s193 + $0x74] sm:$0x1]
      %v1376 = vld [vmem:[%s193 + $0x78] sm:$0xe]
      %v1377 = vld [vmem:[%s193 + $0x7c] sm:$0xf]
      %v1378 = vld [vmem:[%s193 + $0x80] sm:$0x1]
      %v1379 = vld [vmem:[%s193 + $0x84] sm:$0xe]
      %v1380 = vld [vmem:[%s193 + $0x88] sm:$0xf]
      %v1381 = vld [vmem:[%s193 + $0x8c] sm:$0x1]
      %v1382 = vld [vmem:[%s193 + $0x90] sm:$0xe]
      %v1383 = vld [vmem:[%s193 + $0x94] sm:$0xf]
      %v1384 = vld [vmem:[%s193 + $0x98] sm:$0x1]
      %v1385 = vld [vmem:[%s193 + $0x9c] sm:$0xe]
      %v1386 = vld [vmem:[%s193 + $0xa0] sm:$0xf]
      %v1387 = vld [vmem:[%s193 + $0xa4] sm:$0x1]
      %v1388 = vld [vmem:[%s193 + $0xa8] sm:$0xe]
      %v1389 = vld [vmem:[%s193 + $0xac] sm:$0xf]
      %v1390 = vld [vmem:[%s193 + $0xb0] sm:$0x1]
      %v1391 = vld [vmem:[%s193 + $0xb4] sm:$0xe]
      %v1392 = vld [vmem:[%s193 + $0xb8] sm:$0xf]
      %v1393 = vld [vmem:[%s193 + $0xbc] sm:$0x1]
      %vm1442 = vcmask 1042432
      %vm1443 = vcmask 1046532
      %vm1444 = vmor %vm1442, %vm1443
      %v1445 = vrot.slane %v1346, 5
      %v1446 = vrot.slane %v1445, 4
      %v1447 = vrot.slane %v1347, 5
      %v1448 = vsel %vm1444, %v1446, %v1447
      %v1449 = vrot.slane %v1447, 4
      %v1450 = vrot.slane %v1348, 5
      %v1451 = vsel %vm1444, %v1449, %v1450
      %v1452 = vrot.slane %v1349, 5
      %v1453 = vrot.slane %v1452, 4
      %v1454 = vrot.slane %v1350, 5
      %v1455 = vsel %vm1444, %v1453, %v1454
      %v1456 = vrot.slane %v1454, 4
      %v1457 = vrot.slane %v1351, 5
      %v1458 = vsel %vm1444, %v1456, %v1457
      %v1459 = vrot.slane %v1352, 5
      %v1460 = vrot.slane %v1459, 4
      %v1461 = vrot.slane %v1353, 5
      %v1462 = vsel %vm1444, %v1460, %v1461
      %v1463 = vrot.slane %v1461, 4
      %v1464 = vrot.slane %v1354, 5
      %v1465 = vsel %vm1444, %v1463, %v1464
      %v1466 = vrot.slane %v1355, 5
      %v1467 = vrot.slane %v1466, 4
      %v1468 = vrot.slane %v1356, 5
      %v1469 = vsel %vm1444, %v1467, %v1468
      %v1470 = vrot.slane %v1468, 4
      %v1471 = vrot.slane %v1357, 5
      %v1472 = vsel %vm1444, %v1470, %v1471
      %v1473 = vrot.slane %v1358, 5
      %v1474 = vrot.slane %v1473, 4
      %v1475 = vrot.slane %v1359, 5
      %v1476 = vsel %vm1444, %v1474, %v1475
      %v1477 = vrot.slane %v1475, 4
      %v1478 = vrot.slane %v1360, 5
      %v1479 = vsel %vm1444, %v1477, %v1478
      %v1480 = vrot.slane %v1361, 5
      %v1481 = vrot.slane %v1480, 4
      %v1482 = vrot.slane %v1362, 5
      %v1483 = vsel %vm1444, %v1481, %v1482
      %v1484 = vrot.slane %v1482, 4
      %v1485 = vrot.slane %v1363, 5
      %v1486 = vsel %vm1444, %v1484, %v1485
      %v1487 = vrot.slane %v1364, 5
      %v1488 = vrot.slane %v1487, 4
      %v1489 = vrot.slane %v1365, 5
      %v1490 = vsel %vm1444, %v1488, %v1489
      %v1491 = vrot.slane %v1489, 4
      %v1492 = vrot.slane %v1366, 5
      %v1493 = vsel %vm1444, %v1491, %v1492
      %v1494 = vrot.slane %v1367, 5
      %v1495 = vrot.slane %v1494, 4
      %v1496 = vrot.slane %v1368, 5
      %v1497 = vsel %vm1444, %v1495, %v1496
      %v1498 = vrot.slane %v1496, 4
      %v1499 = vrot.slane %v1369, 5
      %v1500 = vsel %vm1444, %v1498, %v1499
      %v1501 = vrot.slane %v1370, 5
      %v1502 = vrot.slane %v1501, 4
      %v1503 = vrot.slane %v1371, 5
      %v1504 = vsel %vm1444, %v1502, %v1503
      %v1505 = vrot.slane %v1503, 4
      %v1506 = vrot.slane %v1372, 5
      %v1507 = vsel %vm1444, %v1505, %v1506
      %v1508 = vrot.slane %v1373, 5
      %v1509 = vrot.slane %v1508, 4
      %v1510 = vrot.slane %v1374, 5
      %v1511 = vsel %vm1444, %v1509, %v1510
      %v1512 = vrot.slane %v1510, 4
      %v1513 = vrot.slane %v1375, 5
      %v1514 = vsel %vm1444, %v1512, %v1513
      %v1515 = vrot.slane %v1376, 5
      %v1516 = vrot.slane %v1515, 4
      %v1517 = vrot.slane %v1377, 5
      %v1518 = vsel %vm1444, %v1516, %v1517
      %v1519 = vrot.slane %v1517, 4
      %v1520 = vrot.slane %v1378, 5
      %v1521 = vsel %vm1444, %v1519, %v1520
      %v1522 = vrot.slane %v1379, 5
      %v1523 = vrot.slane %v1522, 4
      %v1524 = vrot.slane %v1380, 5
      %v1525 = vsel %vm1444, %v1523, %v1524
      %v1526 = vrot.slane %v1524, 4
      %v1527 = vrot.slane %v1381, 5
      %v1528 = vsel %vm1444, %v1526, %v1527
      %v1529 = vrot.slane %v1382, 5
      %v1530 = vrot.slane %v1529, 4
      %v1531 = vrot.slane %v1383, 5
      %v1532 = vsel %vm1444, %v1530, %v1531
      %v1533 = vrot.slane %v1531, 4
      %v1534 = vrot.slane %v1384, 5
      %v1535 = vsel %vm1444, %v1533, %v1534
      %v1536 = vrot.slane %v1385, 5
      %v1537 = vrot.slane %v1536, 4
      %v1538 = vrot.slane %v1386, 5
      %v1539 = vsel %vm1444, %v1537, %v1538
      %v1540 = vrot.slane %v1538, 4
      %v1541 = vrot.slane %v1387, 5
      %v1542 = vsel %vm1444, %v1540, %v1541
      %v1543 = vrot.slane %v1388, 5
      %v1544 = vrot.slane %v1543, 4
      %v1545 = vrot.slane %v1389, 5
      %v1546 = vsel %vm1444, %v1544, %v1545
      %v1547 = vrot.slane %v1545, 4
      %v1548 = vrot.slane %v1390, 5
      %v1549 = vsel %vm1444, %v1547, %v1548
      %v1550 = vrot.slane %v1391, 5
      %v1551 = vrot.slane %v1550, 4
      %v1552 = vrot.slane %v1392, 5
      %v1553 = vsel %vm1444, %v1551, %v1552
      %v1554 = vrot.slane %v1552, 4
      %v1555 = vrot.slane %v1393, 5
      %v1556 = vsel %vm1444, %v1554, %v1555
      %s1557 = scalar_lea.vmem %s1, 4
      %v1558 = vld [vmem:[%s1557] sm:$0x3]
      %v1559 = vunpack.c.l.b16 %v1448
      %v1560 = vunpack.c.l.b16 %v1451
      %v1561 = vunpack.c.l.b16 %v1455
      %v1562 = vunpack.c.l.b16 %v1458
      %v1563 = vunpack.c.l.b16 %v1462
      %v1564 = vunpack.c.l.b16 %v1465
      %v1565 = vunpack.c.l.b16 %v1469
      %v1566 = vunpack.c.l.b16 %v1472
      %v1567 = vunpack.c.l.b16 %v1476
      %v1568 = vunpack.c.l.b16 %v1479
      %v1569 = vunpack.c.l.b16 %v1483
      %v1570 = vunpack.c.l.b16 %v1486
      %v1571 = vunpack.c.l.b16 %v1490
      %v1572 = vunpack.c.l.b16 %v1493
      %v1573 = vunpack.c.l.b16 %v1497
      %v1574 = vunpack.c.l.b16 %v1500
      %v1575 = vunpack.c.l.b16 %v1504
      %v1576 = vunpack.c.l.b16 %v1507
      %v1577 = vunpack.c.l.b16 %v1511
      %v1578 = vunpack.c.l.b16 %v1514
      %v1579 = vunpack.c.l.b16 %v1518
      %v1580 = vunpack.c.l.b16 %v1521
      %v1581 = vunpack.c.l.b16 %v1525
      %v1582 = vunpack.c.l.b16 %v1528
      %v1583 = vunpack.c.l.b16 %v1532
      %v1584 = vunpack.c.l.b16 %v1535
      %v1585 = vunpack.c.l.b16 %v1539
      %v1586 = vunpack.c.l.b16 %v1542
      %v1587 = vunpack.c.l.b16 %v1546
      %v1588 = vunpack.c.l.b16 %v1549
      %v1589 = vunpack.c.l.b16 %v1553
      %v1590 = vunpack.c.l.b16 %v1556
      %v1591 = vpack.c.b16 %v1560, %v1559
      %v1592 = vpack.c.b16 %v1562, %v1561
      %v1593 = vpack.c.b16 %v1564, %v1563
      %v1594 = vpack.c.b16 %v1566, %v1565
      %v1595 = vpack.c.b16 %v1568, %v1567
      %v1596 = vpack.c.b16 %v1570, %v1569
      %v1597 = vpack.c.b16 %v1572, %v1571
      %v1598 = vpack.c.b16 %v1574, %v1573
      %v1599 = vpack.c.b16 %v1576, %v1575
      %v1600 = vpack.c.b16 %v1578, %v1577
      %v1601 = vpack.c.b16 %v1580, %v1579
      %v1602 = vpack.c.b16 %v1582, %v1581
      %v1603 = vpack.c.b16 %v1584, %v1583
      %v1604 = vpack.c.b16 %v1586, %v1585
      %v1605 = vpack.c.b16 %v1588, %v1587
      %v1606 = vpack.c.b16 %v1590, %v1589
      %v1608 = vsel %vm307, %v1591, 0
      %v1611 = vsel %vm307, %v1592, 0
      %v1614 = vsel %vm307, %v1593, 0
      %v1617 = vsel %vm307, %v1594, 0
      %v1620 = vsel %vm307, %v1595, 0
      %v1623 = vsel %vm307, %v1596, 0
      %v1626 = vsel %vm307, %v1597, 0
      %v1629 = vsel %vm307, %v1598, 0
      %v1632 = vsel %vm307, %v1599, 0
      %v1635 = vsel %vm307, %v1600, 0
      %v1638 = vsel %vm307, %v1601, 0
      %v1641 = vsel %vm307, %v1602, 0
      %v1644 = vsel %vm307, %v1603, 0
      %v1647 = vsel %vm307, %v1604, 0
      %v1650 = vsel %vm307, %v1605, 0
      %v1653 = vsel %vm307, %v1606, 0
      %v1656 = vsel %vm356, %v1558, 0
      %1658 = vmatprep.subr.bf16.mxu0 0
      %1659 = vmatpush1.bf16.msra.mxu0 0
      %1660 = vmatprep.subr.bf16.mxu0 0
      %1661 = vmatpush1.bf16.msra.mxu0 0
      %1662 = vmatprep.subr.bf16.mxu0 0
      %1663 = vmatpush1.bf16.msra.mxu0 0
      %1664 = vmatprep.subr.bf16.mxu0 0
      %1665 = vmatpush1.bf16.msra.mxu0 0
      %1666 = vmatprep.subr.bf16.mxu0 0
      %1667 = vmatpush1.bf16.msra.mxu0 0
      %1668 = vmatprep.subr.bf16.mxu0 0
      %1669 = vmatpush1.bf16.msra.mxu0 0
      %1670 = vmatprep.subr.bf16.mxu0 0
      %1671 = vmatpush1.bf16.msra.mxu0 0
      %1672 = vmatprep.subr.bf16.mxu0 0
      %1673 = vmatpush1.bf16.msra.mxu0 %v1656
      %1674 = vmatprep.subr.bf16.mxu0 0
      %1675 = vmatpush2.bf16.msra.mxu0 0
      %1676 = vmatprep.subr.bf16.mxu0 0
      %1677 = vmatpush2.bf16.msra.mxu0 0
      %1678 = vmatprep.subr.bf16.mxu0 0
      %1679 = vmatpush2.bf16.msra.mxu0 0
      %1680 = vmatprep.subr.bf16.mxu0 0
      %1681 = vmatpush2.bf16.msra.mxu0 0
      %1682 = vmatprep.subr.bf16.mxu0 0
      %1683 = vmatpush2.bf16.msra.mxu0 0
      %1684 = vmatprep.subr.bf16.mxu0 0
      %1685 = vmatpush2.bf16.msra.mxu0 0
      %1686 = vmatprep.subr.bf16.mxu0 0
      %1687 = vmatpush2.bf16.msra.mxu0 0
      %1688 = vmatprep.subr.bf16.mxu0 0
      %1689 = vmatpush2.bf16.msra.mxu0 0
      %1690 = vmatprep.mubr.bf16.mxu0 0
      %1691 = vmatmul.mubr.bf16.gmra.mxu0 %v1608
      %v1692 = vpop.f32.mrf.mxu0
      %v1693 = vadd.f32 0.0, %v1692
      %v1694 = vpop.f32.mrf.mxu0
      %v1695 = vpop.f32.mrf.mxu0
      %v1696 = vadd.f32 0.0, %v1695
      %v1697 = vpop.f32.mrf.mxu0
      %1698 = vmatprep.mubr.bf16.mxu0 0
      %1699 = vmatmul.mubr.bf16.gmra.mxu0 %v1611
      %v1700 = vpop.f32.mrf.mxu0
      %v1701 = vadd.f32 0.0, %v1700
      %v1702 = vpop.f32.mrf.mxu0
      %v1703 = vpop.f32.mrf.mxu0
      %v1704 = vadd.f32 0.0, %v1703
      %v1705 = vpop.f32.mrf.mxu0
      %1706 = vmatprep.mubr.bf16.mxu0 0
      %1707 = vmatmul.mubr.bf16.gmra.mxu0 %v1614
      %v1708 = vpop.f32.mrf.mxu0
      %v1709 = vadd.f32 0.0, %v1708
      %v1710 = vpop.f32.mrf.mxu0
      %v1711 = vpop.f32.mrf.mxu0
      %v1712 = vadd.f32 0.0, %v1711
      %v1713 = vpop.f32.mrf.mxu0
      %1714 = vmatprep.mubr.bf16.mxu0 0
      %1715 = vmatmul.mubr.bf16.gmra.mxu0 %v1617
      %v1716 = vpop.f32.mrf.mxu0
      %v1717 = vadd.f32 0.0, %v1716
      %v1718 = vpop.f32.mrf.mxu0
      %v1719 = vpop.f32.mrf.mxu0
      %v1720 = vadd.f32 0.0, %v1719
      %v1721 = vpop.f32.mrf.mxu0
      %1722 = vmatprep.mubr.bf16.mxu0 0
      %1723 = vmatmul.mubr.bf16.gmra.mxu0 %v1620
      %v1724 = vpop.f32.mrf.mxu0
      %v1725 = vadd.f32 0.0, %v1724
      %v1726 = vpop.f32.mrf.mxu0
      %v1727 = vpop.f32.mrf.mxu0
      %v1728 = vadd.f32 0.0, %v1727
      %v1729 = vpop.f32.mrf.mxu0
      %1730 = vmatprep.mubr.bf16.mxu0 0
      %1731 = vmatmul.mubr.bf16.gmra.mxu0 %v1623
      %v1732 = vpop.f32.mrf.mxu0
      %v1733 = vadd.f32 0.0, %v1732
      %v1734 = vpop.f32.mrf.mxu0
      %v1735 = vpop.f32.mrf.mxu0
      %v1736 = vadd.f32 0.0, %v1735
      %v1737 = vpop.f32.mrf.mxu0
      %1738 = vmatprep.mubr.bf16.mxu0 0
      %1739 = vmatmul.mubr.bf16.gmra.mxu0 %v1626
      %v1740 = vpop.f32.mrf.mxu0
      %v1741 = vadd.f32 0.0, %v1740
      %v1742 = vpop.f32.mrf.mxu0
      %v1743 = vpop.f32.mrf.mxu0
      %v1744 = vadd.f32 0.0, %v1743
      %v1745 = vpop.f32.mrf.mxu0
      %1746 = vmatprep.mubr.bf16.mxu0 0
      %1747 = vmatmul.mubr.bf16.gmra.mxu0 %v1629
      %v1748 = vpop.f32.mrf.mxu0
      %v1749 = vadd.f32 0.0, %v1748
      %v1750 = vpop.f32.mrf.mxu0
      %v1751 = vpop.f32.mrf.mxu0
      %v1752 = vadd.f32 0.0, %v1751
      %v1753 = vpop.f32.mrf.mxu0
      %1754 = vmatprep.mubr.bf16.mxu0 0
      %1755 = vmatmul.mubr.bf16.gmra.mxu0 %v1632
      %v1756 = vpop.f32.mrf.mxu0
      %v1757 = vadd.f32 0.0, %v1756
      %v1758 = vpop.f32.mrf.mxu0
      %v1759 = vpop.f32.mrf.mxu0
      %v1760 = vadd.f32 0.0, %v1759
      %v1761 = vpop.f32.mrf.mxu0
      %1762 = vmatprep.mubr.bf16.mxu0 0
      %1763 = vmatmul.mubr.bf16.gmra.mxu0 %v1635
      %v1764 = vpop.f32.mrf.mxu0
      %v1765 = vadd.f32 0.0, %v1764
      %v1766 = vpop.f32.mrf.mxu0
      %v1767 = vpop.f32.mrf.mxu0
      %v1768 = vadd.f32 0.0, %v1767
      %v1769 = vpop.f32.mrf.mxu0
      %1770 = vmatprep.mubr.bf16.mxu0 0
      %1771 = vmatmul.mubr.bf16.gmra.mxu0 %v1638
      %v1772 = vpop.f32.mrf.mxu0
      %v1773 = vadd.f32 0.0, %v1772
      %v1774 = vpop.f32.mrf.mxu0
      %v1775 = vpop.f32.mrf.mxu0
      %v1776 = vadd.f32 0.0, %v1775
      %v1777 = vpop.f32.mrf.mxu0
      %1778 = vmatprep.mubr.bf16.mxu0 0
      %1779 = vmatmul.mubr.bf16.gmra.mxu0 %v1641
      %v1780 = vpop.f32.mrf.mxu0
      %v1781 = vadd.f32 0.0, %v1780
      %v1782 = vpop.f32.mrf.mxu0
      %v1783 = vpop.f32.mrf.mxu0
      %v1784 = vadd.f32 0.0, %v1783
      %v1785 = vpop.f32.mrf.mxu0
      %1786 = vmatprep.mubr.bf16.mxu0 0
      %1787 = vmatmul.mubr.bf16.gmra.mxu0 %v1644
      %v1788 = vpop.f32.mrf.mxu0
      %v1789 = vadd.f32 0.0, %v1788
      %v1790 = vpop.f32.mrf.mxu0
      %v1791 = vpop.f32.mrf.mxu0
      %v1792 = vadd.f32 0.0, %v1791
      %v1793 = vpop.f32.mrf.mxu0
      %1794 = vmatprep.mubr.bf16.mxu0 0
      %1795 = vmatmul.mubr.bf16.gmra.mxu0 %v1647
      %v1796 = vpop.f32.mrf.mxu0
      %v1797 = vadd.f32 0.0, %v1796
      %v1798 = vpop.f32.mrf.mxu0
      %v1799 = vpop.f32.mrf.mxu0
      %v1800 = vadd.f32 0.0, %v1799
      %v1801 = vpop.f32.mrf.mxu0
      %1802 = vmatprep.mubr.bf16.mxu0 0
      %1803 = vmatmul.mubr.bf16.gmra.mxu0 %v1650
      %v1804 = vpop.f32.mrf.mxu0
      %v1805 = vadd.f32 0.0, %v1804
      %v1806 = vpop.f32.mrf.mxu0
      %v1807 = vpop.f32.mrf.mxu0
      %v1808 = vadd.f32 0.0, %v1807
      %v1809 = vpop.f32.mrf.mxu0
      %1810 = vmatprep.mubr.bf16.mxu0 0
      %1811 = vmatmul.mubr.bf16.gmra.mxu0 %v1653
      %v1812 = vpop.f32.mrf.mxu0
      %v1813 = vadd.f32 0.0, %v1812
      %v1814 = vpop.f32.mrf.mxu0
      %v1815 = vpop.f32.mrf.mxu0
      %v1816 = vadd.f32 0.0, %v1815
      %v1817 = vpop.f32.mrf.mxu0
      %1818 = vdwg.mxu0
      %v1819 = vld [vmem:[#allocation2] sm:$0xff]
      %v1820 = vld [vmem:[#allocation2 + $0x8] sm:$0xff]
      %v1821 = vld [vmem:[#allocation2 + $0x10] sm:$0xff]
      %v1822 = vld [vmem:[#allocation2 + $0x18] sm:$0xff]
      %v1823 = vld [vmem:[#allocation2 + $0x20] sm:$0xff]
      %v1824 = vld [vmem:[#allocation2 + $0x28] sm:$0xff]
      %v1825 = vld [vmem:[#allocation2 + $0x30] sm:$0xff]
      %v1826 = vld [vmem:[#allocation2 + $0x38] sm:$0xff]
      %v1827 = vld [vmem:[#allocation2 + $0x40] sm:$0xff]
      %v1828 = vld [vmem:[#allocation2 + $0x48] sm:$0xff]
      %v1829 = vld [vmem:[#allocation2 + $0x50] sm:$0xff]
      %v1830 = vld [vmem:[#allocation2 + $0x58] sm:$0xff]
      %v1831 = vld [vmem:[#allocation2 + $0x60] sm:$0xff]
      %v1832 = vld [vmem:[#allocation2 + $0x68] sm:$0xff]
      %v1833 = vld [vmem:[#allocation2 + $0x70] sm:$0xff]
      %v1834 = vld [vmem:[#allocation2 + $0x78] sm:$0xff]
      %v1835 = vld [vmem:[#allocation2 + $0x80] sm:$0xff]
      %v1836 = vld [vmem:[#allocation2 + $0x88] sm:$0xff]
      %v1837 = vld [vmem:[#allocation2 + $0x90] sm:$0xff]
      %v1838 = vld [vmem:[#allocation2 + $0x98] sm:$0xff]
      %v1839 = vld [vmem:[#allocation2 + $0xa0] sm:$0xff]
      %v1840 = vld [vmem:[#allocation2 + $0xa8] sm:$0xff]
      %v1841 = vld [vmem:[#allocation2 + $0xb0] sm:$0xff]
      %v1842 = vld [vmem:[#allocation2 + $0xb8] sm:$0xff]
      %v1843 = vld [vmem:[#allocation2 + $0xc0] sm:$0xff]
      %v1844 = vld [vmem:[#allocation2 + $0xc8] sm:$0xff]
      %v1845 = vld [vmem:[#allocation2 + $0xd0] sm:$0xff]
      %v1846 = vld [vmem:[#allocation2 + $0xd8] sm:$0xff]
      %v1847 = vld [vmem:[#allocation2 + $0xe0] sm:$0xff]
      %v1848 = vld [vmem:[#allocation2 + $0xe8] sm:$0xff]
      %v1849 = vld [vmem:[#allocation2 + $0xf0] sm:$0xff]
      %v1850 = vld [vmem:[#allocation2 + $0xf8] sm:$0xff]
      %v1851 = vadd.f32 %v1819, %v1693
      %v1852 = vadd.f32 %v1820, %v1696
      %v1853 = vadd.f32 %v1821, %v1701
      %v1854 = vadd.f32 %v1822, %v1704
      %v1855 = vadd.f32 %v1823, %v1709
      %v1856 = vadd.f32 %v1824, %v1712
      %v1857 = vadd.f32 %v1825, %v1717
      %v1858 = vadd.f32 %v1826, %v1720
      %v1859 = vadd.f32 %v1827, %v1725
      %v1860 = vadd.f32 %v1828, %v1728
      %v1861 = vadd.f32 %v1829, %v1733
      %v1862 = vadd.f32 %v1830, %v1736
      %v1863 = vadd.f32 %v1831, %v1741
      %v1864 = vadd.f32 %v1832, %v1744
      %v1865 = vadd.f32 %v1833, %v1749
      %v1866 = vadd.f32 %v1834, %v1752
      %v1867 = vadd.f32 %v1835, %v1757
      %v1868 = vadd.f32 %v1836, %v1760
      %v1869 = vadd.f32 %v1837, %v1765
      %v1870 = vadd.f32 %v1838, %v1768
      %v1871 = vadd.f32 %v1839, %v1773
      %v1872 = vadd.f32 %v1840, %v1776
      %v1873 = vadd.f32 %v1841, %v1781
      %v1874 = vadd.f32 %v1842, %v1784
      %v1875 = vadd.f32 %v1843, %v1789
      %v1876 = vadd.f32 %v1844, %v1792
      %v1877 = vadd.f32 %v1845, %v1797
      %v1878 = vadd.f32 %v1846, %v1800
      %v1879 = vadd.f32 %v1847, %v1805
      %v1880 = vadd.f32 %v1848, %v1808
      %v1881 = vadd.f32 %v1849, %v1813
      %v1882 = vadd.f32 %v1850, %v1816
      %1883 = vst [vmem:[#allocation2] sm:$0xff] %v1851
      %1884 = vst [vmem:[#allocation2 + $0x8] sm:$0xff] %v1852
      %1885 = vst [vmem:[#allocation2 + $0x10] sm:$0xff] %v1853
      %1886 = vst [vmem:[#allocation2 + $0x18] sm:$0xff] %v1854
      %1887 = vst [vmem:[#allocation2 + $0x20] sm:$0xff] %v1855
      %1888 = vst [vmem:[#allocation2 + $0x28] sm:$0xff] %v1856
      %1889 = vst [vmem:[#allocation2 + $0x30] sm:$0xff] %v1857
      %1890 = vst [vmem:[#allocation2 + $0x38] sm:$0xff] %v1858
      %1891 = vst [vmem:[#allocation2 + $0x40] sm:$0xff] %v1859
      %1892 = vst [vmem:[#allocation2 + $0x48] sm:$0xff] %v1860
      %1893 = vst [vmem:[#allocation2 + $0x50] sm:$0xff] %v1861
      %1894 = vst [vmem:[#allocation2 + $0x58] sm:$0xff] %v1862
      %1895 = vst [vmem:[#allocation2 + $0x60] sm:$0xff] %v1863
      %1896 = vst [vmem:[#allocation2 + $0x68] sm:$0xff] %v1864
      %1897 = vst [vmem:[#allocation2 + $0x70] sm:$0xff] %v1865
      %1898 = vst [vmem:[#allocation2 + $0x78] sm:$0xff] %v1866
      %1899 = vst [vmem:[#allocation2 + $0x80] sm:$0xff] %v1867
      %1900 = vst [vmem:[#allocation2 + $0x88] sm:$0xff] %v1868
      %1901 = vst [vmem:[#allocation2 + $0x90] sm:$0xff] %v1869
      %1902 = vst [vmem:[#allocation2 + $0x98] sm:$0xff] %v1870
      %1903 = vst [vmem:[#allocation2 + $0xa0] sm:$0xff] %v1871
      %1904 = vst [vmem:[#allocation2 + $0xa8] sm:$0xff] %v1872
      %1905 = vst [vmem:[#allocation2 + $0xb0] sm:$0xff] %v1873
      %1906 = vst [vmem:[#allocation2 + $0xb8] sm:$0xff] %v1874
      %1907 = vst [vmem:[#allocation2 + $0xc0] sm:$0xff] %v1875
      %1908 = vst [vmem:[#allocation2 + $0xc8] sm:$0xff] %v1876
      %1909 = vst [vmem:[#allocation2 + $0xd0] sm:$0xff] %v1877
      %1910 = vst [vmem:[#allocation2 + $0xd8] sm:$0xff] %v1878
      %1911 = vst [vmem:[#allocation2 + $0xe0] sm:$0xff] %v1879
      %1912 = vst [vmem:[#allocation2 + $0xe8] sm:$0xff] %v1880
      %1913 = vst [vmem:[#allocation2 + $0xf0] sm:$0xff] %v1881
      %1914 = vst [vmem:[#allocation2 + $0xf8] sm:$0xff] %v1882
      %s1915 = sadd.s32 %s190, 1
      %s1916 = smul.u32 %s1915, 3
      %s1917 = smul.addr %s1916, 4
      %s1918 = scalar_lea.vmem %s180, %s1917
      %v1919 = vld [vmem:[%s1918] sm:$0xf]
      %v1920 = vld [vmem:[%s1918 + $0x4] sm:$0xf]
      %v1921 = vld [vmem:[%s1918 + $0xc] sm:$0xf]
      %v1922 = vld [vmem:[%s1918 + $0x10] sm:$0xf]
      %v1923 = vld [vmem:[%s1918 + $0x18] sm:$0xf]
      %v1924 = vld [vmem:[%s1918 + $0x1c] sm:$0xf]
      %v1925 = vld [vmem:[%s1918 + $0x24] sm:$0xf]
      %v1926 = vld [vmem:[%s1918 + $0x28] sm:$0xf]
      %v1927 = vld [vmem:[%s1918 + $0x30] sm:$0xf]
      %v1928 = vld [vmem:[%s1918 + $0x34] sm:$0xf]
      %v1929 = vld [vmem:[%s1918 + $0x3c] sm:$0xf]
      %v1930 = vld [vmem:[%s1918 + $0x40] sm:$0xf]
      %v1931 = vld [vmem:[%s1918 + $0x48] sm:$0xf]
      %v1932 = vld [vmem:[%s1918 + $0x4c] sm:$0xf]
      %v1933 = vld [vmem:[%s1918 + $0x54] sm:$0xf]
      %v1934 = vld [vmem:[%s1918 + $0x58] sm:$0xf]
      %v1935 = vld [vmem:[%s1918 + $0x60] sm:$0xf]
      %v1936 = vld [vmem:[%s1918 + $0x64] sm:$0xf]
      %v1937 = vld [vmem:[%s1918 + $0x6c] sm:$0xf]
      %v1938 = vld [vmem:[%s1918 + $0x70] sm:$0xf]
      %v1939 = vld [vmem:[%s1918 + $0x78] sm:$0xf]
      %v1940 = vld [vmem:[%s1918 + $0x7c] sm:$0xf]
      %v1941 = vld [vmem:[%s1918 + $0x84] sm:$0xf]
      %v1942 = vld [vmem:[%s1918 + $0x88] sm:$0xf]
      %v1943 = vld [vmem:[%s1918 + $0x90] sm:$0xf]
      %v1944 = vld [vmem:[%s1918 + $0x94] sm:$0xf]
      %v1945 = vld [vmem:[%s1918 + $0x9c] sm:$0xf]
      %v1946 = vld [vmem:[%s1918 + $0xa0] sm:$0xf]
      %v1947 = vld [vmem:[%s1918 + $0xa8] sm:$0xf]
      %v1948 = vld [vmem:[%s1918 + $0xac] sm:$0xf]
      %v1949 = vld [vmem:[%s1918 + $0xb4] sm:$0xf]
      %v1950 = vld [vmem:[%s1918 + $0xb8] sm:$0xf]
      %s1951 = scalar_lea.vmem %s1, 6
      %v1952 = vld [vmem:[%s1951] sm:$0x3]
      %v1985 = vunpack.c.l.b16 %v1919
      %v1986 = vunpack.c.l.b16 %v1920
      %v1987 = vunpack.c.l.b16 %v1921
      %v1988 = vunpack.c.l.b16 %v1922
      %v1989 = vunpack.c.l.b16 %v1923
      %v1990 = vunpack.c.l.b16 %v1924
      %v1991 = vunpack.c.l.b16 %v1925
      %v1992 = vunpack.c.l.b16 %v1926
      %v1993 = vunpack.c.l.b16 %v1927
      %v1994 = vunpack.c.l.b16 %v1928
      %v1995 = vunpack.c.l.b16 %v1929
      %v1996 = vunpack.c.l.b16 %v1930
      %v1997 = vunpack.c.l.b16 %v1931
      %v1998 = vunpack.c.l.b16 %v1932
      %v1999 = vunpack.c.l.b16 %v1933
      %v2000 = vunpack.c.l.b16 %v1934
      %v2001 = vunpack.c.l.b16 %v1935
      %v2002 = vunpack.c.l.b16 %v1936
      %v2003 = vunpack.c.l.b16 %v1937
      %v2004 = vunpack.c.l.b16 %v1938
      %v2005 = vunpack.c.l.b16 %v1939
      %v2006 = vunpack.c.l.b16 %v1940
      %v2007 = vunpack.c.l.b16 %v1941
      %v2008 = vunpack.c.l.b16 %v1942
      %v2009 = vunpack.c.l.b16 %v1943
      %v2010 = vunpack.c.l.b16 %v1944
      %v2011 = vunpack.c.l.b16 %v1945
      %v2012 = vunpack.c.l.b16 %v1946
      %v2013 = vunpack.c.l.b16 %v1947
      %v2014 = vunpack.c.l.b16 %v1948
      %v2015 = vunpack.c.l.b16 %v1949
      %v2016 = vunpack.c.l.b16 %v1950
      %v2017 = vpack.c.b16 %v1986, %v1985
      %v2018 = vpack.c.b16 %v1988, %v1987
      %v2019 = vpack.c.b16 %v1990, %v1989
      %v2020 = vpack.c.b16 %v1992, %v1991
      %v2021 = vpack.c.b16 %v1994, %v1993
      %v2022 = vpack.c.b16 %v1996, %v1995
      %v2023 = vpack.c.b16 %v1998, %v1997
      %v2024 = vpack.c.b16 %v2000, %v1999
      %v2025 = vpack.c.b16 %v2002, %v2001
      %v2026 = vpack.c.b16 %v2004, %v2003
      %v2027 = vpack.c.b16 %v2006, %v2005
      %v2028 = vpack.c.b16 %v2008, %v2007
      %v2029 = vpack.c.b16 %v2010, %v2009
      %v2030 = vpack.c.b16 %v2012, %v2011
      %v2031 = vpack.c.b16 %v2014, %v2013
      %v2032 = vpack.c.b16 %v2016, %v2015
      %v2034 = vsel %vm307, %v2017, 0
      %v2037 = vsel %vm307, %v2018, 0
      %v2040 = vsel %vm307, %v2019, 0
      %v2043 = vsel %vm307, %v2020, 0
      %v2046 = vsel %vm307, %v2021, 0
      %v2049 = vsel %vm307, %v2022, 0
      %v2052 = vsel %vm307, %v2023, 0
      %v2055 = vsel %vm307, %v2024, 0
      %v2058 = vsel %vm307, %v2025, 0
      %v2061 = vsel %vm307, %v2026, 0
      %v2064 = vsel %vm307, %v2027, 0
      %v2067 = vsel %vm307, %v2028, 0
      %v2070 = vsel %vm307, %v2029, 0
      %v2073 = vsel %vm307, %v2030, 0
      %v2076 = vsel %vm307, %v2031, 0
      %v2079 = vsel %vm307, %v2032, 0
      %v2082 = vsel %vm356, %v1952, 0
      %2084 = vmatprep.subr.bf16.mxu0 0
      %2085 = vmatpush1.bf16.msra.mxu0 0
      %2086 = vmatprep.subr.bf16.mxu0 0
      %2087 = vmatpush1.bf16.msra.mxu0 0
      %2088 = vmatprep.subr.bf16.mxu0 0
      %2089 = vmatpush1.bf16.msra.mxu0 0
      %2090 = vmatprep.subr.bf16.mxu0 0
      %2091 = vmatpush1.bf16.msra.mxu0 0
      %2092 = vmatprep.subr.bf16.mxu0 0
      %2093 = vmatpush1.bf16.msra.mxu0 0
      %2094 = vmatprep.subr.bf16.mxu0 0
      %2095 = vmatpush1.bf16.msra.mxu0 0
      %2096 = vmatprep.subr.bf16.mxu0 0
      %2097 = vmatpush1.bf16.msra.mxu0 0
      %2098 = vmatprep.subr.bf16.mxu0 0
      %2099 = vmatpush1.bf16.msra.mxu0 %v2082
      %2100 = vmatprep.subr.bf16.mxu0 0
      %2101 = vmatpush2.bf16.msra.mxu0 0
      %2102 = vmatprep.subr.bf16.mxu0 0
      %2103 = vmatpush2.bf16.msra.mxu0 0
      %2104 = vmatprep.subr.bf16.mxu0 0
      %2105 = vmatpush2.bf16.msra.mxu0 0
      %2106 = vmatprep.subr.bf16.mxu0 0
      %2107 = vmatpush2.bf16.msra.mxu0 0
      %2108 = vmatprep.subr.bf16.mxu0 0
      %2109 = vmatpush2.bf16.msra.mxu0 0
      %2110 = vmatprep.subr.bf16.mxu0 0
      %2111 = vmatpush2.bf16.msra.mxu0 0
      %2112 = vmatprep.subr.bf16.mxu0 0
      %2113 = vmatpush2.bf16.msra.mxu0 0
      %2114 = vmatprep.subr.bf16.mxu0 0
      %2115 = vmatpush2.bf16.msra.mxu0 0
      %2116 = vmatprep.mubr.bf16.mxu0 0
      %2117 = vmatmul.mubr.bf16.gmra.mxu0 %v2034
      %v2118 = vpop.f32.mrf.mxu0
      %v2119 = vadd.f32 0.0, %v2118
      %v2120 = vpop.f32.mrf.mxu0
      %v2121 = vpop.f32.mrf.mxu0
      %v2122 = vadd.f32 0.0, %v2121
      %v2123 = vpop.f32.mrf.mxu0
      %2124 = vmatprep.mubr.bf16.mxu0 0
      %2125 = vmatmul.mubr.bf16.gmra.mxu0 %v2037
      %v2126 = vpop.f32.mrf.mxu0
      %v2127 = vadd.f32 0.0, %v2126
      %v2128 = vpop.f32.mrf.mxu0
      %v2129 = vpop.f32.mrf.mxu0
      %v2130 = vadd.f32 0.0, %v2129
      %v2131 = vpop.f32.mrf.mxu0
      %2132 = vmatprep.mubr.bf16.mxu0 0
      %2133 = vmatmul.mubr.bf16.gmra.mxu0 %v2040
      %v2134 = vpop.f32.mrf.mxu0
      %v2135 = vadd.f32 0.0, %v2134
      %v2136 = vpop.f32.mrf.mxu0
      %v2137 = vpop.f32.mrf.mxu0
      %v2138 = vadd.f32 0.0, %v2137
      %v2139 = vpop.f32.mrf.mxu0
      %2140 = vmatprep.mubr.bf16.mxu0 0
      %2141 = vmatmul.mubr.bf16.gmra.mxu0 %v2043
      %v2142 = vpop.f32.mrf.mxu0
      %v2143 = vadd.f32 0.0, %v2142
      %v2144 = vpop.f32.mrf.mxu0
      %v2145 = vpop.f32.mrf.mxu0
      %v2146 = vadd.f32 0.0, %v2145
      %v2147 = vpop.f32.mrf.mxu0
      %2148 = vmatprep.mubr.bf16.mxu0 0
      %2149 = vmatmul.mubr.bf16.gmra.mxu0 %v2046
      %v2150 = vpop.f32.mrf.mxu0
      %v2151 = vadd.f32 0.0, %v2150
      %v2152 = vpop.f32.mrf.mxu0
      %v2153 = vpop.f32.mrf.mxu0
      %v2154 = vadd.f32 0.0, %v2153
      %v2155 = vpop.f32.mrf.mxu0
      %2156 = vmatprep.mubr.bf16.mxu0 0
      %2157 = vmatmul.mubr.bf16.gmra.mxu0 %v2049
      %v2158 = vpop.f32.mrf.mxu0
      %v2159 = vadd.f32 0.0, %v2158
      %v2160 = vpop.f32.mrf.mxu0
      %v2161 = vpop.f32.mrf.mxu0
      %v2162 = vadd.f32 0.0, %v2161
      %v2163 = vpop.f32.mrf.mxu0
      %2164 = vmatprep.mubr.bf16.mxu0 0
      %2165 = vmatmul.mubr.bf16.gmra.mxu0 %v2052
      %v2166 = vpop.f32.mrf.mxu0
      %v2167 = vadd.f32 0.0, %v2166
      %v2168 = vpop.f32.mrf.mxu0
      %v2169 = vpop.f32.mrf.mxu0
      %v2170 = vadd.f32 0.0, %v2169
      %v2171 = vpop.f32.mrf.mxu0
      %2172 = vmatprep.mubr.bf16.mxu0 0
      %2173 = vmatmul.mubr.bf16.gmra.mxu0 %v2055
      %v2174 = vpop.f32.mrf.mxu0
      %v2175 = vadd.f32 0.0, %v2174
      %v2176 = vpop.f32.mrf.mxu0
      %v2177 = vpop.f32.mrf.mxu0
      %v2178 = vadd.f32 0.0, %v2177
      %v2179 = vpop.f32.mrf.mxu0
      %2180 = vmatprep.mubr.bf16.mxu0 0
      %2181 = vmatmul.mubr.bf16.gmra.mxu0 %v2058
      %v2182 = vpop.f32.mrf.mxu0
      %v2183 = vadd.f32 0.0, %v2182
      %v2184 = vpop.f32.mrf.mxu0
      %v2185 = vpop.f32.mrf.mxu0
      %v2186 = vadd.f32 0.0, %v2185
      %v2187 = vpop.f32.mrf.mxu0
      %2188 = vmatprep.mubr.bf16.mxu0 0
      %2189 = vmatmul.mubr.bf16.gmra.mxu0 %v2061
      %v2190 = vpop.f32.mrf.mxu0
      %v2191 = vadd.f32 0.0, %v2190
      %v2192 = vpop.f32.mrf.mxu0
      %v2193 = vpop.f32.mrf.mxu0
      %v2194 = vadd.f32 0.0, %v2193
      %v2195 = vpop.f32.mrf.mxu0
      %2196 = vmatprep.mubr.bf16.mxu0 0
      %2197 = vmatmul.mubr.bf16.gmra.mxu0 %v2064
      %v2198 = vpop.f32.mrf.mxu0
      %v2199 = vadd.f32 0.0, %v2198
      %v2200 = vpop.f32.mrf.mxu0
      %v2201 = vpop.f32.mrf.mxu0
      %v2202 = vadd.f32 0.0, %v2201
      %v2203 = vpop.f32.mrf.mxu0
      %2204 = vmatprep.mubr.bf16.mxu0 0
      %2205 = vmatmul.mubr.bf16.gmra.mxu0 %v2067
      %v2206 = vpop.f32.mrf.mxu0
      %v2207 = vadd.f32 0.0, %v2206
      %v2208 = vpop.f32.mrf.mxu0
      %v2209 = vpop.f32.mrf.mxu0
      %v2210 = vadd.f32 0.0, %v2209
      %v2211 = vpop.f32.mrf.mxu0
      %2212 = vmatprep.mubr.bf16.mxu0 0
      %2213 = vmatmul.mubr.bf16.gmra.mxu0 %v2070
      %v2214 = vpop.f32.mrf.mxu0
      %v2215 = vadd.f32 0.0, %v2214
      %v2216 = vpop.f32.mrf.mxu0
      %v2217 = vpop.f32.mrf.mxu0
      %v2218 = vadd.f32 0.0, %v2217
      %v2219 = vpop.f32.mrf.mxu0
      %2220 = vmatprep.mubr.bf16.mxu0 0
      %2221 = vmatmul.mubr.bf16.gmra.mxu0 %v2073
      %v2222 = vpop.f32.mrf.mxu0
      %v2223 = vadd.f32 0.0, %v2222
      %v2224 = vpop.f32.mrf.mxu0
      %v2225 = vpop.f32.mrf.mxu0
      %v2226 = vadd.f32 0.0, %v2225
      %v2227 = vpop.f32.mrf.mxu0
      %2228 = vmatprep.mubr.bf16.mxu0 0
      %2229 = vmatmul.mubr.bf16.gmra.mxu0 %v2076
      %v2230 = vpop.f32.mrf.mxu0
      %v2231 = vadd.f32 0.0, %v2230
      %v2232 = vpop.f32.mrf.mxu0
      %v2233 = vpop.f32.mrf.mxu0
      %v2234 = vadd.f32 0.0, %v2233
      %v2235 = vpop.f32.mrf.mxu0
      %2236 = vmatprep.mubr.bf16.mxu0 0
      %2237 = vmatmul.mubr.bf16.gmra.mxu0 %v2079
      %v2238 = vpop.f32.mrf.mxu0
      %v2239 = vadd.f32 0.0, %v2238
      %v2240 = vpop.f32.mrf.mxu0
      %v2241 = vpop.f32.mrf.mxu0
      %v2242 = vadd.f32 0.0, %v2241
      %v2243 = vpop.f32.mrf.mxu0
      %2244 = vdwg.mxu0
      %v2245 = vld [vmem:[#allocation2] sm:$0xff]
      %v2246 = vld [vmem:[#allocation2 + $0x8] sm:$0xff]
      %v2247 = vld [vmem:[#allocation2 + $0x10] sm:$0xff]
      %v2248 = vld [vmem:[#allocation2 + $0x18] sm:$0xff]
      %v2249 = vld [vmem:[#allocation2 + $0x20] sm:$0xff]
      %v2250 = vld [vmem:[#allocation2 + $0x28] sm:$0xff]
      %v2251 = vld [vmem:[#allocation2 + $0x30] sm:$0xff]
      %v2252 = vld [vmem:[#allocation2 + $0x38] sm:$0xff]
      %v2253 = vld [vmem:[#allocation2 + $0x40] sm:$0xff]
      %v2254 = vld [vmem:[#allocation2 + $0x48] sm:$0xff]
      %v2255 = vld [vmem:[#allocation2 + $0x50] sm:$0xff]
      %v2256 = vld [vmem:[#allocation2 + $0x58] sm:$0xff]
      %v2257 = vld [vmem:[#allocation2 + $0x60] sm:$0xff]
      %v2258 = vld [vmem:[#allocation2 + $0x68] sm:$0xff]
      %v2259 = vld [vmem:[#allocation2 + $0x70] sm:$0xff]
      %v2260 = vld [vmem:[#allocation2 + $0x78] sm:$0xff]
      %v2261 = vld [vmem:[#allocation2 + $0x80] sm:$0xff]
      %v2262 = vld [vmem:[#allocation2 + $0x88] sm:$0xff]
      %v2263 = vld [vmem:[#allocation2 + $0x90] sm:$0xff]
      %v2264 = vld [vmem:[#allocation2 + $0x98] sm:$0xff]
      %v2265 = vld [vmem:[#allocation2 + $0xa0] sm:$0xff]
      %v2266 = vld [vmem:[#allocation2 + $0xa8] sm:$0xff]
      %v2267 = vld [vmem:[#allocation2 + $0xb0] sm:$0xff]
      %v2268 = vld [vmem:[#allocation2 + $0xb8] sm:$0xff]
      %v2269 = vld [vmem:[#allocation2 + $0xc0] sm:$0xff]
      %v2270 = vld [vmem:[#allocation2 + $0xc8] sm:$0xff]
      %v2271 = vld [vmem:[#allocation2 + $0xd0] sm:$0xff]
      %v2272 = vld [vmem:[#allocation2 + $0xd8] sm:$0xff]
      %v2273 = vld [vmem:[#allocation2 + $0xe0] sm:$0xff]
      %v2274 = vld [vmem:[#allocation2 + $0xe8] sm:$0xff]
      %v2275 = vld [vmem:[#allocation2 + $0xf0] sm:$0xff]
      %v2276 = vld [vmem:[#allocation2 + $0xf8] sm:$0xff]
      %v2277 = vadd.f32 %v2245, %v2119
      %v2278 = vadd.f32 %v2246, %v2122
      %v2279 = vadd.f32 %v2247, %v2127
      %v2280 = vadd.f32 %v2248, %v2130
      %v2281 = vadd.f32 %v2249, %v2135
      %v2282 = vadd.f32 %v2250, %v2138
      %v2283 = vadd.f32 %v2251, %v2143
      %v2284 = vadd.f32 %v2252, %v2146
      %v2285 = vadd.f32 %v2253, %v2151
      %v2286 = vadd.f32 %v2254, %v2154
      %v2287 = vadd.f32 %v2255, %v2159
      %v2288 = vadd.f32 %v2256, %v2162
      %v2289 = vadd.f32 %v2257, %v2167
      %v2290 = vadd.f32 %v2258, %v2170
      %v2291 = vadd.f32 %v2259, %v2175
      %v2292 = vadd.f32 %v2260, %v2178
      %v2293 = vadd.f32 %v2261, %v2183
      %v2294 = vadd.f32 %v2262, %v2186
      %v2295 = vadd.f32 %v2263, %v2191
      %v2296 = vadd.f32 %v2264, %v2194
      %v2297 = vadd.f32 %v2265, %v2199
      %v2298 = vadd.f32 %v2266, %v2202
      %v2299 = vadd.f32 %v2267, %v2207
      %v2300 = vadd.f32 %v2268, %v2210
      %v2301 = vadd.f32 %v2269, %v2215
      %v2302 = vadd.f32 %v2270, %v2218
      %v2303 = vadd.f32 %v2271, %v2223
      %v2304 = vadd.f32 %v2272, %v2226
      %v2305 = vadd.f32 %v2273, %v2231
      %v2306 = vadd.f32 %v2274, %v2234
      %v2307 = vadd.f32 %v2275, %v2239
      %v2308 = vadd.f32 %v2276, %v2242
      %2309 = vst [vmem:[#allocation2] sm:$0xff] %v2277
      %2310 = vst [vmem:[#allocation2 + $0x8] sm:$0xff] %v2278
      %2311 = vst [vmem:[#allocation2 + $0x10] sm:$0xff] %v2279
      %2312 = vst [vmem:[#allocation2 + $0x18] sm:$0xff] %v2280
      %2313 = vst [vmem:[#allocation2 + $0x20] sm:$0xff] %v2281
      %2314 = vst [vmem:[#allocation2 + $0x28] sm:$0xff] %v2282
      %2315 = vst [vmem:[#allocation2 + $0x30] sm:$0xff] %v2283
      %2316 = vst [vmem:[#allocation2 + $0x38] sm:$0xff] %v2284
      %2317 = vst [vmem:[#allocation2 + $0x40] sm:$0xff] %v2285
      %2318 = vst [vmem:[#allocation2 + $0x48] sm:$0xff] %v2286
      %2319 = vst [vmem:[#allocation2 + $0x50] sm:$0xff] %v2287
      %2320 = vst [vmem:[#allocation2 + $0x58] sm:$0xff] %v2288
      %2321 = vst [vmem:[#allocation2 + $0x60] sm:$0xff] %v2289
      %2322 = vst [vmem:[#allocation2 + $0x68] sm:$0xff] %v2290
      %2323 = vst [vmem:[#allocation2 + $0x70] sm:$0xff] %v2291
      %2324 = vst [vmem:[#allocation2 + $0x78] sm:$0xff] %v2292
      %2325 = vst [vmem:[#allocation2 + $0x80] sm:$0xff] %v2293
      %2326 = vst [vmem:[#allocation2 + $0x88] sm:$0xff] %v2294
      %2327 = vst [vmem:[#allocation2 + $0x90] sm:$0xff] %v2295
      %2328 = vst [vmem:[#allocation2 + $0x98] sm:$0xff] %v2296
      %2329 = vst [vmem:[#allocation2 + $0xa0] sm:$0xff] %v2297
      %2330 = vst [vmem:[#allocation2 + $0xa8] sm:$0xff] %v2298
      %2331 = vst [vmem:[#allocation2 + $0xb0] sm:$0xff] %v2299
      %2332 = vst [vmem:[#allocation2 + $0xb8] sm:$0xff] %v2300
      %2333 = vst [vmem:[#allocation2 + $0xc0] sm:$0xff] %v2301
      %2334 = vst [vmem:[#allocation2 + $0xc8] sm:$0xff] %v2302
      %2335 = vst [vmem:[#allocation2 + $0xd0] sm:$0xff] %v2303
      %2336 = vst [vmem:[#allocation2 + $0xd8] sm:$0xff] %v2304
      %2337 = vst [vmem:[#allocation2 + $0xe0] sm:$0xff] %v2305
      %2338 = vst [vmem:[#allocation2 + $0xe8] sm:$0xff] %v2306
      %2339 = vst [vmem:[#allocation2 + $0xf0] sm:$0xff] %v2307
      %2340 = vst [vmem:[#allocation2 + $0xf8] sm:$0xff] %v2308
      %v2341 = vld [vmem:[%s1918] sm:$0xf]
      %v2342 = vld [vmem:[%s1918 + $0x4] sm:$0xf]
      %v2343 = vld [vmem:[%s1918 + $0x8] sm:$0x1]
      %v2344 = vld [vmem:[%s1918 + $0xc] sm:$0xf]
      %v2345 = vld [vmem:[%s1918 + $0x10] sm:$0xf]
      %v2346 = vld [vmem:[%s1918 + $0x14] sm:$0x1]
      %v2347 = vld [vmem:[%s1918 + $0x18] sm:$0xf]
      %v2348 = vld [vmem:[%s1918 + $0x1c] sm:$0xf]
      %v2349 = vld [vmem:[%s1918 + $0x20] sm:$0x1]
      %v2350 = vld [vmem:[%s1918 + $0x24] sm:$0xf]
      %v2351 = vld [vmem:[%s1918 + $0x28] sm:$0xf]
      %v2352 = vld [vmem:[%s1918 + $0x2c] sm:$0x1]
      %v2353 = vld [vmem:[%s1918 + $0x30] sm:$0xf]
      %v2354 = vld [vmem:[%s1918 + $0x34] sm:$0xf]
      %v2355 = vld [vmem:[%s1918 + $0x38] sm:$0x1]
      %v2356 = vld [vmem:[%s1918 + $0x3c] sm:$0xf]
      %v2357 = vld [vmem:[%s1918 + $0x40] sm:$0xf]
      %v2358 = vld [vmem:[%s1918 + $0x44] sm:$0x1]
      %v2359 = vld [vmem:[%s1918 + $0x48] sm:$0xf]
      %v2360 = vld [vmem:[%s1918 + $0x4c] sm:$0xf]
      %v2361 = vld [vmem:[%s1918 + $0x50] sm:$0x1]
      %v2362 = vld [vmem:[%s1918 + $0x54] sm:$0xf]
      %v2363 = vld [vmem:[%s1918 + $0x58] sm:$0xf]
      %v2364 = vld [vmem:[%s1918 + $0x5c] sm:$0x1]
      %v2365 = vld [vmem:[%s1918 + $0x60] sm:$0xf]
      %v2366 = vld [vmem:[%s1918 + $0x64] sm:$0xf]
      %v2367 = vld [vmem:[%s1918 + $0x68] sm:$0x1]
      %v2368 = vld [vmem:[%s1918 + $0x6c] sm:$0xf]
      %v2369 = vld [vmem:[%s1918 + $0x70] sm:$0xf]
      %v2370 = vld [vmem:[%s1918 + $0x74] sm:$0x1]
      %v2371 = vld [vmem:[%s1918 + $0x78] sm:$0xf]
      %v2372 = vld [vmem:[%s1918 + $0x7c] sm:$0xf]
      %v2373 = vld [vmem:[%s1918 + $0x80] sm:$0x1]
      %v2374 = vld [vmem:[%s1918 + $0x84] sm:$0xf]
      %v2375 = vld [vmem:[%s1918 + $0x88] sm:$0xf]
      %v2376 = vld [vmem:[%s1918 + $0x8c] sm:$0x1]
      %v2377 = vld [vmem:[%s1918 + $0x90] sm:$0xf]
      %v2378 = vld [vmem:[%s1918 + $0x94] sm:$0xf]
      %v2379 = vld [vmem:[%s1918 + $0x98] sm:$0x1]
      %v2380 = vld [vmem:[%s1918 + $0x9c] sm:$0xf]
      %v2381 = vld [vmem:[%s1918 + $0xa0] sm:$0xf]
      %v2382 = vld [vmem:[%s1918 + $0xa4] sm:$0x1]
      %v2383 = vld [vmem:[%s1918 + $0xa8] sm:$0xf]
      %v2384 = vld [vmem:[%s1918 + $0xac] sm:$0xf]
      %v2385 = vld [vmem:[%s1918 + $0xb0] sm:$0x1]
      %v2386 = vld [vmem:[%s1918 + $0xb4] sm:$0xf]
      %v2387 = vld [vmem:[%s1918 + $0xb8] sm:$0xf]
      %v2388 = vld [vmem:[%s1918 + $0xbc] sm:$0x1]
      %v2390 = vshrl.u32 %v2341, 16
      %v2392 = vrot.slane %v2390, 4
      %v2393 = vshll.u32 %v2341, 16
      %v2395 = vrot.slane %v2393, 5
      %v2396 = vor.u32 %v2392, %v2395
      %v2397 = vrot.slane %v2396, 4
      %v2399 = vshll.u32 %v2342, 16
      %v2401 = vrot.slane %v2399, 5
      %v2402 = vsel %vm603, %v2397, %v2401
      %v2403 = vshrl.u32 %v2342, 16
      %v2405 = vrot.slane %v2403, 4
      %v2406 = vor.u32 %v2405, %v2401
      %v2407 = vrot.slane %v2406, 4
      %v2409 = vshll.u32 %v2343, 16
      %v2411 = vrot.slane %v2409, 5
      %v2412 = vsel %vm603, %v2407, %v2411
      %v2414 = vshrl.u32 %v2344, 16
      %v2416 = vrot.slane %v2414, 4
      %v2417 = vshll.u32 %v2344, 16
      %v2419 = vrot.slane %v2417, 5
      %v2420 = vor.u32 %v2416, %v2419
      %v2421 = vrot.slane %v2420, 4
      %v2423 = vshll.u32 %v2345, 16
      %v2425 = vrot.slane %v2423, 5
      %v2426 = vsel %vm603, %v2421, %v2425
      %v2427 = vshrl.u32 %v2345, 16
      %v2429 = vrot.slane %v2427, 4
      %v2430 = vor.u32 %v2429, %v2425
      %v2431 = vrot.slane %v2430, 4
      %v2433 = vshll.u32 %v2346, 16
      %v2435 = vrot.slane %v2433, 5
      %v2436 = vsel %vm603, %v2431, %v2435
      %v2438 = vshrl.u32 %v2347, 16
      %v2440 = vrot.slane %v2438, 4
      %v2441 = vshll.u32 %v2347, 16
      %v2443 = vrot.slane %v2441, 5
      %v2444 = vor.u32 %v2440, %v2443
      %v2445 = vrot.slane %v2444, 4
      %v2447 = vshll.u32 %v2348, 16
      %v2449 = vrot.slane %v2447, 5
      %v2450 = vsel %vm603, %v2445, %v2449
      %v2451 = vshrl.u32 %v2348, 16
      %v2453 = vrot.slane %v2451, 4
      %v2454 = vor.u32 %v2453, %v2449
      %v2455 = vrot.slane %v2454, 4
      %v2457 = vshll.u32 %v2349, 16
      %v2459 = vrot.slane %v2457, 5
      %v2460 = vsel %vm603, %v2455, %v2459
      %v2462 = vshrl.u32 %v2350, 16
      %v2464 = vrot.slane %v2462, 4
      %v2465 = vshll.u32 %v2350, 16
      %v2467 = vrot.slane %v2465, 5
      %v2468 = vor.u32 %v2464, %v2467
      %v2469 = vrot.slane %v2468, 4
      %v2471 = vshll.u32 %v2351, 16
      %v2473 = vrot.slane %v2471, 5
      %v2474 = vsel %vm603, %v2469, %v2473
      %v2475 = vshrl.u32 %v2351, 16
      %v2477 = vrot.slane %v2475, 4
      %v2478 = vor.u32 %v2477, %v2473
      %v2479 = vrot.slane %v2478, 4
      %v2481 = vshll.u32 %v2352, 16
      %v2483 = vrot.slane %v2481, 5
      %v2484 = vsel %vm603, %v2479, %v2483
      %v2486 = vshrl.u32 %v2353, 16
      %v2488 = vrot.slane %v2486, 4
      %v2489 = vshll.u32 %v2353, 16
      %v2491 = vrot.slane %v2489, 5
      %v2492 = vor.u32 %v2488, %v2491
      %v2493 = vrot.slane %v2492, 4
      %v2495 = vshll.u32 %v2354, 16
      %v2497 = vrot.slane %v2495, 5
      %v2498 = vsel %vm603, %v2493, %v2497
      %v2499 = vshrl.u32 %v2354, 16
      %v2501 = vrot.slane %v2499, 4
      %v2502 = vor.u32 %v2501, %v2497
      %v2503 = vrot.slane %v2502, 4
      %v2505 = vshll.u32 %v2355, 16
      %v2507 = vrot.slane %v2505, 5
      %v2508 = vsel %vm603, %v2503, %v2507
      %v2510 = vshrl.u32 %v2356, 16
      %v2512 = vrot.slane %v2510, 4
      %v2513 = vshll.u32 %v2356, 16
      %v2515 = vrot.slane %v2513, 5
      %v2516 = vor.u32 %v2512, %v2515
      %v2517 = vrot.slane %v2516, 4
      %v2519 = vshll.u32 %v2357, 16
      %v2521 = vrot.slane %v2519, 5
      %v2522 = vsel %vm603, %v2517, %v2521
      %v2523 = vshrl.u32 %v2357, 16
      %v2525 = vrot.slane %v2523, 4
      %v2526 = vor.u32 %v2525, %v2521
      %v2527 = vrot.slane %v2526, 4
      %v2529 = vshll.u32 %v2358, 16
      %v2531 = vrot.slane %v2529, 5
      %v2532 = vsel %vm603, %v2527, %v2531
      %v2534 = vshrl.u32 %v2359, 16
      %v2536 = vrot.slane %v2534, 4
      %v2537 = vshll.u32 %v2359, 16
      %v2539 = vrot.slane %v2537, 5
      %v2540 = vor.u32 %v2536, %v2539
      %v2541 = vrot.slane %v2540, 4
      %v2543 = vshll.u32 %v2360, 16
      %v2545 = vrot.slane %v2543, 5
      %v2546 = vsel %vm603, %v2541, %v2545
      %v2547 = vshrl.u32 %v2360, 16
      %v2549 = vrot.slane %v2547, 4
      %v2550 = vor.u32 %v2549, %v2545
      %v2551 = vrot.slane %v2550, 4
      %v2553 = vshll.u32 %v2361, 16
      %v2555 = vrot.slane %v2553, 5
      %v2556 = vsel %vm603, %v2551, %v2555
      %v2558 = vshrl.u32 %v2362, 16
      %v2560 = vrot.slane %v2558, 4
      %v2561 = vshll.u32 %v2362, 16
      %v2563 = vrot.slane %v2561, 5
      %v2564 = vor.u32 %v2560, %v2563
      %v2565 = vrot.slane %v2564, 4
      %v2567 = vshll.u32 %v2363, 16
      %v2569 = vrot.slane %v2567, 5
      %v2570 = vsel %vm603, %v2565, %v2569
      %v2571 = vshrl.u32 %v2363, 16
      %v2573 = vrot.slane %v2571, 4
      %v2574 = vor.u32 %v2573, %v2569
      %v2575 = vrot.slane %v2574, 4
      %v2577 = vshll.u32 %v2364, 16
      %v2579 = vrot.slane %v2577, 5
      %v2580 = vsel %vm603, %v2575, %v2579
      %v2582 = vshrl.u32 %v2365, 16
      %v2584 = vrot.slane %v2582, 4
      %v2585 = vshll.u32 %v2365, 16
      %v2587 = vrot.slane %v2585, 5
      %v2588 = vor.u32 %v2584, %v2587
      %v2589 = vrot.slane %v2588, 4
      %v2591 = vshll.u32 %v2366, 16
      %v2593 = vrot.slane %v2591, 5
      %v2594 = vsel %vm603, %v2589, %v2593
      %v2595 = vshrl.u32 %v2366, 16
      %v2597 = vrot.slane %v2595, 4
      %v2598 = vor.u32 %v2597, %v2593
      %v2599 = vrot.slane %v2598, 4
      %v2601 = vshll.u32 %v2367, 16
      %v2603 = vrot.slane %v2601, 5
      %v2604 = vsel %vm603, %v2599, %v2603
      %v2606 = vshrl.u32 %v2368, 16
      %v2608 = vrot.slane %v2606, 4
      %v2609 = vshll.u32 %v2368, 16
      %v2611 = vrot.slane %v2609, 5
      %v2612 = vor.u32 %v2608, %v2611
      %v2613 = vrot.slane %v2612, 4
      %v2615 = vshll.u32 %v2369, 16
      %v2617 = vrot.slane %v2615, 5
      %v2618 = vsel %vm603, %v2613, %v2617
      %v2619 = vshrl.u32 %v2369, 16
      %v2621 = vrot.slane %v2619, 4
      %v2622 = vor.u32 %v2621, %v2617
      %v2623 = vrot.slane %v2622, 4
      %v2625 = vshll.u32 %v2370, 16
      %v2627 = vrot.slane %v2625, 5
      %v2628 = vsel %vm603, %v2623, %v2627
      %v2630 = vshrl.u32 %v2371, 16
      %v2632 = vrot.slane %v2630, 4
      %v2633 = vshll.u32 %v2371, 16
      %v2635 = vrot.slane %v2633, 5
      %v2636 = vor.u32 %v2632, %v2635
      %v2637 = vrot.slane %v2636, 4
      %v2639 = vshll.u32 %v2372, 16
      %v2641 = vrot.slane %v2639, 5
      %v2642 = vsel %vm603, %v2637, %v2641
      %v2643 = vshrl.u32 %v2372, 16
      %v2645 = vrot.slane %v2643, 4
      %v2646 = vor.u32 %v2645, %v2641
      %v2647 = vrot.slane %v2646, 4
      %v2649 = vshll.u32 %v2373, 16
      %v2651 = vrot.slane %v2649, 5
      %v2652 = vsel %vm603, %v2647, %v2651
      %v2654 = vshrl.u32 %v2374, 16
      %v2656 = vrot.slane %v2654, 4
      %v2657 = vshll.u32 %v2374, 16
      %v2659 = vrot.slane %v2657, 5
      %v2660 = vor.u32 %v2656, %v2659
      %v2661 = vrot.slane %v2660, 4
      %v2663 = vshll.u32 %v2375, 16
      %v2665 = vrot.slane %v2663, 5
      %v2666 = vsel %vm603, %v2661, %v2665
      %v2667 = vshrl.u32 %v2375, 16
      %v2669 = vrot.slane %v2667, 4
      %v2670 = vor.u32 %v2669, %v2665
      %v2671 = vrot.slane %v2670, 4
      %v2673 = vshll.u32 %v2376, 16
      %v2675 = vrot.slane %v2673, 5
      %v2676 = vsel %vm603, %v2671, %v2675
      %v2678 = vshrl.u32 %v2377, 16
      %v2680 = vrot.slane %v2678, 4
      %v2681 = vshll.u32 %v2377, 16
      %v2683 = vrot.slane %v2681, 5
      %v2684 = vor.u32 %v2680, %v2683
      %v2685 = vrot.slane %v2684, 4
      %v2687 = vshll.u32 %v2378, 16
      %v2689 = vrot.slane %v2687, 5
      %v2690 = vsel %vm603, %v2685, %v2689
      %v2691 = vshrl.u32 %v2378, 16
      %v2693 = vrot.slane %v2691, 4
      %v2694 = vor.u32 %v2693, %v2689
      %v2695 = vrot.slane %v2694, 4
      %v2697 = vshll.u32 %v2379, 16
      %v2699 = vrot.slane %v2697, 5
      %v2700 = vsel %vm603, %v2695, %v2699
      %v2702 = vshrl.u32 %v2380, 16
      %v2704 = vrot.slane %v2702, 4
      %v2705 = vshll.u32 %v2380, 16
      %v2707 = vrot.slane %v2705, 5
      %v2708 = vor.u32 %v2704, %v2707
      %v2709 = vrot.slane %v2708, 4
      %v2711 = vshll.u32 %v2381, 16
      %v2713 = vrot.slane %v2711, 5
      %v2714 = vsel %vm603, %v2709, %v2713
      %v2715 = vshrl.u32 %v2381, 16
      %v2717 = vrot.slane %v2715, 4
      %v2718 = vor.u32 %v2717, %v2713
      %v2719 = vrot.slane %v2718, 4
      %v2721 = vshll.u32 %v2382, 16
      %v2723 = vrot.slane %v2721, 5
      %v2724 = vsel %vm603, %v2719, %v2723
      %v2726 = vshrl.u32 %v2383, 16
      %v2728 = vrot.slane %v2726, 4
      %v2729 = vshll.u32 %v2383, 16
      %v2731 = vrot.slane %v2729, 5
      %v2732 = vor.u32 %v2728, %v2731
      %v2733 = vrot.slane %v2732, 4
      %v2735 = vshll.u32 %v2384, 16
      %v2737 = vrot.slane %v2735, 5
      %v2738 = vsel %vm603, %v2733, %v2737
      %v2739 = vshrl.u32 %v2384, 16
      %v2741 = vrot.slane %v2739, 4
      %v2742 = vor.u32 %v2741, %v2737
      %v2743 = vrot.slane %v2742, 4
      %v2745 = vshll.u32 %v2385, 16
      %v2747 = vrot.slane %v2745, 5
      %v2748 = vsel %vm603, %v2743, %v2747
      %v2750 = vshrl.u32 %v2386, 16
      %v2752 = vrot.slane %v2750, 4
      %v2753 = vshll.u32 %v2386, 16
      %v2755 = vrot.slane %v2753, 5
      %v2756 = vor.u32 %v2752, %v2755
      %v2757 = vrot.slane %v2756, 4
      %v2759 = vshll.u32 %v2387, 16
      %v2761 = vrot.slane %v2759, 5
      %v2762 = vsel %vm603, %v2757, %v2761
      %v2763 = vshrl.u32 %v2387, 16
      %v2765 = vrot.slane %v2763, 4
      %v2766 = vor.u32 %v2765, %v2761
      %v2767 = vrot.slane %v2766, 4
      %v2769 = vshll.u32 %v2388, 16
      %v2771 = vrot.slane %v2769, 5
      %v2772 = vsel %vm603, %v2767, %v2771
      %s2773 = scalar_lea.vmem %s1, 8
      %v2774 = vld [vmem:[%s2773] sm:$0x3]
      %v2775 = vunpack.c.l.b16 %v2402
      %v2776 = vunpack.c.l.b16 %v2412
      %v2777 = vunpack.c.l.b16 %v2426
      %v2778 = vunpack.c.l.b16 %v2436
      %v2779 = vunpack.c.l.b16 %v2450
      %v2780 = vunpack.c.l.b16 %v2460
      %v2781 = vunpack.c.l.b16 %v2474
      %v2782 = vunpack.c.l.b16 %v2484
      %v2783 = vunpack.c.l.b16 %v2498
      %v2784 = vunpack.c.l.b16 %v2508
      %v2785 = vunpack.c.l.b16 %v2522
      %v2786 = vunpack.c.l.b16 %v2532
      %v2787 = vunpack.c.l.b16 %v2546
      %v2788 = vunpack.c.l.b16 %v2556
      %v2789 = vunpack.c.l.b16 %v2570
      %v2790 = vunpack.c.l.b16 %v2580
      %v2791 = vunpack.c.l.b16 %v2594
      %v2792 = vunpack.c.l.b16 %v2604
      %v2793 = vunpack.c.l.b16 %v2618
      %v2794 = vunpack.c.l.b16 %v2628
      %v2795 = vunpack.c.l.b16 %v2642
      %v2796 = vunpack.c.l.b16 %v2652
      %v2797 = vunpack.c.l.b16 %v2666
      %v2798 = vunpack.c.l.b16 %v2676
      %v2799 = vunpack.c.l.b16 %v2690
      %v2800 = vunpack.c.l.b16 %v2700
      %v2801 = vunpack.c.l.b16 %v2714
      %v2802 = vunpack.c.l.b16 %v2724
      %v2803 = vunpack.c.l.b16 %v2738
      %v2804 = vunpack.c.l.b16 %v2748
      %v2805 = vunpack.c.l.b16 %v2762
      %v2806 = vunpack.c.l.b16 %v2772
      %v2807 = vpack.c.b16 %v2776, %v2775
      %v2808 = vpack.c.b16 %v2778, %v2777
      %v2809 = vpack.c.b16 %v2780, %v2779
      %v2810 = vpack.c.b16 %v2782, %v2781
      %v2811 = vpack.c.b16 %v2784, %v2783
      %v2812 = vpack.c.b16 %v2786, %v2785
      %v2813 = vpack.c.b16 %v2788, %v2787
      %v2814 = vpack.c.b16 %v2790, %v2789
      %v2815 = vpack.c.b16 %v2792, %v2791
      %v2816 = vpack.c.b16 %v2794, %v2793
      %v2817 = vpack.c.b16 %v2796, %v2795
      %v2818 = vpack.c.b16 %v2798, %v2797
      %v2819 = vpack.c.b16 %v2800, %v2799
      %v2820 = vpack.c.b16 %v2802, %v2801
      %v2821 = vpack.c.b16 %v2804, %v2803
      %v2822 = vpack.c.b16 %v2806, %v2805
      %v2824 = vsel %vm307, %v2807, 0
      %v2827 = vsel %vm307, %v2808, 0
      %v2830 = vsel %vm307, %v2809, 0
      %v2833 = vsel %vm307, %v2810, 0
      %v2836 = vsel %vm307, %v2811, 0
      %v2839 = vsel %vm307, %v2812, 0
      %v2842 = vsel %vm307, %v2813, 0
      %v2845 = vsel %vm307, %v2814, 0
      %v2848 = vsel %vm307, %v2815, 0
      %v2851 = vsel %vm307, %v2816, 0
      %v2854 = vsel %vm307, %v2817, 0
      %v2857 = vsel %vm307, %v2818, 0
      %v2860 = vsel %vm307, %v2819, 0
      %v2863 = vsel %vm307, %v2820, 0
      %v2866 = vsel %vm307, %v2821, 0
      %v2869 = vsel %vm307, %v2822, 0
      %v2872 = vsel %vm356, %v2774, 0
      %2874 = vmatprep.subr.bf16.mxu0 0
      %2875 = vmatpush1.bf16.msra.mxu0 0
      %2876 = vmatprep.subr.bf16.mxu0 0
      %2877 = vmatpush1.bf16.msra.mxu0 0
      %2878 = vmatprep.subr.bf16.mxu0 0
      %2879 = vmatpush1.bf16.msra.mxu0 0
      %2880 = vmatprep.subr.bf16.mxu0 0
      %2881 = vmatpush1.bf16.msra.mxu0 0
      %2882 = vmatprep.subr.bf16.mxu0 0
      %2883 = vmatpush1.bf16.msra.mxu0 0
      %2884 = vmatprep.subr.bf16.mxu0 0
      %2885 = vmatpush1.bf16.msra.mxu0 0
      %2886 = vmatprep.subr.bf16.mxu0 0
      %2887 = vmatpush1.bf16.msra.mxu0 0
      %2888 = vmatprep.subr.bf16.mxu0 0
      %2889 = vmatpush1.bf16.msra.mxu0 %v2872
      %2890 = vmatprep.subr.bf16.mxu0 0
      %2891 = vmatpush2.bf16.msra.mxu0 0
      %2892 = vmatprep.subr.bf16.mxu0 0
      %2893 = vmatpush2.bf16.msra.mxu0 0
      %2894 = vmatprep.subr.bf16.mxu0 0
      %2895 = vmatpush2.bf16.msra.mxu0 0
      %2896 = vmatprep.subr.bf16.mxu0 0
      %2897 = vmatpush2.bf16.msra.mxu0 0
      %2898 = vmatprep.subr.bf16.mxu0 0
      %2899 = vmatpush2.bf16.msra.mxu0 0
      %2900 = vmatprep.subr.bf16.mxu0 0
      %2901 = vmatpush2.bf16.msra.mxu0 0
      %2902 = vmatprep.subr.bf16.mxu0 0
      %2903 = vmatpush2.bf16.msra.mxu0 0
      %2904 = vmatprep.subr.bf16.mxu0 0
      %2905 = vmatpush2.bf16.msra.mxu0 0
      %2906 = vmatprep.mubr.bf16.mxu0 0
      %2907 = vmatmul.mubr.bf16.gmra.mxu0 %v2824
      %v2908 = vpop.f32.mrf.mxu0
      %v2909 = vadd.f32 0.0, %v2908
      %v2910 = vpop.f32.mrf.mxu0
      %v2911 = vpop.f32.mrf.mxu0
      %v2912 = vadd.f32 0.0, %v2911
      %v2913 = vpop.f32.mrf.mxu0
      %2914 = vmatprep.mubr.bf16.mxu0 0
      %2915 = vmatmul.mubr.bf16.gmra.mxu0 %v2827
      %v2916 = vpop.f32.mrf.mxu0
      %v2917 = vadd.f32 0.0, %v2916
      %v2918 = vpop.f32.mrf.mxu0
      %v2919 = vpop.f32.mrf.mxu0
      %v2920 = vadd.f32 0.0, %v2919
      %v2921 = vpop.f32.mrf.mxu0
      %2922 = vmatprep.mubr.bf16.mxu0 0
      %2923 = vmatmul.mubr.bf16.gmra.mxu0 %v2830
      %v2924 = vpop.f32.mrf.mxu0
      %v2925 = vadd.f32 0.0, %v2924
      %v2926 = vpop.f32.mrf.mxu0
      %v2927 = vpop.f32.mrf.mxu0
      %v2928 = vadd.f32 0.0, %v2927
      %v2929 = vpop.f32.mrf.mxu0
      %2930 = vmatprep.mubr.bf16.mxu0 0
      %2931 = vmatmul.mubr.bf16.gmra.mxu0 %v2833
      %v2932 = vpop.f32.mrf.mxu0
      %v2933 = vadd.f32 0.0, %v2932
      %v2934 = vpop.f32.mrf.mxu0
      %v2935 = vpop.f32.mrf.mxu0
      %v2936 = vadd.f32 0.0, %v2935
      %v2937 = vpop.f32.mrf.mxu0
      %2938 = vmatprep.mubr.bf16.mxu0 0
      %2939 = vmatmul.mubr.bf16.gmra.mxu0 %v2836
      %v2940 = vpop.f32.mrf.mxu0
      %v2941 = vadd.f32 0.0, %v2940
      %v2942 = vpop.f32.mrf.mxu0
      %v2943 = vpop.f32.mrf.mxu0
      %v2944 = vadd.f32 0.0, %v2943
      %v2945 = vpop.f32.mrf.mxu0
      %2946 = vmatprep.mubr.bf16.mxu0 0
      %2947 = vmatmul.mubr.bf16.gmra.mxu0 %v2839
      %v2948 = vpop.f32.mrf.mxu0
      %v2949 = vadd.f32 0.0, %v2948
      %v2950 = vpop.f32.mrf.mxu0
      %v2951 = vpop.f32.mrf.mxu0
      %v2952 = vadd.f32 0.0, %v2951
      %v2953 = vpop.f32.mrf.mxu0
      %2954 = vmatprep.mubr.bf16.mxu0 0
      %2955 = vmatmul.mubr.bf16.gmra.mxu0 %v2842
      %v2956 = vpop.f32.mrf.mxu0
      %v2957 = vadd.f32 0.0, %v2956
      %v2958 = vpop.f32.mrf.mxu0
      %v2959 = vpop.f32.mrf.mxu0
      %v2960 = vadd.f32 0.0, %v2959
      %v2961 = vpop.f32.mrf.mxu0
      %2962 = vmatprep.mubr.bf16.mxu0 0
      %2963 = vmatmul.mubr.bf16.gmra.mxu0 %v2845
      %v2964 = vpop.f32.mrf.mxu0
      %v2965 = vadd.f32 0.0, %v2964
      %v2966 = vpop.f32.mrf.mxu0
      %v2967 = vpop.f32.mrf.mxu0
      %v2968 = vadd.f32 0.0, %v2967
      %v2969 = vpop.f32.mrf.mxu0
      %2970 = vmatprep.mubr.bf16.mxu0 0
      %2971 = vmatmul.mubr.bf16.gmra.mxu0 %v2848
      %v2972 = vpop.f32.mrf.mxu0
      %v2973 = vadd.f32 0.0, %v2972
      %v2974 = vpop.f32.mrf.mxu0
      %v2975 = vpop.f32.mrf.mxu0
      %v2976 = vadd.f32 0.0, %v2975
      %v2977 = vpop.f32.mrf.mxu0
      %2978 = vmatprep.mubr.bf16.mxu0 0
      %2979 = vmatmul.mubr.bf16.gmra.mxu0 %v2851
      %v2980 = vpop.f32.mrf.mxu0
      %v2981 = vadd.f32 0.0, %v2980
      %v2982 = vpop.f32.mrf.mxu0
      %v2983 = vpop.f32.mrf.mxu0
      %v2984 = vadd.f32 0.0, %v2983
      %v2985 = vpop.f32.mrf.mxu0
      %2986 = vmatprep.mubr.bf16.mxu0 0
      %2987 = vmatmul.mubr.bf16.gmra.mxu0 %v2854
      %v2988 = vpop.f32.mrf.mxu0
      %v2989 = vadd.f32 0.0, %v2988
      %v2990 = vpop.f32.mrf.mxu0
      %v2991 = vpop.f32.mrf.mxu0
      %v2992 = vadd.f32 0.0, %v2991
      %v2993 = vpop.f32.mrf.mxu0
      %2994 = vmatprep.mubr.bf16.mxu0 0
      %2995 = vmatmul.mubr.bf16.gmra.mxu0 %v2857
      %v2996 = vpop.f32.mrf.mxu0
      %v2997 = vadd.f32 0.0, %v2996
      %v2998 = vpop.f32.mrf.mxu0
      %v2999 = vpop.f32.mrf.mxu0
      %v3000 = vadd.f32 0.0, %v2999
      %v3001 = vpop.f32.mrf.mxu0
      %3002 = vmatprep.mubr.bf16.mxu0 0
      %3003 = vmatmul.mubr.bf16.gmra.mxu0 %v2860
      %v3004 = vpop.f32.mrf.mxu0
      %v3005 = vadd.f32 0.0, %v3004
      %v3006 = vpop.f32.mrf.mxu0
      %v3007 = vpop.f32.mrf.mxu0
      %v3008 = vadd.f32 0.0, %v3007
      %v3009 = vpop.f32.mrf.mxu0
      %3010 = vmatprep.mubr.bf16.mxu0 0
      %3011 = vmatmul.mubr.bf16.gmra.mxu0 %v2863
      %v3012 = vpop.f32.mrf.mxu0
      %v3013 = vadd.f32 0.0, %v3012
      %v3014 = vpop.f32.mrf.mxu0
      %v3015 = vpop.f32.mrf.mxu0
      %v3016 = vadd.f32 0.0, %v3015
      %v3017 = vpop.f32.mrf.mxu0
      %3018 = vmatprep.mubr.bf16.mxu0 0
      %3019 = vmatmul.mubr.bf16.gmra.mxu0 %v2866
      %v3020 = vpop.f32.mrf.mxu0
      %v3021 = vadd.f32 0.0, %v3020
      %v3022 = vpop.f32.mrf.mxu0
      %v3023 = vpop.f32.mrf.mxu0
      %v3024 = vadd.f32 0.0, %v3023
      %v3025 = vpop.f32.mrf.mxu0
      %3026 = vmatprep.mubr.bf16.mxu0 0
      %3027 = vmatmul.mubr.bf16.gmra.mxu0 %v2869
      %v3028 = vpop.f32.mrf.mxu0
      %v3029 = vadd.f32 0.0, %v3028
      %v3030 = vpop.f32.mrf.mxu0
      %v3031 = vpop.f32.mrf.mxu0
      %v3032 = vadd.f32 0.0, %v3031
      %v3033 = vpop.f32.mrf.mxu0
      %3034 = vdwg.mxu0
      %v3035 = vld [vmem:[#allocation2] sm:$0xff]
      %v3036 = vld [vmem:[#allocation2 + $0x8] sm:$0xff]
      %v3037 = vld [vmem:[#allocation2 + $0x10] sm:$0xff]
      %v3038 = vld [vmem:[#allocation2 + $0x18] sm:$0xff]
      %v3039 = vld [vmem:[#allocation2 + $0x20] sm:$0xff]
      %v3040 = vld [vmem:[#allocation2 + $0x28] sm:$0xff]
      %v3041 = vld [vmem:[#allocation2 + $0x30] sm:$0xff]
      %v3042 = vld [vmem:[#allocation2 + $0x38] sm:$0xff]
      %v3043 = vld [vmem:[#allocation2 + $0x40] sm:$0xff]
      %v3044 = vld [vmem:[#allocation2 + $0x48] sm:$0xff]
      %v3045 = vld [vmem:[#allocation2 + $0x50] sm:$0xff]
      %v3046 = vld [vmem:[#allocation2 + $0x58] sm:$0xff]
      %v3047 = vld [vmem:[#allocation2 + $0x60] sm:$0xff]
      %v3048 = vld [vmem:[#allocation2 + $0x68] sm:$0xff]
      %v3049 = vld [vmem:[#allocation2 + $0x70] sm:$0xff]
      %v3050 = vld [vmem:[#allocation2 + $0x78] sm:$0xff]
      %v3051 = vld [vmem:[#allocation2 + $0x80] sm:$0xff]
      %v3052 = vld [vmem:[#allocation2 + $0x88] sm:$0xff]
      %v3053 = vld [vmem:[#allocation2 + $0x90] sm:$0xff]
      %v3054 = vld [vmem:[#allocation2 + $0x98] sm:$0xff]
      %v3055 = vld [vmem:[#allocation2 + $0xa0] sm:$0xff]
      %v3056 = vld [vmem:[#allocation2 + $0xa8] sm:$0xff]
      %v3057 = vld [vmem:[#allocation2 + $0xb0] sm:$0xff]
      %v3058 = vld [vmem:[#allocation2 + $0xb8] sm:$0xff]
      %v3059 = vld [vmem:[#allocation2 + $0xc0] sm:$0xff]
      %v3060 = vld [vmem:[#allocation2 + $0xc8] sm:$0xff]
      %v3061 = vld [vmem:[#allocation2 + $0xd0] sm:$0xff]
      %v3062 = vld [vmem:[#allocation2 + $0xd8] sm:$0xff]
      %v3063 = vld [vmem:[#allocation2 + $0xe0] sm:$0xff]
      %v3064 = vld [vmem:[#allocation2 + $0xe8] sm:$0xff]
      %v3065 = vld [vmem:[#allocation2 + $0xf0] sm:$0xff]
      %v3066 = vld [vmem:[#allocation2 + $0xf8] sm:$0xff]
      %v3067 = vadd.f32 %v3035, %v2909
      %v3068 = vadd.f32 %v3036, %v2912
      %v3069 = vadd.f32 %v3037, %v2917
      %v3070 = vadd.f32 %v3038, %v2920
      %v3071 = vadd.f32 %v3039, %v2925
      %v3072 = vadd.f32 %v3040, %v2928
      %v3073 = vadd.f32 %v3041, %v2933
      %v3074 = vadd.f32 %v3042, %v2936
      %v3075 = vadd.f32 %v3043, %v2941
      %v3076 = vadd.f32 %v3044, %v2944
      %v3077 = vadd.f32 %v3045, %v2949
      %v3078 = vadd.f32 %v3046, %v2952
      %v3079 = vadd.f32 %v3047, %v2957
      %v3080 = vadd.f32 %v3048, %v2960
      %v3081 = vadd.f32 %v3049, %v2965
      %v3082 = vadd.f32 %v3050, %v2968
      %v3083 = vadd.f32 %v3051, %v2973
      %v3084 = vadd.f32 %v3052, %v2976
      %v3085 = vadd.f32 %v3053, %v2981
      %v3086 = vadd.f32 %v3054, %v2984
      %v3087 = vadd.f32 %v3055, %v2989
      %v3088 = vadd.f32 %v3056, %v2992
      %v3089 = vadd.f32 %v3057, %v2997
      %v3090 = vadd.f32 %v3058, %v3000
      %v3091 = vadd.f32 %v3059, %v3005
      %v3092 = vadd.f32 %v3060, %v3008
      %v3093 = vadd.f32 %v3061, %v3013
      %v3094 = vadd.f32 %v3062, %v3016
      %v3095 = vadd.f32 %v3063, %v3021
      %v3096 = vadd.f32 %v3064, %v3024
      %v3097 = vadd.f32 %v3065, %v3029
      %v3098 = vadd.f32 %v3066, %v3032
      %3099 = vst [vmem:[#allocation2] sm:$0xff] %v3067
      %3100 = vst [vmem:[#allocation2 + $0x8] sm:$0xff] %v3068
      %3101 = vst [vmem:[#allocation2 + $0x10] sm:$0xff] %v3069
      %3102 = vst [vmem:[#allocation2 + $0x18] sm:$0xff] %v3070
      %3103 = vst [vmem:[#allocation2 + $0x20] sm:$0xff] %v3071
      %3104 = vst [vmem:[#allocation2 + $0x28] sm:$0xff] %v3072
      %3105 = vst [vmem:[#allocation2 + $0x30] sm:$0xff] %v3073
      %3106 = vst [vmem:[#allocation2 + $0x38] sm:$0xff] %v3074
      %3107 = vst [vmem:[#allocation2 + $0x40] sm:$0xff] %v3075
      %3108 = vst [vmem:[#allocation2 + $0x48] sm:$0xff] %v3076
      %3109 = vst [vmem:[#allocation2 + $0x50] sm:$0xff] %v3077
      %3110 = vst [vmem:[#allocation2 + $0x58] sm:$0xff] %v3078
      %3111 = vst [vmem:[#allocation2 + $0x60] sm:$0xff] %v3079
      %3112 = vst [vmem:[#allocation2 + $0x68] sm:$0xff] %v3080
      %3113 = vst [vmem:[#allocation2 + $0x70] sm:$0xff] %v3081
      %3114 = vst [vmem:[#allocation2 + $0x78] sm:$0xff] %v3082
      %3115 = vst [vmem:[#allocation2 + $0x80] sm:$0xff] %v3083
      %3116 = vst [vmem:[#allocation2 + $0x88] sm:$0xff] %v3084
      %3117 = vst [vmem:[#allocation2 + $0x90] sm:$0xff] %v3085
      %3118 = vst [vmem:[#allocation2 + $0x98] sm:$0xff] %v3086
      %3119 = vst [vmem:[#allocation2 + $0xa0] sm:$0xff] %v3087
      %3120 = vst [vmem:[#allocation2 + $0xa8] sm:$0xff] %v3088
      %3121 = vst [vmem:[#allocation2 + $0xb0] sm:$0xff] %v3089
      %3122 = vst [vmem:[#allocation2 + $0xb8] sm:$0xff] %v3090
      %3123 = vst [vmem:[#allocation2 + $0xc0] sm:$0xff] %v3091
      %3124 = vst [vmem:[#allocation2 + $0xc8] sm:$0xff] %v3092
      %3125 = vst [vmem:[#allocation2 + $0xd0] sm:$0xff] %v3093
      %3126 = vst [vmem:[#allocation2 + $0xd8] sm:$0xff] %v3094
      %3127 = vst [vmem:[#allocation2 + $0xe0] sm:$0xff] %v3095
      %3128 = vst [vmem:[#allocation2 + $0xe8] sm:$0xff] %v3096
      %3129 = vst [vmem:[#allocation2 + $0xf0] sm:$0xff] %v3097
      %3130 = vst [vmem:[#allocation2 + $0xf8] sm:$0xff] %v3098
      %v3131 = vld [vmem:[%s1918] sm:$0xe]
      %v3132 = vld [vmem:[%s1918 + $0x4] sm:$0xf]
      %v3133 = vld [vmem:[%s1918 + $0x8] sm:$0x1]
      %v3134 = vld [vmem:[%s1918 + $0xc] sm:$0xe]
      %v3135 = vld [vmem:[%s1918 + $0x10] sm:$0xf]
      %v3136 = vld [vmem:[%s1918 + $0x14] sm:$0x1]
      %v3137 = vld [vmem:[%s1918 + $0x18] sm:$0xe]
      %v3138 = vld [vmem:[%s1918 + $0x1c] sm:$0xf]
      %v3139 = vld [vmem:[%s1918 + $0x20] sm:$0x1]
      %v3140 = vld [vmem:[%s1918 + $0x24] sm:$0xe]
      %v3141 = vld [vmem:[%s1918 + $0x28] sm:$0xf]
      %v3142 = vld [vmem:[%s1918 + $0x2c] sm:$0x1]
      %v3143 = vld [vmem:[%s1918 + $0x30] sm:$0xe]
      %v3144 = vld [vmem:[%s1918 + $0x34] sm:$0xf]
      %v3145 = vld [vmem:[%s1918 + $0x38] sm:$0x1]
      %v3146 = vld [vmem:[%s1918 + $0x3c] sm:$0xe]
      %v3147 = vld [vmem:[%s1918 + $0x40] sm:$0xf]
      %v3148 = vld [vmem:[%s1918 + $0x44] sm:$0x1]
      %v3149 = vld [vmem:[%s1918 + $0x48] sm:$0xe]
      %v3150 = vld [vmem:[%s1918 + $0x4c] sm:$0xf]
      %v3151 = vld [vmem:[%s1918 + $0x50] sm:$0x1]
      %v3152 = vld [vmem:[%s1918 + $0x54] sm:$0xe]
      %v3153 = vld [vmem:[%s1918 + $0x58] sm:$0xf]
      %v3154 = vld [vmem:[%s1918 + $0x5c] sm:$0x1]
      %v3155 = vld [vmem:[%s1918 + $0x60] sm:$0xe]
      %v3156 = vld [vmem:[%s1918 + $0x64] sm:$0xf]
      %v3157 = vld [vmem:[%s1918 + $0x68] sm:$0x1]
      %v3158 = vld [vmem:[%s1918 + $0x6c] sm:$0xe]
      %v3159 = vld [vmem:[%s1918 + $0x70] sm:$0xf]
      %v3160 = vld [vmem:[%s1918 + $0x74] sm:$0x1]
      %v3161 = vld [vmem:[%s1918 + $0x78] sm:$0xe]
      %v3162 = vld [vmem:[%s1918 + $0x7c] sm:$0xf]
      %v3163 = vld [vmem:[%s1918 + $0x80] sm:$0x1]
      %v3164 = vld [vmem:[%s1918 + $0x84] sm:$0xe]
      %v3165 = vld [vmem:[%s1918 + $0x88] sm:$0xf]
      %v3166 = vld [vmem:[%s1918 + $0x8c] sm:$0x1]
      %v3167 = vld [vmem:[%s1918 + $0x90] sm:$0xe]
      %v3168 = vld [vmem:[%s1918 + $0x94] sm:$0xf]
      %v3169 = vld [vmem:[%s1918 + $0x98] sm:$0x1]
      %v3170 = vld [vmem:[%s1918 + $0x9c] sm:$0xe]
      %v3171 = vld [vmem:[%s1918 + $0xa0] sm:$0xf]
      %v3172 = vld [vmem:[%s1918 + $0xa4] sm:$0x1]
      %v3173 = vld [vmem:[%s1918 + $0xa8] sm:$0xe]
      %v3174 = vld [vmem:[%s1918 + $0xac] sm:$0xf]
      %v3175 = vld [vmem:[%s1918 + $0xb0] sm:$0x1]
      %v3176 = vld [vmem:[%s1918 + $0xb4] sm:$0xe]
      %v3177 = vld [vmem:[%s1918 + $0xb8] sm:$0xf]
      %v3178 = vld [vmem:[%s1918 + $0xbc] sm:$0x1]
      %v3227 = vrot.slane %v3131, 5
      %v3228 = vrot.slane %v3227, 4
      %v3229 = vrot.slane %v3132, 5
      %v3230 = vsel %vm1444, %v3228, %v3229
      %v3231 = vrot.slane %v3229, 4
      %v3232 = vrot.slane %v3133, 5
      %v3233 = vsel %vm1444, %v3231, %v3232
      %v3234 = vrot.slane %v3134, 5
      %v3235 = vrot.slane %v3234, 4
      %v3236 = vrot.slane %v3135, 5
      %v3237 = vsel %vm1444, %v3235, %v3236
      %v3238 = vrot.slane %v3236, 4
      %v3239 = vrot.slane %v3136, 5
      %v3240 = vsel %vm1444, %v3238, %v3239
      %v3241 = vrot.slane %v3137, 5
      %v3242 = vrot.slane %v3241, 4
      %v3243 = vrot.slane %v3138, 5
      %v3244 = vsel %vm1444, %v3242, %v3243
      %v3245 = vrot.slane %v3243, 4
      %v3246 = vrot.slane %v3139, 5
      %v3247 = vsel %vm1444, %v3245, %v3246
      %v3248 = vrot.slane %v3140, 5
      %v3249 = vrot.slane %v3248, 4
      %v3250 = vrot.slane %v3141, 5
      %v3251 = vsel %vm1444, %v3249, %v3250
      %v3252 = vrot.slane %v3250, 4
      %v3253 = vrot.slane %v3142, 5
      %v3254 = vsel %vm1444, %v3252, %v3253
      %v3255 = vrot.slane %v3143, 5
      %v3256 = vrot.slane %v3255, 4
      %v3257 = vrot.slane %v3144, 5
      %v3258 = vsel %vm1444, %v3256, %v3257
      %v3259 = vrot.slane %v3257, 4
      %v3260 = vrot.slane %v3145, 5
      %v3261 = vsel %vm1444, %v3259, %v3260
      %v3262 = vrot.slane %v3146, 5
      %v3263 = vrot.slane %v3262, 4
      %v3264 = vrot.slane %v3147, 5
      %v3265 = vsel %vm1444, %v3263, %v3264
      %v3266 = vrot.slane %v3264, 4
      %v3267 = vrot.slane %v3148, 5
      %v3268 = vsel %vm1444, %v3266, %v3267
      %v3269 = vrot.slane %v3149, 5
      %v3270 = vrot.slane %v3269, 4
      %v3271 = vrot.slane %v3150, 5
      %v3272 = vsel %vm1444, %v3270, %v3271
      %v3273 = vrot.slane %v3271, 4
      %v3274 = vrot.slane %v3151, 5
      %v3275 = vsel %vm1444, %v3273, %v3274
      %v3276 = vrot.slane %v3152, 5
      %v3277 = vrot.slane %v3276, 4
      %v3278 = vrot.slane %v3153, 5
      %v3279 = vsel %vm1444, %v3277, %v3278
      %v3280 = vrot.slane %v3278, 4
      %v3281 = vrot.slane %v3154, 5
      %v3282 = vsel %vm1444, %v3280, %v3281
      %v3283 = vrot.slane %v3155, 5
      %v3284 = vrot.slane %v3283, 4
      %v3285 = vrot.slane %v3156, 5
      %v3286 = vsel %vm1444, %v3284, %v3285
      %v3287 = vrot.slane %v3285, 4
      %v3288 = vrot.slane %v3157, 5
      %v3289 = vsel %vm1444, %v3287, %v3288
      %v3290 = vrot.slane %v3158, 5
      %v3291 = vrot.slane %v3290, 4
      %v3292 = vrot.slane %v3159, 5
      %v3293 = vsel %vm1444, %v3291, %v3292
      %v3294 = vrot.slane %v3292, 4
      %v3295 = vrot.slane %v3160, 5
      %v3296 = vsel %vm1444, %v3294, %v3295
      %v3297 = vrot.slane %v3161, 5
      %v3298 = vrot.slane %v3297, 4
      %v3299 = vrot.slane %v3162, 5
      %v3300 = vsel %vm1444, %v3298, %v3299
      %v3301 = vrot.slane %v3299, 4
      %v3302 = vrot.slane %v3163, 5
      %v3303 = vsel %vm1444, %v3301, %v3302
      %v3304 = vrot.slane %v3164, 5
      %v3305 = vrot.slane %v3304, 4
      %v3306 = vrot.slane %v3165, 5
      %v3307 = vsel %vm1444, %v3305, %v3306
      %v3308 = vrot.slane %v3306, 4
      %v3309 = vrot.slane %v3166, 5
      %v3310 = vsel %vm1444, %v3308, %v3309
      %v3311 = vrot.slane %v3167, 5
      %v3312 = vrot.slane %v3311, 4
      %v3313 = vrot.slane %v3168, 5
      %v3314 = vsel %vm1444, %v3312, %v3313
      %v3315 = vrot.slane %v3313, 4
      %v3316 = vrot.slane %v3169, 5
      %v3317 = vsel %vm1444, %v3315, %v3316
      %v3318 = vrot.slane %v3170, 5
      %v3319 = vrot.slane %v3318, 4
      %v3320 = vrot.slane %v3171, 5
      %v3321 = vsel %vm1444, %v3319, %v3320
      %v3322 = vrot.slane %v3320, 4
      %v3323 = vrot.slane %v3172, 5
      %v3324 = vsel %vm1444, %v3322, %v3323
      %v3325 = vrot.slane %v3173, 5
      %v3326 = vrot.slane %v3325, 4
      %v3327 = vrot.slane %v3174, 5
      %v3328 = vsel %vm1444, %v3326, %v3327
      %v3329 = vrot.slane %v3327, 4
      %v3330 = vrot.slane %v3175, 5
      %v3331 = vsel %vm1444, %v3329, %v3330
      %v3332 = vrot.slane %v3176, 5
      %v3333 = vrot.slane %v3332, 4
      %v3334 = vrot.slane %v3177, 5
      %v3335 = vsel %vm1444, %v3333, %v3334
      %v3336 = vrot.slane %v3334, 4
      %v3337 = vrot.slane %v3178, 5
      %v3338 = vsel %vm1444, %v3336, %v3337
      %s3339 = scalar_lea.vmem %s1, 10
      %v3340 = vld [vmem:[%s3339] sm:$0x3]
      %v3341 = vunpack.c.l.b16 %v3230
      %v3342 = vunpack.c.l.b16 %v3233
      %v3343 = vunpack.c.l.b16 %v3237
      %v3344 = vunpack.c.l.b16 %v3240
      %v3345 = vunpack.c.l.b16 %v3244
      %v3346 = vunpack.c.l.b16 %v3247
      %v3347 = vunpack.c.l.b16 %v3251
      %v3348 = vunpack.c.l.b16 %v3254
      %v3349 = vunpack.c.l.b16 %v3258
      %v3350 = vunpack.c.l.b16 %v3261
      %v3351 = vunpack.c.l.b16 %v3265
      %v3352 = vunpack.c.l.b16 %v3268
      %v3353 = vunpack.c.l.b16 %v3272
      %v3354 = vunpack.c.l.b16 %v3275
      %v3355 = vunpack.c.l.b16 %v3279
      %v3356 = vunpack.c.l.b16 %v3282
      %v3357 = vunpack.c.l.b16 %v3286
      %v3358 = vunpack.c.l.b16 %v3289
      %v3359 = vunpack.c.l.b16 %v3293
      %v3360 = vunpack.c.l.b16 %v3296
      %v3361 = vunpack.c.l.b16 %v3300
      %v3362 = vunpack.c.l.b16 %v3303
      %v3363 = vunpack.c.l.b16 %v3307
      %v3364 = vunpack.c.l.b16 %v3310
      %v3365 = vunpack.c.l.b16 %v3314
      %v3366 = vunpack.c.l.b16 %v3317
      %v3367 = vunpack.c.l.b16 %v3321
      %v3368 = vunpack.c.l.b16 %v3324
      %v3369 = vunpack.c.l.b16 %v3328
      %v3370 = vunpack.c.l.b16 %v3331
      %v3371 = vunpack.c.l.b16 %v3335
      %v3372 = vunpack.c.l.b16 %v3338
      %v3373 = vpack.c.b16 %v3342, %v3341
      %v3374 = vpack.c.b16 %v3344, %v3343
      %v3375 = vpack.c.b16 %v3346, %v3345
      %v3376 = vpack.c.b16 %v3348, %v3347
      %v3377 = vpack.c.b16 %v3350, %v3349
      %v3378 = vpack.c.b16 %v3352, %v3351
      %v3379 = vpack.c.b16 %v3354, %v3353
      %v3380 = vpack.c.b16 %v3356, %v3355
      %v3381 = vpack.c.b16 %v3358, %v3357
      %v3382 = vpack.c.b16 %v3360, %v3359
      %v3383 = vpack.c.b16 %v3362, %v3361
      %v3384 = vpack.c.b16 %v3364, %v3363
      %v3385 = vpack.c.b16 %v3366, %v3365
      %v3386 = vpack.c.b16 %v3368, %v3367
      %v3387 = vpack.c.b16 %v3370, %v3369
      %v3388 = vpack.c.b16 %v3372, %v3371
      %v3390 = vsel %vm307, %v3373, 0
      %v3393 = vsel %vm307, %v3374, 0
      %v3396 = vsel %vm307, %v3375, 0
      %v3399 = vsel %vm307, %v3376, 0
      %v3402 = vsel %vm307, %v3377, 0
      %v3405 = vsel %vm307, %v3378, 0
      %v3408 = vsel %vm307, %v3379, 0
      %v3411 = vsel %vm307, %v3380, 0
      %v3414 = vsel %vm307, %v3381, 0
      %v3417 = vsel %vm307, %v3382, 0
      %v3420 = vsel %vm307, %v3383, 0
      %v3423 = vsel %vm307, %v3384, 0
      %v3426 = vsel %vm307, %v3385, 0
      %v3429 = vsel %vm307, %v3386, 0
      %v3432 = vsel %vm307, %v3387, 0
      %v3435 = vsel %vm307, %v3388, 0
      %v3438 = vsel %vm356, %v3340, 0
      %3440 = vmatprep.subr.bf16.mxu0 0
      %3441 = vmatpush1.bf16.msra.mxu0 0
      %3442 = vmatprep.subr.bf16.mxu0 0
      %3443 = vmatpush1.bf16.msra.mxu0 0
      %3444 = vmatprep.subr.bf16.mxu0 0
      %3445 = vmatpush1.bf16.msra.mxu0 0
      %3446 = vmatprep.subr.bf16.mxu0 0
      %3447 = vmatpush1.bf16.msra.mxu0 0
      %3448 = vmatprep.subr.bf16.mxu0 0
      %3449 = vmatpush1.bf16.msra.mxu0 0
      %3450 = vmatprep.subr.bf16.mxu0 0
      %3451 = vmatpush1.bf16.msra.mxu0 0
      %3452 = vmatprep.subr.bf16.mxu0 0
      %3453 = vmatpush1.bf16.msra.mxu0 0
      %3454 = vmatprep.subr.bf16.mxu0 0
      %3455 = vmatpush1.bf16.msra.mxu0 %v3438
      %3456 = vmatprep.subr.bf16.mxu0 0
      %3457 = vmatpush2.bf16.msra.mxu0 0
      %3458 = vmatprep.subr.bf16.mxu0 0
      %3459 = vmatpush2.bf16.msra.mxu0 0
      %3460 = vmatprep.subr.bf16.mxu0 0
      %3461 = vmatpush2.bf16.msra.mxu0 0
      %3462 = vmatprep.subr.bf16.mxu0 0
      %3463 = vmatpush2.bf16.msra.mxu0 0
      %3464 = vmatprep.subr.bf16.mxu0 0
      %3465 = vmatpush2.bf16.msra.mxu0 0
      %3466 = vmatprep.subr.bf16.mxu0 0
      %3467 = vmatpush2.bf16.msra.mxu0 0
      %3468 = vmatprep.subr.bf16.mxu0 0
      %3469 = vmatpush2.bf16.msra.mxu0 0
      %3470 = vmatprep.subr.bf16.mxu0 0
      %3471 = vmatpush2.bf16.msra.mxu0 0
      %3472 = vmatprep.mubr.bf16.mxu0 0
      %3473 = vmatmul.mubr.bf16.gmra.mxu0 %v3390
      %v3474 = vpop.f32.mrf.mxu0
      %v3475 = vadd.f32 0.0, %v3474
      %v3476 = vpop.f32.mrf.mxu0
      %v3477 = vpop.f32.mrf.mxu0
      %v3478 = vadd.f32 0.0, %v3477
      %v3479 = vpop.f32.mrf.mxu0
      %3480 = vmatprep.mubr.bf16.mxu0 0
      %3481 = vmatmul.mubr.bf16.gmra.mxu0 %v3393
      %v3482 = vpop.f32.mrf.mxu0
      %v3483 = vadd.f32 0.0, %v3482
      %v3484 = vpop.f32.mrf.mxu0
      %v3485 = vpop.f32.mrf.mxu0
      %v3486 = vadd.f32 0.0, %v3485
      %v3487 = vpop.f32.mrf.mxu0
      %3488 = vmatprep.mubr.bf16.mxu0 0
      %3489 = vmatmul.mubr.bf16.gmra.mxu0 %v3396
      %v3490 = vpop.f32.mrf.mxu0
      %v3491 = vadd.f32 0.0, %v3490
      %v3492 = vpop.f32.mrf.mxu0
      %v3493 = vpop.f32.mrf.mxu0
      %v3494 = vadd.f32 0.0, %v3493
      %v3495 = vpop.f32.mrf.mxu0
      %3496 = vmatprep.mubr.bf16.mxu0 0
      %3497 = vmatmul.mubr.bf16.gmra.mxu0 %v3399
      %v3498 = vpop.f32.mrf.mxu0
      %v3499 = vadd.f32 0.0, %v3498
      %v3500 = vpop.f32.mrf.mxu0
      %v3501 = vpop.f32.mrf.mxu0
      %v3502 = vadd.f32 0.0, %v3501
      %v3503 = vpop.f32.mrf.mxu0
      %3504 = vmatprep.mubr.bf16.mxu0 0
      %3505 = vmatmul.mubr.bf16.gmra.mxu0 %v3402
      %v3506 = vpop.f32.mrf.mxu0
      %v3507 = vadd.f32 0.0, %v3506
      %v3508 = vpop.f32.mrf.mxu0
      %v3509 = vpop.f32.mrf.mxu0
      %v3510 = vadd.f32 0.0, %v3509
      %v3511 = vpop.f32.mrf.mxu0
      %3512 = vmatprep.mubr.bf16.mxu0 0
      %3513 = vmatmul.mubr.bf16.gmra.mxu0 %v3405
      %v3514 = vpop.f32.mrf.mxu0
      %v3515 = vadd.f32 0.0, %v3514
      %v3516 = vpop.f32.mrf.mxu0
      %v3517 = vpop.f32.mrf.mxu0
      %v3518 = vadd.f32 0.0, %v3517
      %v3519 = vpop.f32.mrf.mxu0
      %3520 = vmatprep.mubr.bf16.mxu0 0
      %3521 = vmatmul.mubr.bf16.gmra.mxu0 %v3408
      %v3522 = vpop.f32.mrf.mxu0
      %v3523 = vadd.f32 0.0, %v3522
      %v3524 = vpop.f32.mrf.mxu0
      %v3525 = vpop.f32.mrf.mxu0
      %v3526 = vadd.f32 0.0, %v3525
      %v3527 = vpop.f32.mrf.mxu0
      %3528 = vmatprep.mubr.bf16.mxu0 0
      %3529 = vmatmul.mubr.bf16.gmra.mxu0 %v3411
      %v3530 = vpop.f32.mrf.mxu0
      %v3531 = vadd.f32 0.0, %v3530
      %v3532 = vpop.f32.mrf.mxu0
      %v3533 = vpop.f32.mrf.mxu0
      %v3534 = vadd.f32 0.0, %v3533
      %v3535 = vpop.f32.mrf.mxu0
      %3536 = vmatprep.mubr.bf16.mxu0 0
      %3537 = vmatmul.mubr.bf16.gmra.mxu0 %v3414
      %v3538 = vpop.f32.mrf.mxu0
      %v3539 = vadd.f32 0.0, %v3538
      %v3540 = vpop.f32.mrf.mxu0
      %v3541 = vpop.f32.mrf.mxu0
      %v3542 = vadd.f32 0.0, %v3541
      %v3543 = vpop.f32.mrf.mxu0
      %3544 = vmatprep.mubr.bf16.mxu0 0
      %3545 = vmatmul.mubr.bf16.gmra.mxu0 %v3417
      %v3546 = vpop.f32.mrf.mxu0
      %v3547 = vadd.f32 0.0, %v3546
      %v3548 = vpop.f32.mrf.mxu0
      %v3549 = vpop.f32.mrf.mxu0
      %v3550 = vadd.f32 0.0, %v3549
      %v3551 = vpop.f32.mrf.mxu0
      %3552 = vmatprep.mubr.bf16.mxu0 0
      %3553 = vmatmul.mubr.bf16.gmra.mxu0 %v3420
      %v3554 = vpop.f32.mrf.mxu0
      %v3555 = vadd.f32 0.0, %v3554
      %v3556 = vpop.f32.mrf.mxu0
      %v3557 = vpop.f32.mrf.mxu0
      %v3558 = vadd.f32 0.0, %v3557
      %v3559 = vpop.f32.mrf.mxu0
      %3560 = vmatprep.mubr.bf16.mxu0 0
      %3561 = vmatmul.mubr.bf16.gmra.mxu0 %v3423
      %v3562 = vpop.f32.mrf.mxu0
      %v3563 = vadd.f32 0.0, %v3562
      %v3564 = vpop.f32.mrf.mxu0
      %v3565 = vpop.f32.mrf.mxu0
      %v3566 = vadd.f32 0.0, %v3565
      %v3567 = vpop.f32.mrf.mxu0
      %3568 = vmatprep.mubr.bf16.mxu0 0
      %3569 = vmatmul.mubr.bf16.gmra.mxu0 %v3426
      %v3570 = vpop.f32.mrf.mxu0
      %v3571 = vadd.f32 0.0, %v3570
      %v3572 = vpop.f32.mrf.mxu0
      %v3573 = vpop.f32.mrf.mxu0
      %v3574 = vadd.f32 0.0, %v3573
      %v3575 = vpop.f32.mrf.mxu0
      %3576 = vmatprep.mubr.bf16.mxu0 0
      %3577 = vmatmul.mubr.bf16.gmra.mxu0 %v3429
      %v3578 = vpop.f32.mrf.mxu0
      %v3579 = vadd.f32 0.0, %v3578
      %v3580 = vpop.f32.mrf.mxu0
      %v3581 = vpop.f32.mrf.mxu0
      %v3582 = vadd.f32 0.0, %v3581
      %v3583 = vpop.f32.mrf.mxu0
      %3584 = vmatprep.mubr.bf16.mxu0 0
      %3585 = vmatmul.mubr.bf16.gmra.mxu0 %v3432
      %v3586 = vpop.f32.mrf.mxu0
      %v3587 = vadd.f32 0.0, %v3586
      %v3588 = vpop.f32.mrf.mxu0
      %v3589 = vpop.f32.mrf.mxu0
      %v3590 = vadd.f32 0.0, %v3589
      %v3591 = vpop.f32.mrf.mxu0
      %3592 = vmatprep.mubr.bf16.mxu0 0
      %3593 = vmatmul.mubr.bf16.gmra.mxu0 %v3435
      %v3594 = vpop.f32.mrf.mxu0
      %v3595 = vadd.f32 0.0, %v3594
      %v3596 = vpop.f32.mrf.mxu0
      %v3597 = vpop.f32.mrf.mxu0
      %v3598 = vadd.f32 0.0, %v3597
      %v3599 = vpop.f32.mrf.mxu0
      %3600 = vdwg.mxu0
      %v3601 = vld [vmem:[#allocation2] sm:$0xff]
      %v3602 = vld [vmem:[#allocation2 + $0x8] sm:$0xff]
      %v3603 = vld [vmem:[#allocation2 + $0x10] sm:$0xff]
      %v3604 = vld [vmem:[#allocation2 + $0x18] sm:$0xff]
      %v3605 = vld [vmem:[#allocation2 + $0x20] sm:$0xff]
      %v3606 = vld [vmem:[#allocation2 + $0x28] sm:$0xff]
      %v3607 = vld [vmem:[#allocation2 + $0x30] sm:$0xff]
      %v3608 = vld [vmem:[#allocation2 + $0x38] sm:$0xff]
      %v3609 = vld [vmem:[#allocation2 + $0x40] sm:$0xff]
      %v3610 = vld [vmem:[#allocation2 + $0x48] sm:$0xff]
      %v3611 = vld [vmem:[#allocation2 + $0x50] sm:$0xff]
      %v3612 = vld [vmem:[#allocation2 + $0x58] sm:$0xff]
      %v3613 = vld [vmem:[#allocation2 + $0x60] sm:$0xff]
      %v3614 = vld [vmem:[#allocation2 + $0x68] sm:$0xff]
      %v3615 = vld [vmem:[#allocation2 + $0x70] sm:$0xff]
      %v3616 = vld [vmem:[#allocation2 + $0x78] sm:$0xff]
      %v3617 = vld [vmem:[#allocation2 + $0x80] sm:$0xff]
      %v3618 = vld [vmem:[#allocation2 + $0x88] sm:$0xff]
      %v3619 = vld [vmem:[#allocation2 + $0x90] sm:$0xff]
      %v3620 = vld [vmem:[#allocation2 + $0x98] sm:$0xff]
      %v3621 = vld [vmem:[#allocation2 + $0xa0] sm:$0xff]
      %v3622 = vld [vmem:[#allocation2 + $0xa8] sm:$0xff]
      %v3623 = vld [vmem:[#allocation2 + $0xb0] sm:$0xff]
      %v3624 = vld [vmem:[#allocation2 + $0xb8] sm:$0xff]
      %v3625 = vld [vmem:[#allocation2 + $0xc0] sm:$0xff]
      %v3626 = vld [vmem:[#allocation2 + $0xc8] sm:$0xff]
      %v3627 = vld [vmem:[#allocation2 + $0xd0] sm:$0xff]
      %v3628 = vld [vmem:[#allocation2 + $0xd8] sm:$0xff]
      %v3629 = vld [vmem:[#allocation2 + $0xe0] sm:$0xff]
      %v3630 = vld [vmem:[#allocation2 + $0xe8] sm:$0xff]
      %v3631 = vld [vmem:[#allocation2 + $0xf0] sm:$0xff]
      %v3632 = vld [vmem:[#allocation2 + $0xf8] sm:$0xff]
      %v3633 = vadd.f32 %v3601, %v3475
      %v3634 = vadd.f32 %v3602, %v3478
      %v3635 = vadd.f32 %v3603, %v3483
      %v3636 = vadd.f32 %v3604, %v3486
      %v3637 = vadd.f32 %v3605, %v3491
      %v3638 = vadd.f32 %v3606, %v3494
      %v3639 = vadd.f32 %v3607, %v3499
      %v3640 = vadd.f32 %v3608, %v3502
      %v3641 = vadd.f32 %v3609, %v3507
      %v3642 = vadd.f32 %v3610, %v3510
      %v3643 = vadd.f32 %v3611, %v3515
      %v3644 = vadd.f32 %v3612, %v3518
      %v3645 = vadd.f32 %v3613, %v3523
      %v3646 = vadd.f32 %v3614, %v3526
      %v3647 = vadd.f32 %v3615, %v3531
      %v3648 = vadd.f32 %v3616, %v3534
      %v3649 = vadd.f32 %v3617, %v3539
      %v3650 = vadd.f32 %v3618, %v3542
      %v3651 = vadd.f32 %v3619, %v3547
      %v3652 = vadd.f32 %v3620, %v3550
      %v3653 = vadd.f32 %v3621, %v3555
      %v3654 = vadd.f32 %v3622, %v3558
      %v3655 = vadd.f32 %v3623, %v3563
      %v3656 = vadd.f32 %v3624, %v3566
      %v3657 = vadd.f32 %v3625, %v3571
      %v3658 = vadd.f32 %v3626, %v3574
      %v3659 = vadd.f32 %v3627, %v3579
      %v3660 = vadd.f32 %v3628, %v3582
      %v3661 = vadd.f32 %v3629, %v3587
      %v3662 = vadd.f32 %v3630, %v3590
      %v3663 = vadd.f32 %v3631, %v3595
      %v3664 = vadd.f32 %v3632, %v3598
      %3665 = vst [vmem:[#allocation2] sm:$0xff] %v3633
      %3666 = vst [vmem:[#allocation2 + $0x8] sm:$0xff] %v3634
      %3667 = vst [vmem:[#allocation2 + $0x10] sm:$0xff] %v3635
      %3668 = vst [vmem:[#allocation2 + $0x18] sm:$0xff] %v3636
      %3669 = vst [vmem:[#allocation2 + $0x20] sm:$0xff] %v3637
      %3670 = vst [vmem:[#allocation2 + $0x28] sm:$0xff] %v3638
      %3671 = vst [vmem:[#allocation2 + $0x30] sm:$0xff] %v3639
      %3672 = vst [vmem:[#allocation2 + $0x38] sm:$0xff] %v3640
      %3673 = vst [vmem:[#allocation2 + $0x40] sm:$0xff] %v3641
      %3674 = vst [vmem:[#allocation2 + $0x48] sm:$0xff] %v3642
      %3675 = vst [vmem:[#allocation2 + $0x50] sm:$0xff] %v3643
      %3676 = vst [vmem:[#allocation2 + $0x58] sm:$0xff] %v3644
      %3677 = vst [vmem:[#allocation2 + $0x60] sm:$0xff] %v3645
      %3678 = vst [vmem:[#allocation2 + $0x68] sm:$0xff] %v3646
      %3679 = vst [vmem:[#allocation2 + $0x70] sm:$0xff] %v3647
      %3680 = vst [vmem:[#allocation2 + $0x78] sm:$0xff] %v3648
      %3681 = vst [vmem:[#allocation2 + $0x80] sm:$0xff] %v3649
      %3682 = vst [vmem:[#allocation2 + $0x88] sm:$0xff] %v3650
      %3683 = vst [vmem:[#allocation2 + $0x90] sm:$0xff] %v3651
      %3684 = vst [vmem:[#allocation2 + $0x98] sm:$0xff] %v3652
      %3685 = vst [vmem:[#allocation2 + $0xa0] sm:$0xff] %v3653
      %3686 = vst [vmem:[#allocation2 + $0xa8] sm:$0xff] %v3654
      %3687 = vst [vmem:[#allocation2 + $0xb0] sm:$0xff] %v3655
      %3688 = vst [vmem:[#allocation2 + $0xb8] sm:$0xff] %v3656
      %3689 = vst [vmem:[#allocation2 + $0xc0] sm:$0xff] %v3657
      %3690 = vst [vmem:[#allocation2 + $0xc8] sm:$0xff] %v3658
      %3691 = vst [vmem:[#allocation2 + $0xd0] sm:$0xff] %v3659
      %3692 = vst [vmem:[#allocation2 + $0xd8] sm:$0xff] %v3660
      %3693 = vst [vmem:[#allocation2 + $0xe0] sm:$0xff] %v3661
      %3694 = vst [vmem:[#allocation2 + $0xe8] sm:$0xff] %v3662
      %3695 = vst [vmem:[#allocation2 + $0xf0] sm:$0xff] %v3663
      %3696 = vst [vmem:[#allocation2 + $0xf8] sm:$0xff] %v3664
      %s3697 = sadd.s32 %s190, 2
      %s3698 = smul.u32 %s3697, 3
      %s3699 = smul.addr %s3698, 4
      %s3700 = scalar_lea.vmem %s180, %s3699
      %v3701 = vld [vmem:[%s3700] sm:$0xf]
      %v3702 = vld [vmem:[%s3700 + $0x4] sm:$0xf]
      %v3703 = vld [vmem:[%s3700 + $0xc] sm:$0xf]
      %v3704 = vld [vmem:[%s3700 + $0x10] sm:$0xf]
      %v3705 = vld [vmem:[%s3700 + $0x18] sm:$0xf]
      %v3706 = vld [vmem:[%s3700 + $0x1c] sm:$0xf]
      %v3707 = vld [vmem:[%s3700 + $0x24] sm:$0xf]
      %v3708 = vld [vmem:[%s3700 + $0x28] sm:$0xf]
      %v3709 = vld [vmem:[%s3700 + $0x30] sm:$0xf]
      %v3710 = vld [vmem:[%s3700 + $0x34] sm:$0xf]
      %v3711 = vld [vmem:[%s3700 + $0x3c] sm:$0xf]
      %v3712 = vld [vmem:[%s3700 + $0x40] sm:$0xf]
      %v3713 = vld [vmem:[%s3700 + $0x48] sm:$0xf]
      %v3714 = vld [vmem:[%s3700 + $0x4c] sm:$0xf]
      %v3715 = vld [vmem:[%s3700 + $0x54] sm:$0xf]
      %v3716 = vld [vmem:[%s3700 + $0x58] sm:$0xf]
      %v3717 = vld [vmem:[%s3700 + $0x60] sm:$0xf]
      %v3718 = vld [vmem:[%s3700 + $0x64] sm:$0xf]
      %v3719 = vld [vmem:[%s3700 + $0x6c] sm:$0xf]
      %v3720 = vld [vmem:[%s3700 + $0x70] sm:$0xf]
      %v3721 = vld [vmem:[%s3700 + $0x78] sm:$0xf]
      %v3722 = vld [vmem:[%s3700 + $0x7c] sm:$0xf]
      %v3723 = vld [vmem:[%s3700 + $0x84] sm:$0xf]
      %v3724 = vld [vmem:[%s3700 + $0x88] sm:$0xf]
      %v3725 = vld [vmem:[%s3700 + $0x90] sm:$0xf]
      %v3726 = vld [vmem:[%s3700 + $0x94] sm:$0xf]
      %v3727 = vld [vmem:[%s3700 + $0x9c] sm:$0xf]
      %v3728 = vld [vmem:[%s3700 + $0xa0] sm:$0xf]
      %v3729 = vld [vmem:[%s3700 + $0xa8] sm:$0xf]
      %v3730 = vld [vmem:[%s3700 + $0xac] sm:$0xf]
      %v3731 = vld [vmem:[%s3700 + $0xb4] sm:$0xf]
      %v3732 = vld [vmem:[%s3700 + $0xb8] sm:$0xf]
      %s3733 = scalar_lea.vmem %s1, 12
      %v3734 = vld [vmem:[%s3733] sm:$0x3]
      %v3767 = vunpack.c.l.b16 %v3701
      %v3768 = vunpack.c.l.b16 %v3702
      %v3769 = vunpack.c.l.b16 %v3703
      %v3770 = vunpack.c.l.b16 %v3704
      %v3771 = vunpack.c.l.b16 %v3705
      %v3772 = vunpack.c.l.b16 %v3706
      %v3773 = vunpack.c.l.b16 %v3707
      %v3774 = vunpack.c.l.b16 %v3708
      %v3775 = vunpack.c.l.b16 %v3709
      %v3776 = vunpack.c.l.b16 %v3710
      %v3777 = vunpack.c.l.b16 %v3711
      %v3778 = vunpack.c.l.b16 %v3712
      %v3779 = vunpack.c.l.b16 %v3713
      %v3780 = vunpack.c.l.b16 %v3714
      %v3781 = vunpack.c.l.b16 %v3715
      %v3782 = vunpack.c.l.b16 %v3716
      %v3783 = vunpack.c.l.b16 %v3717
      %v3784 = vunpack.c.l.b16 %v3718
      %v3785 = vunpack.c.l.b16 %v3719
      %v3786 = vunpack.c.l.b16 %v3720
      %v3787 = vunpack.c.l.b16 %v3721
      %v3788 = vunpack.c.l.b16 %v3722
      %v3789 = vunpack.c.l.b16 %v3723
      %v3790 = vunpack.c.l.b16 %v3724
      %v3791 = vunpack.c.l.b16 %v3725
      %v3792 = vunpack.c.l.b16 %v3726
      %v3793 = vunpack.c.l.b16 %v3727
      %v3794 = vunpack.c.l.b16 %v3728
      %v3795 = vunpack.c.l.b16 %v3729
      %v3796 = vunpack.c.l.b16 %v3730
      %v3797 = vunpack.c.l.b16 %v3731
      %v3798 = vunpack.c.l.b16 %v3732
      %v3799 = vpack.c.b16 %v3768, %v3767
      %v3800 = vpack.c.b16 %v3770, %v3769
      %v3801 = vpack.c.b16 %v3772, %v3771
      %v3802 = vpack.c.b16 %v3774, %v3773
      %v3803 = vpack.c.b16 %v3776, %v3775
      %v3804 = vpack.c.b16 %v3778, %v3777
      %v3805 = vpack.c.b16 %v3780, %v3779
      %v3806 = vpack.c.b16 %v3782, %v3781
      %v3807 = vpack.c.b16 %v3784, %v3783
      %v3808 = vpack.c.b16 %v3786, %v3785
      %v3809 = vpack.c.b16 %v3788, %v3787
      %v3810 = vpack.c.b16 %v3790, %v3789
      %v3811 = vpack.c.b16 %v3792, %v3791
      %v3812 = vpack.c.b16 %v3794, %v3793
      %v3813 = vpack.c.b16 %v3796, %v3795
      %v3814 = vpack.c.b16 %v3798, %v3797
      %v3816 = vsel %vm307, %v3799, 0
      %v3819 = vsel %vm307, %v3800, 0
      %v3822 = vsel %vm307, %v3801, 0
      %v3825 = vsel %vm307, %v3802, 0
      %v3828 = vsel %vm307, %v3803, 0
      %v3831 = vsel %vm307, %v3804, 0
      %v3834 = vsel %vm307, %v3805, 0
      %v3837 = vsel %vm307, %v3806, 0
      %v3840 = vsel %vm307, %v3807, 0
      %v3843 = vsel %vm307, %v3808, 0
      %v3846 = vsel %vm307, %v3809, 0
      %v3849 = vsel %vm307, %v3810, 0
      %v3852 = vsel %vm307, %v3811, 0
      %v3855 = vsel %vm307, %v3812, 0
      %v3858 = vsel %vm307, %v3813, 0
      %v3861 = vsel %vm307, %v3814, 0
      %v3864 = vsel %vm356, %v3734, 0
      %3866 = vmatprep.subr.bf16.mxu0 0
      %3867 = vmatpush1.bf16.msra.mxu0 0
      %3868 = vmatprep.subr.bf16.mxu0 0
      %3869 = vmatpush1.bf16.msra.mxu0 0
      %3870 = vmatprep.subr.bf16.mxu0 0
      %3871 = vmatpush1.bf16.msra.mxu0 0
      %3872 = vmatprep.subr.bf16.mxu0 0
      %3873 = vmatpush1.bf16.msra.mxu0 0
      %3874 = vmatprep.subr.bf16.mxu0 0
      %3875 = vmatpush1.bf16.msra.mxu0 0
      %3876 = vmatprep.subr.bf16.mxu0 0
      %3877 = vmatpush1.bf16.msra.mxu0 0
      %3878 = vmatprep.subr.bf16.mxu0 0
      %3879 = vmatpush1.bf16.msra.mxu0 0
      %3880 = vmatprep.subr.bf16.mxu0 0
      %3881 = vmatpush1.bf16.msra.mxu0 %v3864
      %3882 = vmatprep.subr.bf16.mxu0 0
      %3883 = vmatpush2.bf16.msra.mxu0 0
      %3884 = vmatprep.subr.bf16.mxu0 0
      %3885 = vmatpush2.bf16.msra.mxu0 0
      %3886 = vmatprep.subr.bf16.mxu0 0
      %3887 = vmatpush2.bf16.msra.mxu0 0
      %3888 = vmatprep.subr.bf16.mxu0 0
      %3889 = vmatpush2.bf16.msra.mxu0 0
      %3890 = vmatprep.subr.bf16.mxu0 0
      %3891 = vmatpush2.bf16.msra.mxu0 0
      %3892 = vmatprep.subr.bf16.mxu0 0
      %3893 = vmatpush2.bf16.msra.mxu0 0
      %3894 = vmatprep.subr.bf16.mxu0 0
      %3895 = vmatpush2.bf16.msra.mxu0 0
      %3896 = vmatprep.subr.bf16.mxu0 0
      %3897 = vmatpush2.bf16.msra.mxu0 0
      %3898 = vmatprep.mubr.bf16.mxu0 0
      %3899 = vmatmul.mubr.bf16.gmra.mxu0 %v3816
      %v3900 = vpop.f32.mrf.mxu0
      %v3901 = vadd.f32 0.0, %v3900
      %v3902 = vpop.f32.mrf.mxu0
      %v3903 = vpop.f32.mrf.mxu0
      %v3904 = vadd.f32 0.0, %v3903
      %v3905 = vpop.f32.mrf.mxu0
      %3906 = vmatprep.mubr.bf16.mxu0 0
      %3907 = vmatmul.mubr.bf16.gmra.mxu0 %v3819
      %v3908 = vpop.f32.mrf.mxu0
      %v3909 = vadd.f32 0.0, %v3908
      %v3910 = vpop.f32.mrf.mxu0
      %v3911 = vpop.f32.mrf.mxu0
      %v3912 = vadd.f32 0.0, %v3911
      %v3913 = vpop.f32.mrf.mxu0
      %3914 = vmatprep.mubr.bf16.mxu0 0
      %3915 = vmatmul.mubr.bf16.gmra.mxu0 %v3822
      %v3916 = vpop.f32.mrf.mxu0
      %v3917 = vadd.f32 0.0, %v3916
      %v3918 = vpop.f32.mrf.mxu0
      %v3919 = vpop.f32.mrf.mxu0
      %v3920 = vadd.f32 0.0, %v3919
      %v3921 = vpop.f32.mrf.mxu0
      %3922 = vmatprep.mubr.bf16.mxu0 0
      %3923 = vmatmul.mubr.bf16.gmra.mxu0 %v3825
      %v3924 = vpop.f32.mrf.mxu0
      %v3925 = vadd.f32 0.0, %v3924
      %v3926 = vpop.f32.mrf.mxu0
      %v3927 = vpop.f32.mrf.mxu0
      %v3928 = vadd.f32 0.0, %v3927
      %v3929 = vpop.f32.mrf.mxu0
      %3930 = vmatprep.mubr.bf16.mxu0 0
      %3931 = vmatmul.mubr.bf16.gmra.mxu0 %v3828
      %v3932 = vpop.f32.mrf.mxu0
      %v3933 = vadd.f32 0.0, %v3932
      %v3934 = vpop.f32.mrf.mxu0
      %v3935 = vpop.f32.mrf.mxu0
      %v3936 = vadd.f32 0.0, %v3935
      %v3937 = vpop.f32.mrf.mxu0
      %3938 = vmatprep.mubr.bf16.mxu0 0
      %3939 = vmatmul.mubr.bf16.gmra.mxu0 %v3831
      %v3940 = vpop.f32.mrf.mxu0
      %v3941 = vadd.f32 0.0, %v3940
      %v3942 = vpop.f32.mrf.mxu0
      %v3943 = vpop.f32.mrf.mxu0
      %v3944 = vadd.f32 0.0, %v3943
      %v3945 = vpop.f32.mrf.mxu0
      %3946 = vmatprep.mubr.bf16.mxu0 0
      %3947 = vmatmul.mubr.bf16.gmra.mxu0 %v3834
      %v3948 = vpop.f32.mrf.mxu0
      %v3949 = vadd.f32 0.0, %v3948
      %v3950 = vpop.f32.mrf.mxu0
      %v3951 = vpop.f32.mrf.mxu0
      %v3952 = vadd.f32 0.0, %v3951
      %v3953 = vpop.f32.mrf.mxu0
      %3954 = vmatprep.mubr.bf16.mxu0 0
      %3955 = vmatmul.mubr.bf16.gmra.mxu0 %v3837
      %v3956 = vpop.f32.mrf.mxu0
      %v3957 = vadd.f32 0.0, %v3956
      %v3958 = vpop.f32.mrf.mxu0
      %v3959 = vpop.f32.mrf.mxu0
      %v3960 = vadd.f32 0.0, %v3959
      %v3961 = vpop.f32.mrf.mxu0
      %3962 = vmatprep.mubr.bf16.mxu0 0
      %3963 = vmatmul.mubr.bf16.gmra.mxu0 %v3840
      %v3964 = vpop.f32.mrf.mxu0
      %v3965 = vadd.f32 0.0, %v3964
      %v3966 = vpop.f32.mrf.mxu0
      %v3967 = vpop.f32.mrf.mxu0
      %v3968 = vadd.f32 0.0, %v3967
      %v3969 = vpop.f32.mrf.mxu0
      %3970 = vmatprep.mubr.bf16.mxu0 0
      %3971 = vmatmul.mubr.bf16.gmra.mxu0 %v3843
      %v3972 = vpop.f32.mrf.mxu0
      %v3973 = vadd.f32 0.0, %v3972
      %v3974 = vpop.f32.mrf.mxu0
      %v3975 = vpop.f32.mrf.mxu0
      %v3976 = vadd.f32 0.0, %v3975
      %v3977 = vpop.f32.mrf.mxu0
      %3978 = vmatprep.mubr.bf16.mxu0 0
      %3979 = vmatmul.mubr.bf16.gmra.mxu0 %v3846
      %v3980 = vpop.f32.mrf.mxu0
      %v3981 = vadd.f32 0.0, %v3980
      %v3982 = vpop.f32.mrf.mxu0
      %v3983 = vpop.f32.mrf.mxu0
      %v3984 = vadd.f32 0.0, %v3983
      %v3985 = vpop.f32.mrf.mxu0
      %3986 = vmatprep.mubr.bf16.mxu0 0
      %3987 = vmatmul.mubr.bf16.gmra.mxu0 %v3849
      %v3988 = vpop.f32.mrf.mxu0
      %v3989 = vadd.f32 0.0, %v3988
      %v3990 = vpop.f32.mrf.mxu0
      %v3991 = vpop.f32.mrf.mxu0
      %v3992 = vadd.f32 0.0, %v3991
      %v3993 = vpop.f32.mrf.mxu0
      %3994 = vmatprep.mubr.bf16.mxu0 0
      %3995 = vmatmul.mubr.bf16.gmra.mxu0 %v3852
      %v3996 = vpop.f32.mrf.mxu0
      %v3997 = vadd.f32 0.0, %v3996
      %v3998 = vpop.f32.mrf.mxu0
      %v3999 = vpop.f32.mrf.mxu0
      %v4000 = vadd.f32 0.0, %v3999
      %v4001 = vpop.f32.mrf.mxu0
      %4002 = vmatprep.mubr.bf16.mxu0 0
      %4003 = vmatmul.mubr.bf16.gmra.mxu0 %v3855
      %v4004 = vpop.f32.mrf.mxu0
      %v4005 = vadd.f32 0.0, %v4004
      %v4006 = vpop.f32.mrf.mxu0
      %v4007 = vpop.f32.mrf.mxu0
      %v4008 = vadd.f32 0.0, %v4007
      %v4009 = vpop.f32.mrf.mxu0
      %4010 = vmatprep.mubr.bf16.mxu0 0
      %4011 = vmatmul.mubr.bf16.gmra.mxu0 %v3858
      %v4012 = vpop.f32.mrf.mxu0
      %v4013 = vadd.f32 0.0, %v4012
      %v4014 = vpop.f32.mrf.mxu0
      %v4015 = vpop.f32.mrf.mxu0
      %v4016 = vadd.f32 0.0, %v4015
      %v4017 = vpop.f32.mrf.mxu0
      %4018 = vmatprep.mubr.bf16.mxu0 0
      %4019 = vmatmul.mubr.bf16.gmra.mxu0 %v3861
      %v4020 = vpop.f32.mrf.mxu0
      %v4021 = vadd.f32 0.0, %v4020
      %v4022 = vpop.f32.mrf.mxu0
      %v4023 = vpop.f32.mrf.mxu0
      %v4024 = vadd.f32 0.0, %v4023
      %v4025 = vpop.f32.mrf.mxu0
      %4026 = vdwg.mxu0
      %v4027 = vld [vmem:[#allocation2] sm:$0xff]
      %v4028 = vld [vmem:[#allocation2 + $0x8] sm:$0xff]
      %v4029 = vld [vmem:[#allocation2 + $0x10] sm:$0xff]
      %v4030 = vld [vmem:[#allocation2 + $0x18] sm:$0xff]
      %v4031 = vld [vmem:[#allocation2 + $0x20] sm:$0xff]
      %v4032 = vld [vmem:[#allocation2 + $0x28] sm:$0xff]
      %v4033 = vld [vmem:[#allocation2 + $0x30] sm:$0xff]
      %v4034 = vld [vmem:[#allocation2 + $0x38] sm:$0xff]
      %v4035 = vld [vmem:[#allocation2 + $0x40] sm:$0xff]
      %v4036 = vld [vmem:[#allocation2 + $0x48] sm:$0xff]
      %v4037 = vld [vmem:[#allocation2 + $0x50] sm:$0xff]
      %v4038 = vld [vmem:[#allocation2 + $0x58] sm:$0xff]
      %v4039 = vld [vmem:[#allocation2 + $0x60] sm:$0xff]
      %v4040 = vld [vmem:[#allocation2 + $0x68] sm:$0xff]
      %v4041 = vld [vmem:[#allocation2 + $0x70] sm:$0xff]
      %v4042 = vld [vmem:[#allocation2 + $0x78] sm:$0xff]
      %v4043 = vld [vmem:[#allocation2 + $0x80] sm:$0xff]
      %v4044 = vld [vmem:[#allocation2 + $0x88] sm:$0xff]
      %v4045 = vld [vmem:[#allocation2 + $0x90] sm:$0xff]
      %v4046 = vld [vmem:[#allocation2 + $0x98] sm:$0xff]
      %v4047 = vld [vmem:[#allocation2 + $0xa0] sm:$0xff]
      %v4048 = vld [vmem:[#allocation2 + $0xa8] sm:$0xff]
      %v4049 = vld [vmem:[#allocation2 + $0xb0] sm:$0xff]
      %v4050 = vld [vmem:[#allocation2 + $0xb8] sm:$0xff]
      %v4051 = vld [vmem:[#allocation2 + $0xc0] sm:$0xff]
      %v4052 = vld [vmem:[#allocation2 + $0xc8] sm:$0xff]
      %v4053 = vld [vmem:[#allocation2 + $0xd0] sm:$0xff]
      %v4054 = vld [vmem:[#allocation2 + $0xd8] sm:$0xff]
      %v4055 = vld [vmem:[#allocation2 + $0xe0] sm:$0xff]
      %v4056 = vld [vmem:[#allocation2 + $0xe8] sm:$0xff]
      %v4057 = vld [vmem:[#allocation2 + $0xf0] sm:$0xff]
      %v4058 = vld [vmem:[#allocation2 + $0xf8] sm:$0xff]
      %v4059 = vadd.f32 %v4027, %v3901
      %v4060 = vadd.f32 %v4028, %v3904
      %v4061 = vadd.f32 %v4029, %v3909
      %v4062 = vadd.f32 %v4030, %v3912
      %v4063 = vadd.f32 %v4031, %v3917
      %v4064 = vadd.f32 %v4032, %v3920
      %v4065 = vadd.f32 %v4033, %v3925
      %v4066 = vadd.f32 %v4034, %v3928
      %v4067 = vadd.f32 %v4035, %v3933
      %v4068 = vadd.f32 %v4036, %v3936
      %v4069 = vadd.f32 %v4037, %v3941
      %v4070 = vadd.f32 %v4038, %v3944
      %v4071 = vadd.f32 %v4039, %v3949
      %v4072 = vadd.f32 %v4040, %v3952
      %v4073 = vadd.f32 %v4041, %v3957
      %v4074 = vadd.f32 %v4042, %v3960
      %v4075 = vadd.f32 %v4043, %v3965
      %v4076 = vadd.f32 %v4044, %v3968
      %v4077 = vadd.f32 %v4045, %v3973
      %v4078 = vadd.f32 %v4046, %v3976
      %v4079 = vadd.f32 %v4047, %v3981
      %v4080 = vadd.f32 %v4048, %v3984
      %v4081 = vadd.f32 %v4049, %v3989
      %v4082 = vadd.f32 %v4050, %v3992
      %v4083 = vadd.f32 %v4051, %v3997
      %v4084 = vadd.f32 %v4052, %v4000
      %v4085 = vadd.f32 %v4053, %v4005
      %v4086 = vadd.f32 %v4054, %v4008
      %v4087 = vadd.f32 %v4055, %v4013
      %v4088 = vadd.f32 %v4056, %v4016
      %v4089 = vadd.f32 %v4057, %v4021
      %v4090 = vadd.f32 %v4058, %v4024
      %4091 = vst [vmem:[#allocation2] sm:$0xff] %v4059
      %4092 = vst [vmem:[#allocation2 + $0x8] sm:$0xff] %v4060
      %4093 = vst [vmem:[#allocation2 + $0x10] sm:$0xff] %v4061
      %4094 = vst [vmem:[#allocation2 + $0x18] sm:$0xff] %v4062
      %4095 = vst [vmem:[#allocation2 + $0x20] sm:$0xff] %v4063
      %4096 = vst [vmem:[#allocation2 + $0x28] sm:$0xff] %v4064
      %4097 = vst [vmem:[#allocation2 + $0x30] sm:$0xff] %v4065
      %4098 = vst [vmem:[#allocation2 + $0x38] sm:$0xff] %v4066
      %4099 = vst [vmem:[#allocation2 + $0x40] sm:$0xff] %v4067
      %4100 = vst [vmem:[#allocation2 + $0x48] sm:$0xff] %v4068
      %4101 = vst [vmem:[#allocation2 + $0x50] sm:$0xff] %v4069
      %4102 = vst [vmem:[#allocation2 + $0x58] sm:$0xff] %v4070
      %4103 = vst [vmem:[#allocation2 + $0x60] sm:$0xff] %v4071
      %4104 = vst [vmem:[#allocation2 + $0x68] sm:$0xff] %v4072
      %4105 = vst [vmem:[#allocation2 + $0x70] sm:$0xff] %v4073
      %4106 = vst [vmem:[#allocation2 + $0x78] sm:$0xff] %v4074
      %4107 = vst [vmem:[#allocation2 + $0x80] sm:$0xff] %v4075
      %4108 = vst [vmem:[#allocation2 + $0x88] sm:$0xff] %v4076
      %4109 = vst [vmem:[#allocation2 + $0x90] sm:$0xff] %v4077
      %4110 = vst [vmem:[#allocation2 + $0x98] sm:$0xff] %v4078
      %4111 = vst [vmem:[#allocation2 + $0xa0] sm:$0xff] %v4079
      %4112 = vst [vmem:[#allocation2 + $0xa8] sm:$0xff] %v4080
      %4113 = vst [vmem:[#allocation2 + $0xb0] sm:$0xff] %v4081
      %4114 = vst [vmem:[#allocation2 + $0xb8] sm:$0xff] %v4082
      %4115 = vst [vmem:[#allocation2 + $0xc0] sm:$0xff] %v4083
      %4116 = vst [vmem:[#allocation2 + $0xc8] sm:$0xff] %v4084
      %4117 = vst [vmem:[#allocation2 + $0xd0] sm:$0xff] %v4085
      %4118 = vst [vmem:[#allocation2 + $0xd8] sm:$0xff] %v4086
      %4119 = vst [vmem:[#allocation2 + $0xe0] sm:$0xff] %v4087
      %4120 = vst [vmem:[#allocation2 + $0xe8] sm:$0xff] %v4088
      %4121 = vst [vmem:[#allocation2 + $0xf0] sm:$0xff] %v4089
      %4122 = vst [vmem:[#allocation2 + $0xf8] sm:$0xff] %v4090
      %v4123 = vld [vmem:[%s3700] sm:$0xf]
      %v4124 = vld [vmem:[%s3700 + $0x4] sm:$0xf]
      %v4125 = vld [vmem:[%s3700 + $0x8] sm:$0x1]
      %v4126 = vld [vmem:[%s3700 + $0xc] sm:$0xf]
      %v4127 = vld [vmem:[%s3700 + $0x10] sm:$0xf]
      %v4128 = vld [vmem:[%s3700 + $0x14] sm:$0x1]
      %v4129 = vld [vmem:[%s3700 + $0x18] sm:$0xf]
      %v4130 = vld [vmem:[%s3700 + $0x1c] sm:$0xf]
      %v4131 = vld [vmem:[%s3700 + $0x20] sm:$0x1]
      %v4132 = vld [vmem:[%s3700 + $0x24] sm:$0xf]
      %v4133 = vld [vmem:[%s3700 + $0x28] sm:$0xf]
      %v4134 = vld [vmem:[%s3700 + $0x2c] sm:$0x1]
      %v4135 = vld [vmem:[%s3700 + $0x30] sm:$0xf]
      %v4136 = vld [vmem:[%s3700 + $0x34] sm:$0xf]
      %v4137 = vld [vmem:[%s3700 + $0x38] sm:$0x1]
      %v4138 = vld [vmem:[%s3700 + $0x3c] sm:$0xf]
      %v4139 = vld [vmem:[%s3700 + $0x40] sm:$0xf]
      %v4140 = vld [vmem:[%s3700 + $0x44] sm:$0x1]
      %v4141 = vld [vmem:[%s3700 + $0x48] sm:$0xf]
      %v4142 = vld [vmem:[%s3700 + $0x4c] sm:$0xf]
      %v4143 = vld [vmem:[%s3700 + $0x50] sm:$0x1]
      %v4144 = vld [vmem:[%s3700 + $0x54] sm:$0xf]
      %v4145 = vld [vmem:[%s3700 + $0x58] sm:$0xf]
      %v4146 = vld [vmem:[%s3700 + $0x5c] sm:$0x1]
      %v4147 = vld [vmem:[%s3700 + $0x60] sm:$0xf]
      %v4148 = vld [vmem:[%s3700 + $0x64] sm:$0xf]
      %v4149 = vld [vmem:[%s3700 + $0x68] sm:$0x1]
      %v4150 = vld [vmem:[%s3700 + $0x6c] sm:$0xf]
      %v4151 = vld [vmem:[%s3700 + $0x70] sm:$0xf]
      %v4152 = vld [vmem:[%s3700 + $0x74] sm:$0x1]
      %v4153 = vld [vmem:[%s3700 + $0x78] sm:$0xf]
      %v4154 = vld [vmem:[%s3700 + $0x7c] sm:$0xf]
      %v4155 = vld [vmem:[%s3700 + $0x80] sm:$0x1]
      %v4156 = vld [vmem:[%s3700 + $0x84] sm:$0xf]
      %v4157 = vld [vmem:[%s3700 + $0x88] sm:$0xf]
      %v4158 = vld [vmem:[%s3700 + $0x8c] sm:$0x1]
      %v4159 = vld [vmem:[%s3700 + $0x90] sm:$0xf]
      %v4160 = vld [vmem:[%s3700 + $0x94] sm:$0xf]
      %v4161 = vld [vmem:[%s3700 + $0x98] sm:$0x1]
      %v4162 = vld [vmem:[%s3700 + $0x9c] sm:$0xf]
      %v4163 = vld [vmem:[%s3700 + $0xa0] sm:$0xf]
      %v4164 = vld [vmem:[%s3700 + $0xa4] sm:$0x1]
      %v4165 = vld [vmem:[%s3700 + $0xa8] sm:$0xf]
      %v4166 = vld [vmem:[%s3700 + $0xac] sm:$0xf]
      %v4167 = vld [vmem:[%s3700 + $0xb0] sm:$0x1]
      %v4168 = vld [vmem:[%s3700 + $0xb4] sm:$0xf]
      %v4169 = vld [vmem:[%s3700 + $0xb8] sm:$0xf]
      %v4170 = vld [vmem:[%s3700 + $0xbc] sm:$0x1]
      %v4172 = vshrl.u32 %v4123, 16
      %v4174 = vrot.slane %v4172, 4
      %v4175 = vshll.u32 %v4123, 16
      %v4177 = vrot.slane %v4175, 5
      %v4178 = vor.u32 %v4174, %v4177
      %v4179 = vrot.slane %v4178, 4
      %v4181 = vshll.u32 %v4124, 16
      %v4183 = vrot.slane %v4181, 5
      %v4184 = vsel %vm603, %v4179, %v4183
      %v4185 = vshrl.u32 %v4124, 16
      %v4187 = vrot.slane %v4185, 4
      %v4188 = vor.u32 %v4187, %v4183
      %v4189 = vrot.slane %v4188, 4
      %v4191 = vshll.u32 %v4125, 16
      %v4193 = vrot.slane %v4191, 5
      %v4194 = vsel %vm603, %v4189, %v4193
      %v4196 = vshrl.u32 %v4126, 16
      %v4198 = vrot.slane %v4196, 4
      %v4199 = vshll.u32 %v4126, 16
      %v4201 = vrot.slane %v4199, 5
      %v4202 = vor.u32 %v4198, %v4201
      %v4203 = vrot.slane %v4202, 4
      %v4205 = vshll.u32 %v4127, 16
      %v4207 = vrot.slane %v4205, 5
      %v4208 = vsel %vm603, %v4203, %v4207
      %v4209 = vshrl.u32 %v4127, 16
      %v4211 = vrot.slane %v4209, 4
      %v4212 = vor.u32 %v4211, %v4207
      %v4213 = vrot.slane %v4212, 4
      %v4215 = vshll.u32 %v4128, 16
      %v4217 = vrot.slane %v4215, 5
      %v4218 = vsel %vm603, %v4213, %v4217
      %v4220 = vshrl.u32 %v4129, 16
      %v4222 = vrot.slane %v4220, 4
      %v4223 = vshll.u32 %v4129, 16
      %v4225 = vrot.slane %v4223, 5
      %v4226 = vor.u32 %v4222, %v4225
      %v4227 = vrot.slane %v4226, 4
      %v4229 = vshll.u32 %v4130, 16
      %v4231 = vrot.slane %v4229, 5
      %v4232 = vsel %vm603, %v4227, %v4231
      %v4233 = vshrl.u32 %v4130, 16
      %v4235 = vrot.slane %v4233, 4
      %v4236 = vor.u32 %v4235, %v4231
      %v4237 = vrot.slane %v4236, 4
      %v4239 = vshll.u32 %v4131, 16
      %v4241 = vrot.slane %v4239, 5
      %v4242 = vsel %vm603, %v4237, %v4241
      %v4244 = vshrl.u32 %v4132, 16
      %v4246 = vrot.slane %v4244, 4
      %v4247 = vshll.u32 %v4132, 16
      %v4249 = vrot.slane %v4247, 5
      %v4250 = vor.u32 %v4246, %v4249
      %v4251 = vrot.slane %v4250, 4
      %v4253 = vshll.u32 %v4133, 16
      %v4255 = vrot.slane %v4253, 5
      %v4256 = vsel %vm603, %v4251, %v4255
      %v4257 = vshrl.u32 %v4133, 16
      %v4259 = vrot.slane %v4257, 4
      %v4260 = vor.u32 %v4259, %v4255
      %v4261 = vrot.slane %v4260, 4
      %v4263 = vshll.u32 %v4134, 16
      %v4265 = vrot.slane %v4263, 5
      %v4266 = vsel %vm603, %v4261, %v4265
      %v4268 = vshrl.u32 %v4135, 16
      %v4270 = vrot.slane %v4268, 4
      %v4271 = vshll.u32 %v4135, 16
      %v4273 = vrot.slane %v4271, 5
      %v4274 = vor.u32 %v4270, %v4273
      %v4275 = vrot.slane %v4274, 4
      %v4277 = vshll.u32 %v4136, 16
      %v4279 = vrot.slane %v4277, 5
      %v4280 = vsel %vm603, %v4275, %v4279
      %v4281 = vshrl.u32 %v4136, 16
      %v4283 = vrot.slane %v4281, 4
      %v4284 = vor.u32 %v4283, %v4279
      %v4285 = vrot.slane %v4284, 4
      %v4287 = vshll.u32 %v4137, 16
      %v4289 = vrot.slane %v4287, 5
      %v4290 = vsel %vm603, %v4285, %v4289
      %v4292 = vshrl.u32 %v4138, 16
      %v4294 = vrot.slane %v4292, 4
      %v4295 = vshll.u32 %v4138, 16
      %v4297 = vrot.slane %v4295, 5
      %v4298 = vor.u32 %v4294, %v4297
      %v4299 = vrot.slane %v4298, 4
      %v4301 = vshll.u32 %v4139, 16
      %v4303 = vrot.slane %v4301, 5
      %v4304 = vsel %vm603, %v4299, %v4303
      %v4305 = vshrl.u32 %v4139, 16
      %v4307 = vrot.slane %v4305, 4
      %v4308 = vor.u32 %v4307, %v4303
      %v4309 = vrot.slane %v4308, 4
      %v4311 = vshll.u32 %v4140, 16
      %v4313 = vrot.slane %v4311, 5
      %v4314 = vsel %vm603, %v4309, %v4313
      %v4316 = vshrl.u32 %v4141, 16
      %v4318 = vrot.slane %v4316, 4
      %v4319 = vshll.u32 %v4141, 16
      %v4321 = vrot.slane %v4319, 5
      %v4322 = vor.u32 %v4318, %v4321
      %v4323 = vrot.slane %v4322, 4
      %v4325 = vshll.u32 %v4142, 16
      %v4327 = vrot.slane %v4325, 5
      %v4328 = vsel %vm603, %v4323, %v4327
      %v4329 = vshrl.u32 %v4142, 16
      %v4331 = vrot.slane %v4329, 4
      %v4332 = vor.u32 %v4331, %v4327
      %v4333 = vrot.slane %v4332, 4
      %v4335 = vshll.u32 %v4143, 16
      %v4337 = vrot.slane %v4335, 5
      %v4338 = vsel %vm603, %v4333, %v4337
      %v4340 = vshrl.u32 %v4144, 16
      %v4342 = vrot.slane %v4340, 4
      %v4343 = vshll.u32 %v4144, 16
      %v4345 = vrot.slane %v4343, 5
      %v4346 = vor.u32 %v4342, %v4345
      %v4347 = vrot.slane %v4346, 4
      %v4349 = vshll.u32 %v4145, 16
      %v4351 = vrot.slane %v4349, 5
      %v4352 = vsel %vm603, %v4347, %v4351
      %v4353 = vshrl.u32 %v4145, 16
      %v4355 = vrot.slane %v4353, 4
      %v4356 = vor.u32 %v4355, %v4351
      %v4357 = vrot.slane %v4356, 4
      %v4359 = vshll.u32 %v4146, 16
      %v4361 = vrot.slane %v4359, 5
      %v4362 = vsel %vm603, %v4357, %v4361
      %v4364 = vshrl.u32 %v4147, 16
      %v4366 = vrot.slane %v4364, 4
      %v4367 = vshll.u32 %v4147, 16
      %v4369 = vrot.slane %v4367, 5
      %v4370 = vor.u32 %v4366, %v4369
      %v4371 = vrot.slane %v4370, 4
      %v4373 = vshll.u32 %v4148, 16
      %v4375 = vrot.slane %v4373, 5
      %v4376 = vsel %vm603, %v4371, %v4375
      %v4377 = vshrl.u32 %v4148, 16
      %v4379 = vrot.slane %v4377, 4
      %v4380 = vor.u32 %v4379, %v4375
      %v4381 = vrot.slane %v4380, 4
      %v4383 = vshll.u32 %v4149, 16
      %v4385 = vrot.slane %v4383, 5
      %v4386 = vsel %vm603, %v4381, %v4385
      %v4388 = vshrl.u32 %v4150, 16
      %v4390 = vrot.slane %v4388, 4
      %v4391 = vshll.u32 %v4150, 16
      %v4393 = vrot.slane %v4391, 5
      %v4394 = vor.u32 %v4390, %v4393
      %v4395 = vrot.slane %v4394, 4
      %v4397 = vshll.u32 %v4151, 16
      %v4399 = vrot.slane %v4397, 5
      %v4400 = vsel %vm603, %v4395, %v4399
      %v4401 = vshrl.u32 %v4151, 16
      %v4403 = vrot.slane %v4401, 4
      %v4404 = vor.u32 %v4403, %v4399
      %v4405 = vrot.slane %v4404, 4
      %v4407 = vshll.u32 %v4152, 16
      %v4409 = vrot.slane %v4407, 5
      %v4410 = vsel %vm603, %v4405, %v4409
      %v4412 = vshrl.u32 %v4153, 16
      %v4414 = vrot.slane %v4412, 4
      %v4415 = vshll.u32 %v4153, 16
      %v4417 = vrot.slane %v4415, 5
      %v4418 = vor.u32 %v4414, %v4417
      %v4419 = vrot.slane %v4418, 4
      %v4421 = vshll.u32 %v4154, 16
      %v4423 = vrot.slane %v4421, 5
      %v4424 = vsel %vm603, %v4419, %v4423
      %v4425 = vshrl.u32 %v4154, 16
      %v4427 = vrot.slane %v4425, 4
      %v4428 = vor.u32 %v4427, %v4423
      %v4429 = vrot.slane %v4428, 4
      %v4431 = vshll.u32 %v4155, 16
      %v4433 = vrot.slane %v4431, 5
      %v4434 = vsel %vm603, %v4429, %v4433
      %v4436 = vshrl.u32 %v4156, 16
      %v4438 = vrot.slane %v4436, 4
      %v4439 = vshll.u32 %v4156, 16
      %v4441 = vrot.slane %v4439, 5
      %v4442 = vor.u32 %v4438, %v4441
      %v4443 = vrot.slane %v4442, 4
      %v4445 = vshll.u32 %v4157, 16
      %v4447 = vrot.slane %v4445, 5
      %v4448 = vsel %vm603, %v4443, %v4447
      %v4449 = vshrl.u32 %v4157, 16
      %v4451 = vrot.slane %v4449, 4
      %v4452 = vor.u32 %v4451, %v4447
      %v4453 = vrot.slane %v4452, 4
      %v4455 = vshll.u32 %v4158, 16
      %v4457 = vrot.slane %v4455, 5
      %v4458 = vsel %vm603, %v4453, %v4457
      %v4460 = vshrl.u32 %v4159, 16
      %v4462 = vrot.slane %v4460, 4
      %v4463 = vshll.u32 %v4159, 16
      %v4465 = vrot.slane %v4463, 5
      %v4466 = vor.u32 %v4462, %v4465
      %v4467 = vrot.slane %v4466, 4
      %v4469 = vshll.u32 %v4160, 16
      %v4471 = vrot.slane %v4469, 5
      %v4472 = vsel %vm603, %v4467, %v4471
      %v4473 = vshrl.u32 %v4160, 16
      %v4475 = vrot.slane %v4473, 4
      %v4476 = vor.u32 %v4475, %v4471
      %v4477 = vrot.slane %v4476, 4
      %v4479 = vshll.u32 %v4161, 16
      %v4481 = vrot.slane %v4479, 5
      %v4482 = vsel %vm603, %v4477, %v4481
      %v4484 = vshrl.u32 %v4162, 16
      %v4486 = vrot.slane %v4484, 4
      %v4487 = vshll.u32 %v4162, 16
      %v4489 = vrot.slane %v4487, 5
      %v4490 = vor.u32 %v4486, %v4489
      %v4491 = vrot.slane %v4490, 4
      %v4493 = vshll.u32 %v4163, 16
      %v4495 = vrot.slane %v4493, 5
      %v4496 = vsel %vm603, %v4491, %v4495
      %v4497 = vshrl.u32 %v4163, 16
      %v4499 = vrot.slane %v4497, 4
      %v4500 = vor.u32 %v4499, %v4495
      %v4501 = vrot.slane %v4500, 4
      %v4503 = vshll.u32 %v4164, 16
      %v4505 = vrot.slane %v4503, 5
      %v4506 = vsel %vm603, %v4501, %v4505
      %v4508 = vshrl.u32 %v4165, 16
      %v4510 = vrot.slane %v4508, 4
      %v4511 = vshll.u32 %v4165, 16
      %v4513 = vrot.slane %v4511, 5
      %v4514 = vor.u32 %v4510, %v4513
      %v4515 = vrot.slane %v4514, 4
      %v4517 = vshll.u32 %v4166, 16
      %v4519 = vrot.slane %v4517, 5
      %v4520 = vsel %vm603, %v4515, %v4519
      %v4521 = vshrl.u32 %v4166, 16
      %v4523 = vrot.slane %v4521, 4
      %v4524 = vor.u32 %v4523, %v4519
      %v4525 = vrot.slane %v4524, 4
      %v4527 = vshll.u32 %v4167, 16
      %v4529 = vrot.slane %v4527, 5
      %v4530 = vsel %vm603, %v4525, %v4529
      %v4532 = vshrl.u32 %v4168, 16
      %v4534 = vrot.slane %v4532, 4
      %v4535 = vshll.u32 %v4168, 16
      %v4537 = vrot.slane %v4535, 5
      %v4538 = vor.u32 %v4534, %v4537
      %v4539 = vrot.slane %v4538, 4
      %v4541 = vshll.u32 %v4169, 16
      %v4543 = vrot.slane %v4541, 5
      %v4544 = vsel %vm603, %v4539, %v4543
      %v4545 = vshrl.u32 %v4169, 16
      %v4547 = vrot.slane %v4545, 4
      %v4548 = vor.u32 %v4547, %v4543
      %v4549 = vrot.slane %v4548, 4
      %v4551 = vshll.u32 %v4170, 16
      %v4553 = vrot.slane %v4551, 5
      %v4554 = vsel %vm603, %v4549, %v4553
      %s4555 = scalar_lea.vmem %s1, 14
      %v4556 = vld [vmem:[%s4555] sm:$0x3]
      %v4557 = vunpack.c.l.b16 %v4184
      %v4558 = vunpack.c.l.b16 %v4194
      %v4559 = vunpack.c.l.b16 %v4208
      %v4560 = vunpack.c.l.b16 %v4218
      %v4561 = vunpack.c.l.b16 %v4232
      %v4562 = vunpack.c.l.b16 %v4242
      %v4563 = vunpack.c.l.b16 %v4256
      %v4564 = vunpack.c.l.b16 %v4266
      %v4565 = vunpack.c.l.b16 %v4280
      %v4566 = vunpack.c.l.b16 %v4290
      %v4567 = vunpack.c.l.b16 %v4304
      %v4568 = vunpack.c.l.b16 %v4314
      %v4569 = vunpack.c.l.b16 %v4328
      %v4570 = vunpack.c.l.b16 %v4338
      %v4571 = vunpack.c.l.b16 %v4352
      %v4572 = vunpack.c.l.b16 %v4362
      %v4573 = vunpack.c.l.b16 %v4376
      %v4574 = vunpack.c.l.b16 %v4386
      %v4575 = vunpack.c.l.b16 %v4400
      %v4576 = vunpack.c.l.b16 %v4410
      %v4577 = vunpack.c.l.b16 %v4424
      %v4578 = vunpack.c.l.b16 %v4434
      %v4579 = vunpack.c.l.b16 %v4448
      %v4580 = vunpack.c.l.b16 %v4458
      %v4581 = vunpack.c.l.b16 %v4472
      %v4582 = vunpack.c.l.b16 %v4482
      %v4583 = vunpack.c.l.b16 %v4496
      %v4584 = vunpack.c.l.b16 %v4506
      %v4585 = vunpack.c.l.b16 %v4520
      %v4586 = vunpack.c.l.b16 %v4530
      %v4587 = vunpack.c.l.b16 %v4544
      %v4588 = vunpack.c.l.b16 %v4554
      %v4589 = vpack.c.b16 %v4558, %v4557
      %v4590 = vpack.c.b16 %v4560, %v4559
      %v4591 = vpack.c.b16 %v4562, %v4561
      %v4592 = vpack.c.b16 %v4564, %v4563
      %v4593 = vpack.c.b16 %v4566, %v4565
      %v4594 = vpack.c.b16 %v4568, %v4567
      %v4595 = vpack.c.b16 %v4570, %v4569
      %v4596 = vpack.c.b16 %v4572, %v4571
      %v4597 = vpack.c.b16 %v4574, %v4573
      %v4598 = vpack.c.b16 %v4576, %v4575
      %v4599 = vpack.c.b16 %v4578, %v4577
      %v4600 = vpack.c.b16 %v4580, %v4579
      %v4601 = vpack.c.b16 %v4582, %v4581
      %v4602 = vpack.c.b16 %v4584, %v4583
      %v4603 = vpack.c.b16 %v4586, %v4585
      %v4604 = vpack.c.b16 %v4588, %v4587
      %v4606 = vsel %vm307, %v4589, 0
      %v4609 = vsel %vm307, %v4590, 0
      %v4612 = vsel %vm307, %v4591, 0
      %v4615 = vsel %vm307, %v4592, 0
      %v4618 = vsel %vm307, %v4593, 0
      %v4621 = vsel %vm307, %v4594, 0
      %v4624 = vsel %vm307, %v4595, 0
      %v4627 = vsel %vm307, %v4596, 0
      %v4630 = vsel %vm307, %v4597, 0
      %v4633 = vsel %vm307, %v4598, 0
      %v4636 = vsel %vm307, %v4599, 0
      %v4639 = vsel %vm307, %v4600, 0
      %v4642 = vsel %vm307, %v4601, 0
      %v4645 = vsel %vm307, %v4602, 0
      %v4648 = vsel %vm307, %v4603, 0
      %v4651 = vsel %vm307, %v4604, 0
      %v4654 = vsel %vm356, %v4556, 0
      %4656 = vmatprep.subr.bf16.mxu0 0
      %4657 = vmatpush1.bf16.msra.mxu0 0
      %4658 = vmatprep.subr.bf16.mxu0 0
      %4659 = vmatpush1.bf16.msra.mxu0 0
      %4660 = vmatprep.subr.bf16.mxu0 0
      %4661 = vmatpush1.bf16.msra.mxu0 0
      %4662 = vmatprep.subr.bf16.mxu0 0
      %4663 = vmatpush1.bf16.msra.mxu0 0
      %4664 = vmatprep.subr.bf16.mxu0 0
      %4665 = vmatpush1.bf16.msra.mxu0 0
      %4666 = vmatprep.subr.bf16.mxu0 0
      %4667 = vmatpush1.bf16.msra.mxu0 0
      %4668 = vmatprep.subr.bf16.mxu0 0
      %4669 = vmatpush1.bf16.msra.mxu0 0
      %4670 = vmatprep.subr.bf16.mxu0 0
      %4671 = vmatpush1.bf16.msra.mxu0 %v4654
      %4672 = vmatprep.subr.bf16.mxu0 0
      %4673 = vmatpush2.bf16.msra.mxu0 0
      %4674 = vmatprep.subr.bf16.mxu0 0
      %4675 = vmatpush2.bf16.msra.mxu0 0
      %4676 = vmatprep.subr.bf16.mxu0 0
      %4677 = vmatpush2.bf16.msra.mxu0 0
      %4678 = vmatprep.subr.bf16.mxu0 0
      %4679 = vmatpush2.bf16.msra.mxu0 0
      %4680 = vmatprep.subr.bf16.mxu0 0
      %4681 = vmatpush2.bf16.msra.mxu0 0
      %4682 = vmatprep.subr.bf16.mxu0 0
      %4683 = vmatpush2.bf16.msra.mxu0 0
      %4684 = vmatprep.subr.bf16.mxu0 0
      %4685 = vmatpush2.bf16.msra.mxu0 0
      %4686 = vmatprep.subr.bf16.mxu0 0
      %4687 = vmatpush2.bf16.msra.mxu0 0
      %4688 = vmatprep.mubr.bf16.mxu0 0
      %4689 = vmatmul.mubr.bf16.gmra.mxu0 %v4606
      %v4690 = vpop.f32.mrf.mxu0
      %v4691 = vadd.f32 0.0, %v4690
      %v4692 = vpop.f32.mrf.mxu0
      %v4693 = vpop.f32.mrf.mxu0
      %v4694 = vadd.f32 0.0, %v4693
      %v4695 = vpop.f32.mrf.mxu0
      %4696 = vmatprep.mubr.bf16.mxu0 0
      %4697 = vmatmul.mubr.bf16.gmra.mxu0 %v4609
      %v4698 = vpop.f32.mrf.mxu0
      %v4699 = vadd.f32 0.0, %v4698
      %v4700 = vpop.f32.mrf.mxu0
      %v4701 = vpop.f32.mrf.mxu0
      %v4702 = vadd.f32 0.0, %v4701
      %v4703 = vpop.f32.mrf.mxu0
      %4704 = vmatprep.mubr.bf16.mxu0 0
      %4705 = vmatmul.mubr.bf16.gmra.mxu0 %v4612
      %v4706 = vpop.f32.mrf.mxu0
      %v4707 = vadd.f32 0.0, %v4706
      %v4708 = vpop.f32.mrf.mxu0
      %v4709 = vpop.f32.mrf.mxu0
      %v4710 = vadd.f32 0.0, %v4709
      %v4711 = vpop.f32.mrf.mxu0
      %4712 = vmatprep.mubr.bf16.mxu0 0
      %4713 = vmatmul.mubr.bf16.gmra.mxu0 %v4615
      %v4714 = vpop.f32.mrf.mxu0
      %v4715 = vadd.f32 0.0, %v4714
      %v4716 = vpop.f32.mrf.mxu0
      %v4717 = vpop.f32.mrf.mxu0
      %v4718 = vadd.f32 0.0, %v4717
      %v4719 = vpop.f32.mrf.mxu0
      %4720 = vmatprep.mubr.bf16.mxu0 0
      %4721 = vmatmul.mubr.bf16.gmra.mxu0 %v4618
      %v4722 = vpop.f32.mrf.mxu0
      %v4723 = vadd.f32 0.0, %v4722
      %v4724 = vpop.f32.mrf.mxu0
      %v4725 = vpop.f32.mrf.mxu0
      %v4726 = vadd.f32 0.0, %v4725
      %v4727 = vpop.f32.mrf.mxu0
      %4728 = vmatprep.mubr.bf16.mxu0 0
      %4729 = vmatmul.mubr.bf16.gmra.mxu0 %v4621
      %v4730 = vpop.f32.mrf.mxu0
      %v4731 = vadd.f32 0.0, %v4730
      %v4732 = vpop.f32.mrf.mxu0
      %v4733 = vpop.f32.mrf.mxu0
      %v4734 = vadd.f32 0.0, %v4733
      %v4735 = vpop.f32.mrf.mxu0
      %4736 = vmatprep.mubr.bf16.mxu0 0
      %4737 = vmatmul.mubr.bf16.gmra.mxu0 %v4624
      %v4738 = vpop.f32.mrf.mxu0
      %v4739 = vadd.f32 0.0, %v4738
      %v4740 = vpop.f32.mrf.mxu0
      %v4741 = vpop.f32.mrf.mxu0
      %v4742 = vadd.f32 0.0, %v4741
      %v4743 = vpop.f32.mrf.mxu0
      %4744 = vmatprep.mubr.bf16.mxu0 0
      %4745 = vmatmul.mubr.bf16.gmra.mxu0 %v4627
      %v4746 = vpop.f32.mrf.mxu0
      %v4747 = vadd.f32 0.0, %v4746
      %v4748 = vpop.f32.mrf.mxu0
      %v4749 = vpop.f32.mrf.mxu0
      %v4750 = vadd.f32 0.0, %v4749
      %v4751 = vpop.f32.mrf.mxu0
      %4752 = vmatprep.mubr.bf16.mxu0 0
      %4753 = vmatmul.mubr.bf16.gmra.mxu0 %v4630
      %v4754 = vpop.f32.mrf.mxu0
      %v4755 = vadd.f32 0.0, %v4754
      %v4756 = vpop.f32.mrf.mxu0
      %v4757 = vpop.f32.mrf.mxu0
      %v4758 = vadd.f32 0.0, %v4757
      %v4759 = vpop.f32.mrf.mxu0
      %4760 = vmatprep.mubr.bf16.mxu0 0
      %4761 = vmatmul.mubr.bf16.gmra.mxu0 %v4633
      %v4762 = vpop.f32.mrf.mxu0
      %v4763 = vadd.f32 0.0, %v4762
      %v4764 = vpop.f32.mrf.mxu0
      %v4765 = vpop.f32.mrf.mxu0
      %v4766 = vadd.f32 0.0, %v4765
      %v4767 = vpop.f32.mrf.mxu0
      %4768 = vmatprep.mubr.bf16.mxu0 0
      %4769 = vmatmul.mubr.bf16.gmra.mxu0 %v4636
      %v4770 = vpop.f32.mrf.mxu0
      %v4771 = vadd.f32 0.0, %v4770
      %v4772 = vpop.f32.mrf.mxu0
      %v4773 = vpop.f32.mrf.mxu0
      %v4774 = vadd.f32 0.0, %v4773
      %v4775 = vpop.f32.mrf.mxu0
      %4776 = vmatprep.mubr.bf16.mxu0 0
      %4777 = vmatmul.mubr.bf16.gmra.mxu0 %v4639
      %v4778 = vpop.f32.mrf.mxu0
      %v4779 = vadd.f32 0.0, %v4778
      %v4780 = vpop.f32.mrf.mxu0
      %v4781 = vpop.f32.mrf.mxu0
      %v4782 = vadd.f32 0.0, %v4781
      %v4783 = vpop.f32.mrf.mxu0
      %4784 = vmatprep.mubr.bf16.mxu0 0
      %4785 = vmatmul.mubr.bf16.gmra.mxu0 %v4642
      %v4786 = vpop.f32.mrf.mxu0
      %v4787 = vadd.f32 0.0, %v4786
      %v4788 = vpop.f32.mrf.mxu0
      %v4789 = vpop.f32.mrf.mxu0
      %v4790 = vadd.f32 0.0, %v4789
      %v4791 = vpop.f32.mrf.mxu0
      %4792 = vmatprep.mubr.bf16.mxu0 0
      %4793 = vmatmul.mubr.bf16.gmra.mxu0 %v4645
      %v4794 = vpop.f32.mrf.mxu0
      %v4795 = vadd.f32 0.0, %v4794
      %v4796 = vpop.f32.mrf.mxu0
      %v4797 = vpop.f32.mrf.mxu0
      %v4798 = vadd.f32 0.0, %v4797
      %v4799 = vpop.f32.mrf.mxu0
      %4800 = vmatprep.mubr.bf16.mxu0 0
      %4801 = vmatmul.mubr.bf16.gmra.mxu0 %v4648
      %v4802 = vpop.f32.mrf.mxu0
      %v4803 = vadd.f32 0.0, %v4802
      %v4804 = vpop.f32.mrf.mxu0
      %v4805 = vpop.f32.mrf.mxu0
      %v4806 = vadd.f32 0.0, %v4805
      %v4807 = vpop.f32.mrf.mxu0
      %4808 = vmatprep.mubr.bf16.mxu0 0
      %4809 = vmatmul.mubr.bf16.gmra.mxu0 %v4651
      %v4810 = vpop.f32.mrf.mxu0
      %v4811 = vadd.f32 0.0, %v4810
      %v4812 = vpop.f32.mrf.mxu0
      %v4813 = vpop.f32.mrf.mxu0
      %v4814 = vadd.f32 0.0, %v4813
      %v4815 = vpop.f32.mrf.mxu0
      %4816 = vdwg.mxu0
      %v4817 = vld [vmem:[#allocation2] sm:$0xff]
      %v4818 = vld [vmem:[#allocation2 + $0x8] sm:$0xff]
      %v4819 = vld [vmem:[#allocation2 + $0x10] sm:$0xff]
      %v4820 = vld [vmem:[#allocation2 + $0x18] sm:$0xff]
      %v4821 = vld [vmem:[#allocation2 + $0x20] sm:$0xff]
      %v4822 = vld [vmem:[#allocation2 + $0x28] sm:$0xff]
      %v4823 = vld [vmem:[#allocation2 + $0x30] sm:$0xff]
      %v4824 = vld [vmem:[#allocation2 + $0x38] sm:$0xff]
      %v4825 = vld [vmem:[#allocation2 + $0x40] sm:$0xff]
      %v4826 = vld [vmem:[#allocation2 + $0x48] sm:$0xff]
      %v4827 = vld [vmem:[#allocation2 + $0x50] sm:$0xff]
      %v4828 = vld [vmem:[#allocation2 + $0x58] sm:$0xff]
      %v4829 = vld [vmem:[#allocation2 + $0x60] sm:$0xff]
      %v4830 = vld [vmem:[#allocation2 + $0x68] sm:$0xff]
      %v4831 = vld [vmem:[#allocation2 + $0x70] sm:$0xff]
      %v4832 = vld [vmem:[#allocation2 + $0x78] sm:$0xff]
      %v4833 = vld [vmem:[#allocation2 + $0x80] sm:$0xff]
      %v4834 = vld [vmem:[#allocation2 + $0x88] sm:$0xff]
      %v4835 = vld [vmem:[#allocation2 + $0x90] sm:$0xff]
      %v4836 = vld [vmem:[#allocation2 + $0x98] sm:$0xff]
      %v4837 = vld [vmem:[#allocation2 + $0xa0] sm:$0xff]
      %v4838 = vld [vmem:[#allocation2 + $0xa8] sm:$0xff]
      %v4839 = vld [vmem:[#allocation2 + $0xb0] sm:$0xff]
      %v4840 = vld [vmem:[#allocation2 + $0xb8] sm:$0xff]
      %v4841 = vld [vmem:[#allocation2 + $0xc0] sm:$0xff]
      %v4842 = vld [vmem:[#allocation2 + $0xc8] sm:$0xff]
      %v4843 = vld [vmem:[#allocation2 + $0xd0] sm:$0xff]
      %v4844 = vld [vmem:[#allocation2 + $0xd8] sm:$0xff]
      %v4845 = vld [vmem:[#allocation2 + $0xe0] sm:$0xff]
      %v4846 = vld [vmem:[#allocation2 + $0xe8] sm:$0xff]
      %v4847 = vld [vmem:[#allocation2 + $0xf0] sm:$0xff]
      %v4848 = vld [vmem:[#allocation2 + $0xf8] sm:$0xff]
      %v4849 = vadd.f32 %v4817, %v4691
      %v4850 = vadd.f32 %v4818, %v4694
      %v4851 = vadd.f32 %v4819, %v4699
      %v4852 = vadd.f32 %v4820, %v4702
      %v4853 = vadd.f32 %v4821, %v4707
      %v4854 = vadd.f32 %v4822, %v4710
      %v4855 = vadd.f32 %v4823, %v4715
      %v4856 = vadd.f32 %v4824, %v4718
      %v4857 = vadd.f32 %v4825, %v4723
      %v4858 = vadd.f32 %v4826, %v4726
      %v4859 = vadd.f32 %v4827, %v4731
      %v4860 = vadd.f32 %v4828, %v4734
      %v4861 = vadd.f32 %v4829, %v4739
      %v4862 = vadd.f32 %v4830, %v4742
      %v4863 = vadd.f32 %v4831, %v4747
      %v4864 = vadd.f32 %v4832, %v4750
      %v4865 = vadd.f32 %v4833, %v4755
      %v4866 = vadd.f32 %v4834, %v4758
      %v4867 = vadd.f32 %v4835, %v4763
      %v4868 = vadd.f32 %v4836, %v4766
      %v4869 = vadd.f32 %v4837, %v4771
      %v4870 = vadd.f32 %v4838, %v4774
      %v4871 = vadd.f32 %v4839, %v4779
      %v4872 = vadd.f32 %v4840, %v4782
      %v4873 = vadd.f32 %v4841, %v4787
      %v4874 = vadd.f32 %v4842, %v4790
      %v4875 = vadd.f32 %v4843, %v4795
      %v4876 = vadd.f32 %v4844, %v4798
      %v4877 = vadd.f32 %v4845, %v4803
      %v4878 = vadd.f32 %v4846, %v4806
      %v4879 = vadd.f32 %v4847, %v4811
      %v4880 = vadd.f32 %v4848, %v4814
      %4881 = vst [vmem:[#allocation2] sm:$0xff] %v4849
      %4882 = vst [vmem:[#allocation2 + $0x8] sm:$0xff] %v4850
      %4883 = vst [vmem:[#allocation2 + $0x10] sm:$0xff] %v4851
      %4884 = vst [vmem:[#allocation2 + $0x18] sm:$0xff] %v4852
      %4885 = vst [vmem:[#allocation2 + $0x20] sm:$0xff] %v4853
      %4886 = vst [vmem:[#allocation2 + $0x28] sm:$0xff] %v4854
      %4887 = vst [vmem:[#allocation2 + $0x30] sm:$0xff] %v4855
      %4888 = vst [vmem:[#allocation2 + $0x38] sm:$0xff] %v4856
      %4889 = vst [vmem:[#allocation2 + $0x40] sm:$0xff] %v4857
      %4890 = vst [vmem:[#allocation2 + $0x48] sm:$0xff] %v4858
      %4891 = vst [vmem:[#allocation2 + $0x50] sm:$0xff] %v4859
      %4892 = vst [vmem:[#allocation2 + $0x58] sm:$0xff] %v4860
      %4893 = vst [vmem:[#allocation2 + $0x60] sm:$0xff] %v4861
      %4894 = vst [vmem:[#allocation2 + $0x68] sm:$0xff] %v4862
      %4895 = vst [vmem:[#allocation2 + $0x70] sm:$0xff] %v4863
      %4896 = vst [vmem:[#allocation2 + $0x78] sm:$0xff] %v4864
      %4897 = vst [vmem:[#allocation2 + $0x80] sm:$0xff] %v4865
      %4898 = vst [vmem:[#allocation2 + $0x88] sm:$0xff] %v4866
      %4899 = vst [vmem:[#allocation2 + $0x90] sm:$0xff] %v4867
      %4900 = vst [vmem:[#allocation2 + $0x98] sm:$0xff] %v4868
      %4901 = vst [vmem:[#allocation2 + $0xa0] sm:$0xff] %v4869
      %4902 = vst [vmem:[#allocation2 + $0xa8] sm:$0xff] %v4870
      %4903 = vst [vmem:[#allocation2 + $0xb0] sm:$0xff] %v4871
      %4904 = vst [vmem:[#allocation2 + $0xb8] sm:$0xff] %v4872
      %4905 = vst [vmem:[#allocation2 + $0xc0] sm:$0xff] %v4873
      %4906 = vst [vmem:[#allocation2 + $0xc8] sm:$0xff] %v4874
      %4907 = vst [vmem:[#allocation2 + $0xd0] sm:$0xff] %v4875
      %4908 = vst [vmem:[#allocation2 + $0xd8] sm:$0xff] %v4876
      %4909 = vst [vmem:[#allocation2 + $0xe0] sm:$0xff] %v4877
      %4910 = vst [vmem:[#allocation2 + $0xe8] sm:$0xff] %v4878
      %4911 = vst [vmem:[#allocation2 + $0xf0] sm:$0xff] %v4879
      %4912 = vst [vmem:[#allocation2 + $0xf8] sm:$0xff] %v4880
      %v4913 = vld [vmem:[%s3700] sm:$0xe]
      %v4914 = vld [vmem:[%s3700 + $0x4] sm:$0xf]
      %v4915 = vld [vmem:[%s3700 + $0x8] sm:$0x1]
      %v4916 = vld [vmem:[%s3700 + $0xc] sm:$0xe]
      %v4917 = vld [vmem:[%s3700 + $0x10] sm:$0xf]
      %v4918 = vld [vmem:[%s3700 + $0x14] sm:$0x1]
      %v4919 = vld [vmem:[%s3700 + $0x18] sm:$0xe]
      %v4920 = vld [vmem:[%s3700 + $0x1c] sm:$0xf]
      %v4921 = vld [vmem:[%s3700 + $0x20] sm:$0x1]
      %v4922 = vld [vmem:[%s3700 + $0x24] sm:$0xe]
      %v4923 = vld [vmem:[%s3700 + $0x28] sm:$0xf]
      %v4924 = vld [vmem:[%s3700 + $0x2c] sm:$0x1]
      %v4925 = vld [vmem:[%s3700 + $0x30] sm:$0xe]
      %v4926 = vld [vmem:[%s3700 + $0x34] sm:$0xf]
      %v4927 = vld [vmem:[%s3700 + $0x38] sm:$0x1]
      %v4928 = vld [vmem:[%s3700 + $0x3c] sm:$0xe]
      %v4929 = vld [vmem:[%s3700 + $0x40] sm:$0xf]
      %v4930 = vld [vmem:[%s3700 + $0x44] sm:$0x1]
      %v4931 = vld [vmem:[%s3700 + $0x48] sm:$0xe]
      %v4932 = vld [vmem:[%s3700 + $0x4c] sm:$0xf]
      %v4933 = vld [vmem:[%s3700 + $0x50] sm:$0x1]
      %v4934 = vld [vmem:[%s3700 + $0x54] sm:$0xe]
      %v4935 = vld [vmem:[%s3700 + $0x58] sm:$0xf]
      %v4936 = vld [vmem:[%s3700 + $0x5c] sm:$0x1]
      %v4937 = vld [vmem:[%s3700 + $0x60] sm:$0xe]
      %v4938 = vld [vmem:[%s3700 + $0x64] sm:$0xf]
      %v4939 = vld [vmem:[%s3700 + $0x68] sm:$0x1]
      %v4940 = vld [vmem:[%s3700 + $0x6c] sm:$0xe]
      %v4941 = vld [vmem:[%s3700 + $0x70] sm:$0xf]
      %v4942 = vld [vmem:[%s3700 + $0x74] sm:$0x1]
      %v4943 = vld [vmem:[%s3700 + $0x78] sm:$0xe]
      %v4944 = vld [vmem:[%s3700 + $0x7c] sm:$0xf]
      %v4945 = vld [vmem:[%s3700 + $0x80] sm:$0x1]
      %v4946 = vld [vmem:[%s3700 + $0x84] sm:$0xe]
      %v4947 = vld [vmem:[%s3700 + $0x88] sm:$0xf]
      %v4948 = vld [vmem:[%s3700 + $0x8c] sm:$0x1]
      %v4949 = vld [vmem:[%s3700 + $0x90] sm:$0xe]
      %v4950 = vld [vmem:[%s3700 + $0x94] sm:$0xf]
      %v4951 = vld [vmem:[%s3700 + $0x98] sm:$0x1]
      %v4952 = vld [vmem:[%s3700 + $0x9c] sm:$0xe]
      %v4953 = vld [vmem:[%s3700 + $0xa0] sm:$0xf]
      %v4954 = vld [vmem:[%s3700 + $0xa4] sm:$0x1]
      %v4955 = vld [vmem:[%s3700 + $0xa8] sm:$0xe]
      %v4956 = vld [vmem:[%s3700 + $0xac] sm:$0xf]
      %v4957 = vld [vmem:[%s3700 + $0xb0] sm:$0x1]
      %v4958 = vld [vmem:[%s3700 + $0xb4] sm:$0xe]
      %v4959 = vld [vmem:[%s3700 + $0xb8] sm:$0xf]
      %v4960 = vld [vmem:[%s3700 + $0xbc] sm:$0x1]
      %v5009 = vrot.slane %v4913, 5
      %v5010 = vrot.slane %v5009, 4
      %v5011 = vrot.slane %v4914, 5
      %v5012 = vsel %vm1444, %v5010, %v5011
      %v5013 = vrot.slane %v5011, 4
      %v5014 = vrot.slane %v4915, 5
      %v5015 = vsel %vm1444, %v5013, %v5014
      %v5016 = vrot.slane %v4916, 5
      %v5017 = vrot.slane %v5016, 4
      %v5018 = vrot.slane %v4917, 5
      %v5019 = vsel %vm1444, %v5017, %v5018
      %v5020 = vrot.slane %v5018, 4
      %v5021 = vrot.slane %v4918, 5
      %v5022 = vsel %vm1444, %v5020, %v5021
      %v5023 = vrot.slane %v4919, 5
      %v5024 = vrot.slane %v5023, 4
      %v5025 = vrot.slane %v4920, 5
      %v5026 = vsel %vm1444, %v5024, %v5025
      %v5027 = vrot.slane %v5025, 4
      %v5028 = vrot.slane %v4921, 5
      %v5029 = vsel %vm1444, %v5027, %v5028
      %v5030 = vrot.slane %v4922, 5
      %v5031 = vrot.slane %v5030, 4
      %v5032 = vrot.slane %v4923, 5
      %v5033 = vsel %vm1444, %v5031, %v5032
      %v5034 = vrot.slane %v5032, 4
      %v5035 = vrot.slane %v4924, 5
      %v5036 = vsel %vm1444, %v5034, %v5035
      %v5037 = vrot.slane %v4925, 5
      %v5038 = vrot.slane %v5037, 4
      %v5039 = vrot.slane %v4926, 5
      %v5040 = vsel %vm1444, %v5038, %v5039
      %v5041 = vrot.slane %v5039, 4
      %v5042 = vrot.slane %v4927, 5
      %v5043 = vsel %vm1444, %v5041, %v5042
      %v5044 = vrot.slane %v4928, 5
      %v5045 = vrot.slane %v5044, 4
      %v5046 = vrot.slane %v4929, 5
      %v5047 = vsel %vm1444, %v5045, %v5046
      %v5048 = vrot.slane %v5046, 4
      %v5049 = vrot.slane %v4930, 5
      %v5050 = vsel %vm1444, %v5048, %v5049
      %v5051 = vrot.slane %v4931, 5
      %v5052 = vrot.slane %v5051, 4
      %v5053 = vrot.slane %v4932, 5
      %v5054 = vsel %vm1444, %v5052, %v5053
      %v5055 = vrot.slane %v5053, 4
      %v5056 = vrot.slane %v4933, 5
      %v5057 = vsel %vm1444, %v5055, %v5056
      %v5058 = vrot.slane %v4934, 5
      %v5059 = vrot.slane %v5058, 4
      %v5060 = vrot.slane %v4935, 5
      %v5061 = vsel %vm1444, %v5059, %v5060
      %v5062 = vrot.slane %v5060, 4
      %v5063 = vrot.slane %v4936, 5
      %v5064 = vsel %vm1444, %v5062, %v5063
      %v5065 = vrot.slane %v4937, 5
      %v5066 = vrot.slane %v5065, 4
      %v5067 = vrot.slane %v4938, 5
      %v5068 = vsel %vm1444, %v5066, %v5067
      %v5069 = vrot.slane %v5067, 4
      %v5070 = vrot.slane %v4939, 5
      %v5071 = vsel %vm1444, %v5069, %v5070
      %v5072 = vrot.slane %v4940, 5
      %v5073 = vrot.slane %v5072, 4
      %v5074 = vrot.slane %v4941, 5
      %v5075 = vsel %vm1444, %v5073, %v5074
      %v5076 = vrot.slane %v5074, 4
      %v5077 = vrot.slane %v4942, 5
      %v5078 = vsel %vm1444, %v5076, %v5077
      %v5079 = vrot.slane %v4943, 5
      %v5080 = vrot.slane %v5079, 4
      %v5081 = vrot.slane %v4944, 5
      %v5082 = vsel %vm1444, %v5080, %v5081
      %v5083 = vrot.slane %v5081, 4
      %v5084 = vrot.slane %v4945, 5
      %v5085 = vsel %vm1444, %v5083, %v5084
      %v5086 = vrot.slane %v4946, 5
      %v5087 = vrot.slane %v5086, 4
      %v5088 = vrot.slane %v4947, 5
      %v5089 = vsel %vm1444, %v5087, %v5088
      %v5090 = vrot.slane %v5088, 4
      %v5091 = vrot.slane %v4948, 5
      %v5092 = vsel %vm1444, %v5090, %v5091
      %v5093 = vrot.slane %v4949, 5
      %v5094 = vrot.slane %v5093, 4
      %v5095 = vrot.slane %v4950, 5
      %v5096 = vsel %vm1444, %v5094, %v5095
      %v5097 = vrot.slane %v5095, 4
      %v5098 = vrot.slane %v4951, 5
      %v5099 = vsel %vm1444, %v5097, %v5098
      %v5100 = vrot.slane %v4952, 5
      %v5101 = vrot.slane %v5100, 4
      %v5102 = vrot.slane %v4953, 5
      %v5103 = vsel %vm1444, %v5101, %v5102
      %v5104 = vrot.slane %v5102, 4
      %v5105 = vrot.slane %v4954, 5
      %v5106 = vsel %vm1444, %v5104, %v5105
      %v5107 = vrot.slane %v4955, 5
      %v5108 = vrot.slane %v5107, 4
      %v5109 = vrot.slane %v4956, 5
      %v5110 = vsel %vm1444, %v5108, %v5109
      %v5111 = vrot.slane %v5109, 4
      %v5112 = vrot.slane %v4957, 5
      %v5113 = vsel %vm1444, %v5111, %v5112
      %v5114 = vrot.slane %v4958, 5
      %v5115 = vrot.slane %v5114, 4
      %v5116 = vrot.slane %v4959, 5
      %v5117 = vsel %vm1444, %v5115, %v5116
      %v5118 = vrot.slane %v5116, 4
      %v5119 = vrot.slane %v4960, 5
      %v5120 = vsel %vm1444, %v5118, %v5119
      %s5121 = scalar_lea.vmem %s1, 16
      %v5122 = vld [vmem:[%s5121] sm:$0x3]
      %v5123 = vunpack.c.l.b16 %v5012
      %v5124 = vunpack.c.l.b16 %v5015
      %v5125 = vunpack.c.l.b16 %v5019
      %v5126 = vunpack.c.l.b16 %v5022
      %v5127 = vunpack.c.l.b16 %v5026
      %v5128 = vunpack.c.l.b16 %v5029
      %v5129 = vunpack.c.l.b16 %v5033
      %v5130 = vunpack.c.l.b16 %v5036
      %v5131 = vunpack.c.l.b16 %v5040
      %v5132 = vunpack.c.l.b16 %v5043
      %v5133 = vunpack.c.l.b16 %v5047
      %v5134 = vunpack.c.l.b16 %v5050
      %v5135 = vunpack.c.l.b16 %v5054
      %v5136 = vunpack.c.l.b16 %v5057
      %v5137 = vunpack.c.l.b16 %v5061
      %v5138 = vunpack.c.l.b16 %v5064
      %v5139 = vunpack.c.l.b16 %v5068
      %v5140 = vunpack.c.l.b16 %v5071
      %v5141 = vunpack.c.l.b16 %v5075
      %v5142 = vunpack.c.l.b16 %v5078
      %v5143 = vunpack.c.l.b16 %v5082
      %v5144 = vunpack.c.l.b16 %v5085
      %v5145 = vunpack.c.l.b16 %v5089
      %v5146 = vunpack.c.l.b16 %v5092
      %v5147 = vunpack.c.l.b16 %v5096
      %v5148 = vunpack.c.l.b16 %v5099
      %v5149 = vunpack.c.l.b16 %v5103
      %v5150 = vunpack.c.l.b16 %v5106
      %v5151 = vunpack.c.l.b16 %v5110
      %v5152 = vunpack.c.l.b16 %v5113
      %v5153 = vunpack.c.l.b16 %v5117
      %v5154 = vunpack.c.l.b16 %v5120
      %v5155 = vpack.c.b16 %v5124, %v5123
      %v5156 = vpack.c.b16 %v5126, %v5125
      %v5157 = vpack.c.b16 %v5128, %v5127
      %v5158 = vpack.c.b16 %v5130, %v5129
      %v5159 = vpack.c.b16 %v5132, %v5131
      %v5160 = vpack.c.b16 %v5134, %v5133
      %v5161 = vpack.c.b16 %v5136, %v5135
      %v5162 = vpack.c.b16 %v5138, %v5137
      %v5163 = vpack.c.b16 %v5140, %v5139
      %v5164 = vpack.c.b16 %v5142, %v5141
      %v5165 = vpack.c.b16 %v5144, %v5143
      %v5166 = vpack.c.b16 %v5146, %v5145
      %v5167 = vpack.c.b16 %v5148, %v5147
      %v5168 = vpack.c.b16 %v5150, %v5149
      %v5169 = vpack.c.b16 %v5152, %v5151
      %v5170 = vpack.c.b16 %v5154, %v5153
      %v5172 = vsel %vm307, %v5155, 0
      %v5175 = vsel %vm307, %v5156, 0
      %v5178 = vsel %vm307, %v5157, 0
      %v5181 = vsel %vm307, %v5158, 0
      %v5184 = vsel %vm307, %v5159, 0
      %v5187 = vsel %vm307, %v5160, 0
      %v5190 = vsel %vm307, %v5161, 0
      %v5193 = vsel %vm307, %v5162, 0
      %v5196 = vsel %vm307, %v5163, 0
      %v5199 = vsel %vm307, %v5164, 0
      %v5202 = vsel %vm307, %v5165, 0
      %v5205 = vsel %vm307, %v5166, 0
      %v5208 = vsel %vm307, %v5167, 0
      %v5211 = vsel %vm307, %v5168, 0
      %v5214 = vsel %vm307, %v5169, 0
      %v5217 = vsel %vm307, %v5170, 0
      %v5220 = vsel %vm356, %v5122, 0
      %5222 = vmatprep.subr.bf16.mxu0 0
      %5223 = vmatpush1.bf16.msra.mxu0 0
      %5224 = vmatprep.subr.bf16.mxu0 0
      %5225 = vmatpush1.bf16.msra.mxu0 0
      %5226 = vmatprep.subr.bf16.mxu0 0
      %5227 = vmatpush1.bf16.msra.mxu0 0
      %5228 = vmatprep.subr.bf16.mxu0 0
      %5229 = vmatpush1.bf16.msra.mxu0 0
      %5230 = vmatprep.subr.bf16.mxu0 0
      %5231 = vmatpush1.bf16.msra.mxu0 0
      %5232 = vmatprep.subr.bf16.mxu0 0
      %5233 = vmatpush1.bf16.msra.mxu0 0
      %5234 = vmatprep.subr.bf16.mxu0 0
      %5235 = vmatpush1.bf16.msra.mxu0 0
      %5236 = vmatprep.subr.bf16.mxu0 0
      %5237 = vmatpush1.bf16.msra.mxu0 %v5220
      %5238 = vmatprep.subr.bf16.mxu0 0
      %5239 = vmatpush2.bf16.msra.mxu0 0
      %5240 = vmatprep.subr.bf16.mxu0 0
      %5241 = vmatpush2.bf16.msra.mxu0 0
      %5242 = vmatprep.subr.bf16.mxu0 0
      %5243 = vmatpush2.bf16.msra.mxu0 0
      %5244 = vmatprep.subr.bf16.mxu0 0
      %5245 = vmatpush2.bf16.msra.mxu0 0
      %5246 = vmatprep.subr.bf16.mxu0 0
      %5247 = vmatpush2.bf16.msra.mxu0 0
      %5248 = vmatprep.subr.bf16.mxu0 0
      %5249 = vmatpush2.bf16.msra.mxu0 0
      %5250 = vmatprep.subr.bf16.mxu0 0
      %5251 = vmatpush2.bf16.msra.mxu0 0
      %5252 = vmatprep.subr.bf16.mxu0 0
      %5253 = vmatpush2.bf16.msra.mxu0 0
      %5254 = vmatprep.mubr.bf16.mxu0 0
      %5255 = vmatmul.mubr.bf16.gmra.mxu0 %v5172
      %v5256 = vpop.f32.mrf.mxu0
      %v5257 = vadd.f32 0.0, %v5256
      %v5258 = vpop.f32.mrf.mxu0
      %v5259 = vpop.f32.mrf.mxu0
      %v5260 = vadd.f32 0.0, %v5259
      %v5261 = vpop.f32.mrf.mxu0
      %5262 = vmatprep.mubr.bf16.mxu0 0
      %5263 = vmatmul.mubr.bf16.gmra.mxu0 %v5175
      %v5264 = vpop.f32.mrf.mxu0
      %v5265 = vadd.f32 0.0, %v5264
      %v5266 = vpop.f32.mrf.mxu0
      %v5267 = vpop.f32.mrf.mxu0
      %v5268 = vadd.f32 0.0, %v5267
      %v5269 = vpop.f32.mrf.mxu0
      %5270 = vmatprep.mubr.bf16.mxu0 0
      %5271 = vmatmul.mubr.bf16.gmra.mxu0 %v5178
      %v5272 = vpop.f32.mrf.mxu0
      %v5273 = vadd.f32 0.0, %v5272
      %v5274 = vpop.f32.mrf.mxu0
      %v5275 = vpop.f32.mrf.mxu0
      %v5276 = vadd.f32 0.0, %v5275
      %v5277 = vpop.f32.mrf.mxu0
      %5278 = vmatprep.mubr.bf16.mxu0 0
      %5279 = vmatmul.mubr.bf16.gmra.mxu0 %v5181
      %v5280 = vpop.f32.mrf.mxu0
      %v5281 = vadd.f32 0.0, %v5280
      %v5282 = vpop.f32.mrf.mxu0
      %v5283 = vpop.f32.mrf.mxu0
      %v5284 = vadd.f32 0.0, %v5283
      %v5285 = vpop.f32.mrf.mxu0
      %5286 = vmatprep.mubr.bf16.mxu0 0
      %5287 = vmatmul.mubr.bf16.gmra.mxu0 %v5184
      %v5288 = vpop.f32.mrf.mxu0
      %v5289 = vadd.f32 0.0, %v5288
      %v5290 = vpop.f32.mrf.mxu0
      %v5291 = vpop.f32.mrf.mxu0
      %v5292 = vadd.f32 0.0, %v5291
      %v5293 = vpop.f32.mrf.mxu0
      %5294 = vmatprep.mubr.bf16.mxu0 0
      %5295 = vmatmul.mubr.bf16.gmra.mxu0 %v5187
      %v5296 = vpop.f32.mrf.mxu0
      %v5297 = vadd.f32 0.0, %v5296
      %v5298 = vpop.f32.mrf.mxu0
      %v5299 = vpop.f32.mrf.mxu0
      %v5300 = vadd.f32 0.0, %v5299
      %v5301 = vpop.f32.mrf.mxu0
      %5302 = vmatprep.mubr.bf16.mxu0 0
      %5303 = vmatmul.mubr.bf16.gmra.mxu0 %v5190
      %v5304 = vpop.f32.mrf.mxu0
      %v5305 = vadd.f32 0.0, %v5304
      %v5306 = vpop.f32.mrf.mxu0
      %v5307 = vpop.f32.mrf.mxu0
      %v5308 = vadd.f32 0.0, %v5307
      %v5309 = vpop.f32.mrf.mxu0
      %5310 = vmatprep.mubr.bf16.mxu0 0
      %5311 = vmatmul.mubr.bf16.gmra.mxu0 %v5193
      %v5312 = vpop.f32.mrf.mxu0
      %v5313 = vadd.f32 0.0, %v5312
      %v5314 = vpop.f32.mrf.mxu0
      %v5315 = vpop.f32.mrf.mxu0
      %v5316 = vadd.f32 0.0, %v5315
      %v5317 = vpop.f32.mrf.mxu0
      %5318 = vmatprep.mubr.bf16.mxu0 0
      %5319 = vmatmul.mubr.bf16.gmra.mxu0 %v5196
      %v5320 = vpop.f32.mrf.mxu0
      %v5321 = vadd.f32 0.0, %v5320
      %v5322 = vpop.f32.mrf.mxu0
      %v5323 = vpop.f32.mrf.mxu0
      %v5324 = vadd.f32 0.0, %v5323
      %v5325 = vpop.f32.mrf.mxu0
      %5326 = vmatprep.mubr.bf16.mxu0 0
      %5327 = vmatmul.mubr.bf16.gmra.mxu0 %v5199
      %v5328 = vpop.f32.mrf.mxu0
      %v5329 = vadd.f32 0.0, %v5328
      %v5330 = vpop.f32.mrf.mxu0
      %v5331 = vpop.f32.mrf.mxu0
      %v5332 = vadd.f32 0.0, %v5331
      %v5333 = vpop.f32.mrf.mxu0
      %5334 = vmatprep.mubr.bf16.mxu0 0
      %5335 = vmatmul.mubr.bf16.gmra.mxu0 %v5202
      %v5336 = vpop.f32.mrf.mxu0
      %v5337 = vadd.f32 0.0, %v5336
      %v5338 = vpop.f32.mrf.mxu0
      %v5339 = vpop.f32.mrf.mxu0
      %v5340 = vadd.f32 0.0, %v5339
      %v5341 = vpop.f32.mrf.mxu0
      %5342 = vmatprep.mubr.bf16.mxu0 0
      %5343 = vmatmul.mubr.bf16.gmra.mxu0 %v5205
      %v5344 = vpop.f32.mrf.mxu0
      %v5345 = vadd.f32 0.0, %v5344
      %v5346 = vpop.f32.mrf.mxu0
      %v5347 = vpop.f32.mrf.mxu0
      %v5348 = vadd.f32 0.0, %v5347
      %v5349 = vpop.f32.mrf.mxu0
      %5350 = vmatprep.mubr.bf16.mxu0 0
      %5351 = vmatmul.mubr.bf16.gmra.mxu0 %v5208
      %v5352 = vpop.f32.mrf.mxu0
      %v5353 = vadd.f32 0.0, %v5352
      %v5354 = vpop.f32.mrf.mxu0
      %v5355 = vpop.f32.mrf.mxu0
      %v5356 = vadd.f32 0.0, %v5355
      %v5357 = vpop.f32.mrf.mxu0
      %5358 = vmatprep.mubr.bf16.mxu0 0
      %5359 = vmatmul.mubr.bf16.gmra.mxu0 %v5211
      %v5360 = vpop.f32.mrf.mxu0
      %v5361 = vadd.f32 0.0, %v5360
      %v5362 = vpop.f32.mrf.mxu0
      %v5363 = vpop.f32.mrf.mxu0
      %v5364 = vadd.f32 0.0, %v5363
      %v5365 = vpop.f32.mrf.mxu0
      %5366 = vmatprep.mubr.bf16.mxu0 0
      %5367 = vmatmul.mubr.bf16.gmra.mxu0 %v5214
      %v5368 = vpop.f32.mrf.mxu0
      %v5369 = vadd.f32 0.0, %v5368
      %v5370 = vpop.f32.mrf.mxu0
      %v5371 = vpop.f32.mrf.mxu0
      %v5372 = vadd.f32 0.0, %v5371
      %v5373 = vpop.f32.mrf.mxu0
      %5374 = vmatprep.mubr.bf16.mxu0 0
      %5375 = vmatmul.mubr.bf16.gmra.mxu0 %v5217
      %v5376 = vpop.f32.mrf.mxu0
      %v5377 = vadd.f32 0.0, %v5376
      %v5378 = vpop.f32.mrf.mxu0
      %v5379 = vpop.f32.mrf.mxu0
      %v5380 = vadd.f32 0.0, %v5379
      %v5381 = vpop.f32.mrf.mxu0
      %5382 = vdwg.mxu0
      %v5383 = vld [vmem:[#allocation2] sm:$0xff]
      %v5384 = vld [vmem:[#allocation2 + $0x8] sm:$0xff]
      %v5385 = vld [vmem:[#allocation2 + $0x10] sm:$0xff]
      %v5386 = vld [vmem:[#allocation2 + $0x18] sm:$0xff]
      %v5387 = vld [vmem:[#allocation2 + $0x20] sm:$0xff]
      %v5388 = vld [vmem:[#allocation2 + $0x28] sm:$0xff]
      %v5389 = vld [vmem:[#allocation2 + $0x30] sm:$0xff]
      %v5390 = vld [vmem:[#allocation2 + $0x38] sm:$0xff]
      %v5391 = vld [vmem:[#allocation2 + $0x40] sm:$0xff]
      %v5392 = vld [vmem:[#allocation2 + $0x48] sm:$0xff]
      %v5393 = vld [vmem:[#allocation2 + $0x50] sm:$0xff]
      %v5394 = vld [vmem:[#allocation2 + $0x58] sm:$0xff]
      %v5395 = vld [vmem:[#allocation2 + $0x60] sm:$0xff]
      %v5396 = vld [vmem:[#allocation2 + $0x68] sm:$0xff]
      %v5397 = vld [vmem:[#allocation2 + $0x70] sm:$0xff]
      %v5398 = vld [vmem:[#allocation2 + $0x78] sm:$0xff]
      %v5399 = vld [vmem:[#allocation2 + $0x80] sm:$0xff]
      %v5400 = vld [vmem:[#allocation2 + $0x88] sm:$0xff]
      %v5401 = vld [vmem:[#allocation2 + $0x90] sm:$0xff]
      %v5402 = vld [vmem:[#allocation2 + $0x98] sm:$0xff]
      %v5403 = vld [vmem:[#allocation2 + $0xa0] sm:$0xff]
      %v5404 = vld [vmem:[#allocation2 + $0xa8] sm:$0xff]
      %v5405 = vld [vmem:[#allocation2 + $0xb0] sm:$0xff]
      %v5406 = vld [vmem:[#allocation2 + $0xb8] sm:$0xff]
      %v5407 = vld [vmem:[#allocation2 + $0xc0] sm:$0xff]
      %v5408 = vld [vmem:[#allocation2 + $0xc8] sm:$0xff]
      %v5409 = vld [vmem:[#allocation2 + $0xd0] sm:$0xff]
      %v5410 = vld [vmem:[#allocation2 + $0xd8] sm:$0xff]
      %v5411 = vld [vmem:[#allocation2 + $0xe0] sm:$0xff]
      %v5412 = vld [vmem:[#allocation2 + $0xe8] sm:$0xff]
      %v5413 = vld [vmem:[#allocation2 + $0xf0] sm:$0xff]
      %v5414 = vld [vmem:[#allocation2 + $0xf8] sm:$0xff]
      %v5415 = vadd.f32 %v5383, %v5257
      %v5416 = vadd.f32 %v5384, %v5260
      %v5417 = vadd.f32 %v5385, %v5265
      %v5418 = vadd.f32 %v5386, %v5268
      %v5419 = vadd.f32 %v5387, %v5273
      %v5420 = vadd.f32 %v5388, %v5276
      %v5421 = vadd.f32 %v5389, %v5281
      %v5422 = vadd.f32 %v5390, %v5284
      %v5423 = vadd.f32 %v5391, %v5289
      %v5424 = vadd.f32 %v5392, %v5292
      %v5425 = vadd.f32 %v5393, %v5297
      %v5426 = vadd.f32 %v5394, %v5300
      %v5427 = vadd.f32 %v5395, %v5305
      %v5428 = vadd.f32 %v5396, %v5308
      %v5429 = vadd.f32 %v5397, %v5313
      %v5430 = vadd.f32 %v5398, %v5316
      %v5431 = vadd.f32 %v5399, %v5321
      %v5432 = vadd.f32 %v5400, %v5324
      %v5433 = vadd.f32 %v5401, %v5329
      %v5434 = vadd.f32 %v5402, %v5332
      %v5435 = vadd.f32 %v5403, %v5337
      %v5436 = vadd.f32 %v5404, %v5340
      %v5437 = vadd.f32 %v5405, %v5345
      %v5438 = vadd.f32 %v5406, %v5348
      %v5439 = vadd.f32 %v5407, %v5353
      %v5440 = vadd.f32 %v5408, %v5356
      %v5441 = vadd.f32 %v5409, %v5361
      %v5442 = vadd.f32 %v5410, %v5364
      %v5443 = vadd.f32 %v5411, %v5369
      %v5444 = vadd.f32 %v5412, %v5372
      %v5445 = vadd.f32 %v5413, %v5377
      %v5446 = vadd.f32 %v5414, %v5380
      %5447 = vst [vmem:[#allocation2] sm:$0xff] %v5415
      %5448 = vst [vmem:[#allocation2 + $0x8] sm:$0xff] %v5416
      %5449 = vst [vmem:[#allocation2 + $0x10] sm:$0xff] %v5417
      %5450 = vst [vmem:[#allocation2 + $0x18] sm:$0xff] %v5418
      %5451 = vst [vmem:[#allocation2 + $0x20] sm:$0xff] %v5419
      %5452 = vst [vmem:[#allocation2 + $0x28] sm:$0xff] %v5420
      %5453 = vst [vmem:[#allocation2 + $0x30] sm:$0xff] %v5421
      %5454 = vst [vmem:[#allocation2 + $0x38] sm:$0xff] %v5422
      %5455 = vst [vmem:[#allocation2 + $0x40] sm:$0xff] %v5423
      %5456 = vst [vmem:[#allocation2 + $0x48] sm:$0xff] %v5424
      %5457 = vst [vmem:[#allocation2 + $0x50] sm:$0xff] %v5425
      %5458 = vst [vmem:[#allocation2 + $0x58] sm:$0xff] %v5426
      %5459 = vst [vmem:[#allocation2 + $0x60] sm:$0xff] %v5427
      %5460 = vst [vmem:[#allocation2 + $0x68] sm:$0xff] %v5428
      %5461 = vst [vmem:[#allocation2 + $0x70] sm:$0xff] %v5429
      %5462 = vst [vmem:[#allocation2 + $0x78] sm:$0xff] %v5430
      %5463 = vst [vmem:[#allocation2 + $0x80] sm:$0xff] %v5431
      %5464 = vst [vmem:[#allocation2 + $0x88] sm:$0xff] %v5432
      %5465 = vst [vmem:[#allocation2 + $0x90] sm:$0xff] %v5433
      %5466 = vst [vmem:[#allocation2 + $0x98] sm:$0xff] %v5434
      %5467 = vst [vmem:[#allocation2 + $0xa0] sm:$0xff] %v5435
      %5468 = vst [vmem:[#allocation2 + $0xa8] sm:$0xff] %v5436
      %5469 = vst [vmem:[#allocation2 + $0xb0] sm:$0xff] %v5437
      %5470 = vst [vmem:[#allocation2 + $0xb8] sm:$0xff] %v5438
      %5471 = vst [vmem:[#allocation2 + $0xc0] sm:$0xff] %v5439
      %5472 = vst [vmem:[#allocation2 + $0xc8] sm:$0xff] %v5440
      %5473 = vst [vmem:[#allocation2 + $0xd0] sm:$0xff] %v5441
      %5474 = vst [vmem:[#allocation2 + $0xd8] sm:$0xff] %v5442
      %5475 = vst [vmem:[#allocation2 + $0xe0] sm:$0xff] %v5443
      %5476 = vst [vmem:[#allocation2 + $0xe8] sm:$0xff] %v5444
      %5477 = vst [vmem:[#allocation2 + $0xf0] sm:$0xff] %v5445
      %5478 = vst [vmem:[#allocation2 + $0xf8] sm:$0xff] %v5446
      %v5479 = vld [vmem:[#allocation2] sm:$0xff]
      %v5480 = vld [vmem:[#allocation2 + $0x8] sm:$0xff]
      %v5481 = vld [vmem:[#allocation2 + $0x10] sm:$0xff]
      %v5482 = vld [vmem:[#allocation2 + $0x18] sm:$0xff]
      %v5483 = vld [vmem:[#allocation2 + $0x20] sm:$0xff]
      %v5484 = vld [vmem:[#allocation2 + $0x28] sm:$0xff]
      %v5485 = vld [vmem:[#allocation2 + $0x30] sm:$0xff]
      %v5486 = vld [vmem:[#allocation2 + $0x38] sm:$0xff]
      %v5487 = vld [vmem:[#allocation2 + $0x40] sm:$0xff]
      %v5488 = vld [vmem:[#allocation2 + $0x48] sm:$0xff]
      %v5489 = vld [vmem:[#allocation2 + $0x50] sm:$0xff]
      %v5490 = vld [vmem:[#allocation2 + $0x58] sm:$0xff]
      %v5491 = vld [vmem:[#allocation2 + $0x60] sm:$0xff]
      %v5492 = vld [vmem:[#allocation2 + $0x68] sm:$0xff]
      %v5493 = vld [vmem:[#allocation2 + $0x70] sm:$0xff]
      %v5494 = vld [vmem:[#allocation2 + $0x78] sm:$0xff]
      %v5495 = vld [vmem:[#allocation2 + $0x80] sm:$0xff]
      %v5496 = vld [vmem:[#allocation2 + $0x88] sm:$0xff]
      %v5497 = vld [vmem:[#allocation2 + $0x90] sm:$0xff]
      %v5498 = vld [vmem:[#allocation2 + $0x98] sm:$0xff]
      %v5499 = vld [vmem:[#allocation2 + $0xa0] sm:$0xff]
      %v5500 = vld [vmem:[#allocation2 + $0xa8] sm:$0xff]
      %v5501 = vld [vmem:[#allocation2 + $0xb0] sm:$0xff]
      %v5502 = vld [vmem:[#allocation2 + $0xb8] sm:$0xff]
      %v5503 = vld [vmem:[#allocation2 + $0xc0] sm:$0xff]
      %v5504 = vld [vmem:[#allocation2 + $0xc8] sm:$0xff]
      %v5505 = vld [vmem:[#allocation2 + $0xd0] sm:$0xff]
      %v5506 = vld [vmem:[#allocation2 + $0xd8] sm:$0xff]
      %v5507 = vld [vmem:[#allocation2 + $0xe0] sm:$0xff]
      %v5508 = vld [vmem:[#allocation2 + $0xe8] sm:$0xff]
      %v5509 = vld [vmem:[#allocation2 + $0xf0] sm:$0xff]
      %v5510 = vld [vmem:[#allocation2 + $0xf8] sm:$0xff]
      %v5511 = vld [vmem:[%s2] sm:$0x1]
      %v5513 = vlaneseq
      %v5514 = vshrl.u32 %v5513, 7
      %v5515 = vsub.s32 0, %v5514
      %v5516 = vrot.slane %v5511, %v5515
      %v5518 = vadd.f32 %v5479, %v5516
      %v5519 = vadd.f32 %v5480, %v5516
      %v5520 = vadd.f32 %v5481, %v5516
      %v5521 = vadd.f32 %v5482, %v5516
      %v5522 = vadd.f32 %v5483, %v5516
      %v5523 = vadd.f32 %v5484, %v5516
      %v5524 = vadd.f32 %v5485, %v5516
      %v5525 = vadd.f32 %v5486, %v5516
      %v5526 = vadd.f32 %v5487, %v5516
      %v5527 = vadd.f32 %v5488, %v5516
      %v5528 = vadd.f32 %v5489, %v5516
      %v5529 = vadd.f32 %v5490, %v5516
      %v5530 = vadd.f32 %v5491, %v5516
      %v5531 = vadd.f32 %v5492, %v5516
      %v5532 = vadd.f32 %v5493, %v5516
      %v5533 = vadd.f32 %v5494, %v5516
      %v5534 = vadd.f32 %v5495, %v5516
      %v5535 = vadd.f32 %v5496, %v5516
      %v5536 = vadd.f32 %v5497, %v5516
      %v5537 = vadd.f32 %v5498, %v5516
      %v5538 = vadd.f32 %v5499, %v5516
      %v5539 = vadd.f32 %v5500, %v5516
      %v5540 = vadd.f32 %v5501, %v5516
      %v5541 = vadd.f32 %v5502, %v5516
      %v5542 = vadd.f32 %v5503, %v5516
      %v5543 = vadd.f32 %v5504, %v5516
      %v5544 = vadd.f32 %v5505, %v5516
      %v5545 = vadd.f32 %v5506, %v5516
      %v5546 = vadd.f32 %v5507, %v5516
      %v5547 = vadd.f32 %v5508, %v5516
      %v5548 = vadd.f32 %v5509, %v5516
      %v5549 = vadd.f32 %v5510, %v5516
      %v5550 = vmax.f32 %v5518, 0.0
      %v5551 = vmax.f32 %v5519, 0.0
      %v5552 = vmax.f32 %v5520, 0.0
      %v5553 = vmax.f32 %v5521, 0.0
      %v5554 = vmax.f32 %v5522, 0.0
      %v5555 = vmax.f32 %v5523, 0.0
      %v5556 = vmax.f32 %v5524, 0.0
      %v5557 = vmax.f32 %v5525, 0.0
      %v5558 = vmax.f32 %v5526, 0.0
      %v5559 = vmax.f32 %v5527, 0.0
      %v5560 = vmax.f32 %v5528, 0.0
      %v5561 = vmax.f32 %v5529, 0.0
      %v5562 = vmax.f32 %v5530, 0.0
      %v5563 = vmax.f32 %v5531, 0.0
      %v5564 = vmax.f32 %v5532, 0.0
      %v5565 = vmax.f32 %v5533, 0.0
      %v5566 = vmax.f32 %v5534, 0.0
      %v5567 = vmax.f32 %v5535, 0.0
      %v5568 = vmax.f32 %v5536, 0.0
      %v5569 = vmax.f32 %v5537, 0.0
      %v5570 = vmax.f32 %v5538, 0.0
      %v5571 = vmax.f32 %v5539, 0.0
      %v5572 = vmax.f32 %v5540, 0.0
      %v5573 = vmax.f32 %v5541, 0.0
      %v5574 = vmax.f32 %v5542, 0.0
      %v5575 = vmax.f32 %v5543, 0.0
      %v5576 = vmax.f32 %v5544, 0.0
      %v5577 = vmax.f32 %v5545, 0.0
      %v5578 = vmax.f32 %v5546, 0.0
      %v5579 = vmax.f32 %v5547, 0.0
      %v5580 = vmax.f32 %v5548, 0.0
      %v5581 = vmax.f32 %v5549, 0.0
      %5582 = vst [vmem:[%s186] sm:$0xff] %v5550
      %5583 = vst [vmem:[%s186 + $0x8] sm:$0xff] %v5551
      %5584 = vst [vmem:[%s186 + $0x10] sm:$0xff] %v5552
      %5585 = vst [vmem:[%s186 + $0x18] sm:$0xff] %v5553
      %5586 = vst [vmem:[%s186 + $0x20] sm:$0xff] %v5554
      %5587 = vst [vmem:[%s186 + $0x28] sm:$0xff] %v5555
      %5588 = vst [vmem:[%s186 + $0x30] sm:$0xff] %v5556
      %5589 = vst [vmem:[%s186 + $0x38] sm:$0xff] %v5557
      %5590 = vst [vmem:[%s186 + $0x40] sm:$0xff] %v5558
      %5591 = vst [vmem:[%s186 + $0x48] sm:$0xff] %v5559
      %5592 = vst [vmem:[%s186 + $0x50] sm:$0xff] %v5560
      %5593 = vst [vmem:[%s186 + $0x58] sm:$0xff] %v5561
      %5594 = vst [vmem:[%s186 + $0x60] sm:$0xff] %v5562
      %5595 = vst [vmem:[%s186 + $0x68] sm:$0xff] %v5563
      %5596 = vst [vmem:[%s186 + $0x70] sm:$0xff] %v5564
      %5597 = vst [vmem:[%s186 + $0x78] sm:$0xff] %v5565
      %5598 = vst [vmem:[%s186 + $0x80] sm:$0xff] %v5566
      %5599 = vst [vmem:[%s186 + $0x88] sm:$0xff] %v5567
      %5600 = vst [vmem:[%s186 + $0x90] sm:$0xff] %v5568
      %5601 = vst [vmem:[%s186 + $0x98] sm:$0xff] %v5569
      %5602 = vst [vmem:[%s186 + $0xa0] sm:$0xff] %v5570
      %5603 = vst [vmem:[%s186 + $0xa8] sm:$0xff] %v5571
      %5604 = vst [vmem:[%s186 + $0xb0] sm:$0xff] %v5572
      %5605 = vst [vmem:[%s186 + $0xb8] sm:$0xff] %v5573
      %5606 = vst [vmem:[%s186 + $0xc0] sm:$0xff] %v5574
      %5607 = vst [vmem:[%s186 + $0xc8] sm:$0xff] %v5575
      %5608 = vst [vmem:[%s186 + $0xd0] sm:$0xff] %v5576
      %5609 = vst [vmem:[%s186 + $0xd8] sm:$0xff] %v5577
      %5610 = vst [vmem:[%s186 + $0xe0] sm:$0xff] %v5578
      %5611 = vst [vmem:[%s186 + $0xe8] sm:$0xff] %v5579
      %5612 = vst [vmem:[%s186 + $0xf0] sm:$0xff] %v5580
      %5613 = vst [vmem:[%s186 + $0xf8] sm:$0xff] %v5581
      %s5614 = sadd.s32 %s18, %s19
      %s5615 = smul.u32 32, %s5614
      %p5616 = scmp.lt.s32.totalorder %s5615, 63
      %s5617 = scalar_select %p5616, %s5615, 63
      %s5618 = smul.addr %s5617, 8
      %s5619 = scalar_lea.vmem %s3, %s5618
      // Predicated region
      $region33: #{basic_conv_forward.1} parent=31 // pred_check
        %p5620 = pneg %p114
      $region34: #{basic_conv_forward.1} parent=31 // pred_check_branch
        %5622 = sbr.rel (%p5620) target = $region36
      $region35: #{basic_conv_forward.1} parent=31 // pred_region
        %s5623 = sadd.s32 %s18, %s19
        %s5624 = smul.u32 32, %s5623
      $region36: #{basic_conv_forward.1} parent=31 // pred_fallthru
        _
    $region32: #{basic_conv_forward.1} parent=5 // pred_fallthru
      _
    %p5625 = scmp.le.s32.totalorder 2, %s9
    // Predicated region
    $region37: #{basic_conv_forward.1} parent=5 // pred_check
      %p5626 = pneg %p5625
    $region38: #{basic_conv_forward.1} parent=5 // pred_check_branch
      %5628 = sbr.rel (%p5626) target = $region40
    $region39: #{basic_conv_forward.1} parent=5 // pred_region
      %s5629 = ssub.s32 %s9, 2
      // Predicated region
      $region41: #{basic_conv_forward.1} parent=39 // pred_check
        %p5630 = pneg %p120
      $region42: #{basic_conv_forward.1} parent=39 // pred_check_branch
        %5632 = sbr.rel (%p5630) target = $region44
      $region43: #{basic_conv_forward.1} parent=39 // pred_region
        %s5633 = sadd.s32 %s20, %s21
        %s5634 = smul.u32 32, %s5633
        %p5635 = scmp.lt.s32.totalorder %s5634, 63
        %s5636 = scalar_select %p5635, %s5634, 63
        %s5637 = smul.addr %s5636, 8
        %s5638 = scalar_lea.vmem %s3, %s5637
      $region44: #{basic_conv_forward.1} parent=39 // pred_fallthru
        _
    $region40: #{basic_conv_forward.1} parent=5 // pred_fallthru
      _
  $region6: #{basic_conv_forward.1} parent=0 // loop_footer
    %s13 = sadd.s32 1, %s9
  $region7: #{basic_conv_forward.1} parent=0 // loop_footer_branch
    %8 = sbr.rel target = $region3
  $region8: #{basic_conv_forward.1} parent=0 // loop_exit
    _

</llo_original>
